<compile_context>
chip_gen: v7x
topology: tpu7x:2x2x1
jax: 0.10.0
libtpu: 0.0.40
codegen_flags: <defaults>
</compile_context>

<pallas_src>
import functools
import math

import numpy as np

import jax
import jax.numpy as jnp
from jax.experimental import pallas as pl
from jax.experimental.pallas import tpu as pltpu


# ------------------------------ Pallas kernel -------------------------------

def _lenet5_kernel(x_ref, w1, b1, p1, w2, b2, p2, w3, b3,
                   wf1, bf1, wf2, bf2, o_ref,
                   s1, s2, s3, act1, act2, *, widths, k):
    """Fused LeNet-5 forward for one sample (grid iterates over the batch)."""

    def conv_tanh(xin_ref, w_ref, b_ref, patch_ref, width):
        # Build the (k*k*Cin, Ho*W) "wide" im2col tile from static slices of
        # the flattened (row stride = width) input, then one MXU GEMM.
        kk_cin, m_wide = patch_ref.shape
        cin = kk_cin // (k * k)
        for t in range(k * k):
            i, j = divmod(t, k)
            d = i * width + j
            patch_ref[t * cin:(t + 1) * cin, :] = xin_ref[:, d:d + m_wide]
        acc = jnp.dot(w_ref[...], patch_ref[...],
                      preferred_element_type=jnp.float32)
        return jnp.tanh(acc + b_ref[...])           # (Cout, Ho*W)

    # conv1 + tanh, then avg-pool / relayout via the constant pooling matrix.
    a1 = conv_tanh(x_ref.at[0], w1, b1, s1, widths[0])            # (6, 896)
    act1[...] = jnp.dot(a1, p1[...], preferred_element_type=jnp.float32)

    # conv2 + tanh + pool.
    a2 = conv_tanh(act1, w2, b2, s2, widths[1])                   # (16, 140)
    act2[...] = jnp.dot(a2, p2[...], preferred_element_type=jnp.float32)

    # conv3 + tanh (spatial 5x5 -> 1x1); only column 0 of the wide output is
    # valid -- the classifier below is applied column-wise and col 0 is stored.
    a3 = conv_tanh(act2, w3, b3, s3, widths[2])                   # (120, 5)

    # classifier: fc1 + tanh + fc2 in column orientation (torch weights as-is).
    h = jnp.tanh(jnp.dot(wf1[...], a3, preferred_element_type=jnp.float32)
                 + bf1[...])                                      # (84, 5)
    logits = jnp.dot(wf2[...], h, preferred_element_type=jnp.float32) \
        + bf2[...]                                                # (nc, 5)
    o_ref[0] = logits[:, 0:1].astype(o_ref.dtype)


# ------------------------- one-time parameter packing -----------------------

def _make_pool_matrix(h_in, w_in, k, pad_out):
    """Constant matrix folding 2x2/stride-2 avg-pool of the 'wide' conv output
    into the next layer's padded, row-stride-Wp flattened input layout."""
    ho, wo = h_in - k + 1, w_in - k + 1
    hp, wp = ho // 2, wo // 2
    p = np.zeros((ho * w_in, hp * wp + pad_out), np.float32)
    for py in range(hp):
        for px in range(wp):
            for dy in range(2):
                for dx in range(2):
                    p[(2 * py + dy) * w_in + (2 * px + dx), py * wp + px] = 0.25
    return p


def pack_params(params, image_hw=(32, 32)):
    """Pre-pack torch-layout params for the kernel (hoisted out of forward)."""
    k = params["c1_w"].shape[-1]
    h1, w1 = image_hw
    h2, w2 = (h1 - k + 1) // 2, (w1 - k + 1) // 2
    h3, w3 = (h2 - k + 1) // 2, (w2 - k + 1) // 2
    assert h3 - k + 1 == 1 and w3 - k + 1 == 1, "classic LeNet-5 needs 32x32"

    def pack_conv(w):  # (Cout, Cin, k, k) -> (Cout, k*k*Cin), (i,j)-major
        cout, cin, kh, kw = w.shape
        return jnp.transpose(w, (0, 2, 3, 1)).reshape(cout, kh * kw * cin)

    return {
        "w1": pack_conv(params["c1_w"]), "b1": params["c1_b"].reshape(-1, 1),
        "p1": jnp.asarray(_make_pool_matrix(h1, w1, k, k - 1)),
        "w2": pack_conv(params["c2_w"]), "b2": params["c2_b"].reshape(-1, 1),
        "p2": jnp.asarray(_make_pool_matrix(h2, w2, k, k - 1)),
        "w3": pack_conv(params["c3_w"]), "b3": params["c3_b"].reshape(-1, 1),
        "wf1": params["fc1_w"], "bf1": params["fc1_b"].reshape(-1, 1),
        "wf2": params["fc2_w"], "bf2": params["fc2_b"].reshape(-1, 1),
    }


# --------------------------------- forward ----------------------------------

def lenet5_forward(packed, x):
    """Matches LeNet5.forward for NCHW (or CHW-batched 3-D) float input."""
    if x.ndim == 3:                                  # torch: x.unsqueeze(1)
        x = x[:, None, :, :]
    x = x.astype(jnp.float32)

    n, cin, h, w = x.shape
    k = int(math.isqrt(packed["w1"].shape[1] // cin))
    assert k * k * cin == packed["w1"].shape[1]
    h2, w2 = (h - k + 1) // 2, (w - k + 1) // 2
    h3, w3 = (h2 - k + 1) // 2, (w2 - k + 1) // 2
    assert h3 - k + 1 == 1 and w3 - k + 1 == 1, "classic LeNet-5 needs 32x32"

    c1 = packed["w1"].shape[0]
    c2 = packed["w2"].shape[0]
    num_classes = packed["wf2"].shape[0]
    pad = k - 1
    m1, m2, m3 = (h - k + 1) * w, (h2 - k + 1) * w2, (h3 - k + 1) * w3
    assert packed["p1"].shape == (m1, h2 * w2 + pad)
    assert packed["p2"].shape == (m2, h3 * w3 + pad)

    # Only XLA glue on activations: flatten + pad the raw input once.
    s_in = h * w + pad
    x_flat = jnp.pad(x.reshape(n, cin, h * w), ((0, 0), (0, 0), (0, pad)))

    def _resident(a):  # whole array in VMEM, same block for every grid step
        return pl.BlockSpec(a.shape, lambda *_, _nd=a.ndim: (0,) * _nd)

    grid_spec = pltpu.PrefetchScalarGridSpec(
        num_scalar_prefetch=0,
        grid=(n,),
        in_specs=[
            pl.BlockSpec((1, cin, s_in), lambda i: (i, 0, 0)),
            _resident(packed["w1"]), _resident(packed["b1"]),
            _resident(packed["p1"]),
            _resident(packed["w2"]), _resident(packed["b2"]),
            _resident(packed["p2"]),
            _resident(packed["w3"]), _resident(packed["b3"]),
            _resident(packed["wf1"]), _resident(packed["bf1"]),
            _resident(packed["wf2"]), _resident(packed["bf2"]),
        ],
        out_specs=pl.BlockSpec((1, num_classes, 1), lambda i: (i, 0, 0)),
        scratch_shapes=[
            pltpu.VMEM((k * k * cin, m1), jnp.float32),   # conv1 patch tile
            pltpu.VMEM((k * k * c1, m2), jnp.float32),    # conv2 patch tile
            pltpu.VMEM((k * k * c2, m3), jnp.float32),    # conv3 patch tile
            pltpu.VMEM((c1, h2 * w2 + pad), jnp.float32),  # pooled act 1
            pltpu.VMEM((c2, h3 * w3 + pad), jnp.float32),  # pooled act 2
        ],
    )

    kernel = functools.partial(_lenet5_kernel, widths=(w, w2, w3), k=k)
    out = pl.pallas_call(
        kernel,
        out_shape=jax.ShapeDtypeStruct((n, num_classes, 1), jnp.float32),
        grid_spec=grid_spec,
        compiler_params=pltpu.CompilerParams(
            dimension_semantics=("parallel",),        # 2 TCs on v7x, free else
            vmem_limit_bytes=32 * 1024 * 1024,
        ),
    )(x_flat,
      packed["w1"], packed["b1"], packed["p1"],
      packed["w2"], packed["b2"], packed["p2"],
      packed["w3"], packed["b3"],
      packed["wf1"], packed["bf1"], packed["wf2"], packed["bf2"])
    return out.reshape(n, num_classes)


# ----------------------- init + pure-JAX reference --------------------------

def init_params(key, num_classes=10):
    """Deterministic init mimicking torch default (uniform +-1/sqrt(fan_in))."""
    def uniform(k, shape, fan_in):
        bound = 1.0 / float(fan_in) ** 0.5
        return jax.random.uniform(k, shape, jnp.float32, -bound, bound)

    keys = jax.random.split(key, 10)
    return {
        "c1_w": uniform(keys[0], (6, 1, 5, 5), 1 * 25),
        "c1_b": uniform(keys[1], (6,), 1 * 25),
        "c2_w": uniform(keys[2], (16, 6, 5, 5), 6 * 25),
        "c2_b": uniform(keys[3], (16,), 6 * 25),
        "c3_w": uniform(keys[4], (120, 16, 5, 5), 16 * 25),
        "c3_b": uniform(keys[5], (120,), 16 * 25),
        "fc1_w": uniform(keys[6], (84, 120), 120),
        "fc1_b": uniform(keys[7], (84,), 120),
        "fc2_w": uniform(keys[8], (num_classes, 84), 84),
        "fc2_b": uniform(keys[9], (num_classes,), 84),
    }


def lenet5_reference(params, x):
    """Plain-JAX reference identical to the PyTorch module semantics."""
    if x.ndim == 3:
        x = x[:, None, :, :]
    x = x.astype(jnp.float32)
    hp = jax.lax.Precision.HIGHEST

    def conv_tanh(x, w, b):
        y = jax.lax.conv_general_dilated(
            x, w, window_strides=(1, 1), padding="VALID",
            dimension_numbers=("NCHW", "OIHW", "NCHW"), precision=hp)
        return jnp.tanh(y + b.reshape(1, -1, 1, 1))

    def avgpool(x):
        return jax.lax.reduce_window(
            x, 0.0, jax.lax.add, (1, 1, 2, 2), (1, 1, 2, 2), "VALID") * 0.25

    x = avgpool(conv_tanh(x, params["c1_w"], params["c1_b"]))
    x = avgpool(conv_tanh(x, params["c2_w"], params["c2_b"]))
    x = conv_tanh(x, params["c3_w"], params["c3_b"])
    x = x.reshape(x.shape[0], -1)
    x = jnp.tanh(jnp.dot(x, params["fc1_w"].T, precision=hp) + params["fc1_b"])
    return jnp.dot(x, params["fc2_w"].T, precision=hp) + params["fc2_b"]


if __name__ == "__main__":
    key = jax.random.PRNGKey(0)
    pkey, xkey = jax.random.split(key)
    params = init_params(pkey, num_classes=10)
    packed = pack_params(params, image_hw=(32, 32))

    # Classic LeNet-5 expects 32x32 single-channel inputs.
    x = jax.random.normal(xkey, (2, 1, 32, 32), jnp.float32)

    logits = jax.jit(lenet5_forward)(packed, x)
    jax.block_until_ready(logits)
    assert logits.shape == (2, 10), logits.shape
    assert bool(jnp.all(jnp.isfinite(logits)))

    ref = lenet5_reference(params, x)
    max_err = float(jnp.max(jnp.abs(logits - ref)))
    assert max_err < 5e-2, f"max |pallas - reference| = {max_err}"
    print("KERNEL_OK")
</pallas_src>

<mosaic_0001>
module attributes {stable_mosaic.version = 11 : i64} {
  func.func @_lenet5_kernel(%arg0: i32, %arg1: memref<1x1x1028xf32, #tpu.memory_space<vmem>>, %arg2: memref<6x25xf32, #tpu.memory_space<vmem>>, %arg3: memref<6x1xf32, #tpu.memory_space<vmem>>, %arg4: memref<896x200xf32, #tpu.memory_space<vmem>>, %arg5: memref<16x150xf32, #tpu.memory_space<vmem>>, %arg6: memref<16x1xf32, #tpu.memory_space<vmem>>, %arg7: memref<140x29xf32, #tpu.memory_space<vmem>>, %arg8: memref<120x400xf32, #tpu.memory_space<vmem>>, %arg9: memref<120x1xf32, #tpu.memory_space<vmem>>, %arg10: memref<84x120xf32, #tpu.memory_space<vmem>>, %arg11: memref<84x1xf32, #tpu.memory_space<vmem>>, %arg12: memref<10x84xf32, #tpu.memory_space<vmem>>, %arg13: memref<10x1xf32, #tpu.memory_space<vmem>>, %arg14: memref<1x10x1xf32, #tpu.memory_space<vmem>>, %arg15: memref<25x896xf32, #tpu.memory_space<vmem>>, %arg16: memref<150x140xf32, #tpu.memory_space<vmem>>, %arg17: memref<400x5xf32, #tpu.memory_space<vmem>>, %arg18: memref<6x200xf32, #tpu.memory_space<vmem>>, %arg19: memref<16x29xf32, #tpu.memory_space<vmem>>) attributes {dimension_semantics = [#tpu.dimension_semantics<parallel>], iteration_bounds = array<i64: 2>, scalar_prefetch = 0 : i64, scratch_operands = 5 : i64, tpu.core_type = #tpu.core_type<tc>, window_params = [{transform_indices = @transform_0, window_bounds = array<i64: 1, 1, 1028>}, {pipeline_mode = #tpu.pipeline_mode<synchronous>, transform_indices = @transform_1, window_bounds = array<i64: 6, 25>}, {pipeline_mode = #tpu.pipeline_mode<synchronous>, transform_indices = @transform_2, window_bounds = array<i64: 6, 1>}, {pipeline_mode = #tpu.pipeline_mode<synchronous>, transform_indices = @transform_3, window_bounds = array<i64: 896, 200>}, {pipeline_mode = #tpu.pipeline_mode<synchronous>, transform_indices = @transform_4, window_bounds = array<i64: 16, 150>}, {pipeline_mode = #tpu.pipeline_mode<synchronous>, transform_indices = @transform_5, window_bounds = array<i64: 16, 1>}, {pipeline_mode = #tpu.pipeline_mode<synchronous>, transform_indices = @transform_6, window_bounds = array<i64: 140, 29>}, {pipeline_mode = #tpu.pipeline_mode<synchronous>, transform_indices = @transform_7, window_bounds = array<i64: 120, 400>}, {pipeline_mode = #tpu.pipeline_mode<synchronous>, transform_indices = @transform_8, window_bounds = array<i64: 120, 1>}, {pipeline_mode = #tpu.pipeline_mode<synchronous>, transform_indices = @transform_9, window_bounds = array<i64: 84, 120>}, {pipeline_mode = #tpu.pipeline_mode<synchronous>, transform_indices = @transform_10, window_bounds = array<i64: 84, 1>}, {pipeline_mode = #tpu.pipeline_mode<synchronous>, transform_indices = @transform_11, window_bounds = array<i64: 10, 84>}, {pipeline_mode = #tpu.pipeline_mode<synchronous>, transform_indices = @transform_12, window_bounds = array<i64: 10, 1>}, {transform_indices = @transform_13, window_bounds = array<i64: 1, 10, 1>}]} {
    %c0_i32 = arith.constant 0 : i32
    %c0_i32_0 = arith.constant 0 : i32
    %c0_i32_1 = arith.constant 0 : i32
    %0 = tpu.memref_slice %arg1[%c0_i32, %c0_i32_0, %c0_i32_1] : memref<1x1x1028xf32, #tpu.memory_space<vmem>> -> memref<1x1x1028xf32, #tpu.memory_space<vmem>>
    %1 = tpu.memref_squeeze %0 : memref<1x1x1028xf32, #tpu.memory_space<vmem>> -> memref<1x1028xf32, #tpu.memory_space<vmem>>
    %c0 = arith.constant 0 : index
    %c0_2 = arith.constant 0 : index
    %2 = vector.load %1[%c0, %c0_2] : memref<1x1028xf32, #tpu.memory_space<vmem>>, vector<1x896xf32>
    %c0_3 = arith.constant 0 : index
    %c0_4 = arith.constant 0 : index
    %3 = vector.load %arg15[%c0_3, %c0_4] : memref<25x896xf32, #tpu.memory_space<vmem>>, vector<1x896xf32>
    tpu.vector_store %arg15[%c0_3, %c0_4], %2 {strides = array<i32>} : memref<25x896xf32, #tpu.memory_space<vmem>>, vector<1x896xf32>,
    %c0_i32_5 = arith.constant 0 : i32
    %c0_i32_6 = arith.constant 0 : i32
    %c0_i32_7 = arith.constant 0 : i32
    %4 = tpu.memref_slice %arg1[%c0_i32_5, %c0_i32_6, %c0_i32_7] : memref<1x1x1028xf32, #tpu.memory_space<vmem>> -> memref<1x1x1028xf32, #tpu.memory_space<vmem>>
    %5 = tpu.memref_squeeze %4 : memref<1x1x1028xf32, #tpu.memory_space<vmem>> -> memref<1x1028xf32, #tpu.memory_space<vmem>>
    %c0_8 = arith.constant 0 : index
    %c1 = arith.constant 1 : index
    %6 = vector.load %5[%c0_8, %c1] : memref<1x1028xf32, #tpu.memory_space<vmem>>, vector<1x896xf32>
    %c1_9 = arith.constant 1 : index
    %c0_10 = arith.constant 0 : index
    %7 = vector.load %arg15[%c1_9, %c0_10] : memref<25x896xf32, #tpu.memory_space<vmem>>, vector<1x896xf32>
    tpu.vector_store %arg15[%c1_9, %c0_10], %6 {strides = array<i32>} : memref<25x896xf32, #tpu.memory_space<vmem>>, vector<1x896xf32>,
    %c0_i32_11 = arith.constant 0 : i32
    %c0_i32_12 = arith.constant 0 : i32
    %c0_i32_13 = arith.constant 0 : i32
    %8 = tpu.memref_slice %arg1[%c0_i32_11, %c0_i32_12, %c0_i32_13] : memref<1x1x1028xf32, #tpu.memory_space<vmem>> -> memref<1x1x1028xf32, #tpu.memory_space<vmem>>
    %9 = tpu.memref_squeeze %8 : memref<1x1x1028xf32, #tpu.memory_space<vmem>> -> memref<1x1028xf32, #tpu.memory_space<vmem>>
    %c0_14 = arith.constant 0 : index
    %c2 = arith.constant 2 : index
    %10 = vector.load %9[%c0_14, %c2] : memref<1x1028xf32, #tpu.memory_space<vmem>>, vector<1x896xf32>
    %c2_15 = arith.constant 2 : index
    %c0_16 = arith.constant 0 : index
    %11 = vector.load %arg15[%c2_15, %c0_16] : memref<25x896xf32, #tpu.memory_space<vmem>>, vector<1x896xf32>
    tpu.vector_store %arg15[%c2_15, %c0_16], %10 {strides = array<i32>} : memref<25x896xf32, #tpu.memory_space<vmem>>, vector<1x896xf32>,
    %c0_i32_17 = arith.constant 0 : i32
    %c0_i32_18 = arith.constant 0 : i32
    %c0_i32_19 = arith.constant 0 : i32
    %12 = tpu.memref_slice %arg1[%c0_i32_17, %c0_i32_18, %c0_i32_19] : memref<1x1x1028xf32, #tpu.memory_space<vmem>> -> memref<1x1x1028xf32, #tpu.memory_space<vmem>>
    %13 = tpu.memref_squeeze %12 : memref<1x1x1028xf32, #tpu.memory_space<vmem>> -> memref<1x1028xf32, #tpu.memory_space<vmem>>
    %c0_20 = arith.constant 0 : index
    %c3 = arith.constant 3 : index
    %14 = vector.load %13[%c0_20, %c3] : memref<1x1028xf32, #tpu.memory_space<vmem>>, vector<1x896xf32>
    %c3_21 = arith.constant 3 : index
    %c0_22 = arith.constant 0 : index
    %15 = vector.load %arg15[%c3_21, %c0_22] : memref<25x896xf32, #tpu.memory_space<vmem>>, vector<1x896xf32>
    tpu.vector_store %arg15[%c3_21, %c0_22], %14 {strides = array<i32>} : memref<25x896xf32, #tpu.memory_space<vmem>>, vector<1x896xf32>,
    %c0_i32_23 = arith.constant 0 : i32
    %c0_i32_24 = arith.constant 0 : i32
    %c0_i32_25 = arith.constant 0 : i32
    %16 = tpu.memref_slice %arg1[%c0_i32_23, %c0_i32_24, %c0_i32_25] : memref<1x1x1028xf32, #tpu.memory_space<vmem>> -> memref<1x1x1028xf32, #tpu.memory_space<vmem>>
    %17 = tpu.memref_squeeze %16 : memref<1x1x1028xf32, #tpu.memory_space<vmem>> -> memref<1x1028xf32, #tpu.memory_space<vmem>>
    %c0_26 = arith.constant 0 : index
    %c4 = arith.constant 4 : index
    %18 = vector.load %17[%c0_26, %c4] : memref<1x1028xf32, #tpu.memory_space<vmem>>, vector<1x896xf32>
    %c4_27 = arith.constant 4 : index
    %c0_28 = arith.constant 0 : index
    %19 = vector.load %arg15[%c4_27, %c0_28] : memref<25x896xf32, #tpu.memory_space<vmem>>, vector<1x896xf32>
    tpu.vector_store %arg15[%c4_27, %c0_28], %18 {strides = array<i32>} : memref<25x896xf32, #tpu.memory_space<vmem>>, vector<1x896xf32>,
    %c0_i32_29 = arith.constant 0 : i32
    %c0_i32_30 = arith.constant 0 : i32
    %c0_i32_31 = arith.constant 0 : i32
    %20 = tpu.memref_slice %arg1[%c0_i32_29, %c0_i32_30, %c0_i32_31] : memref<1x1x1028xf32, #tpu.memory_space<vmem>> -> memref<1x1x1028xf32, #tpu.memory_space<vmem>>
    %21 = tpu.memref_squeeze %20 : memref<1x1x1028xf32, #tpu.memory_space<vmem>> -> memref<1x1028xf32, #tpu.memory_space<vmem>>
    %c0_32 = arith.constant 0 : index
    %c32 = arith.constant 32 : index
    %22 = vector.load %21[%c0_32, %c32] : memref<1x1028xf32, #tpu.memory_space<vmem>>, vector<1x896xf32>
    %c5 = arith.constant 5 : index
    %c0_33 = arith.constant 0 : index
    %23 = vector.load %arg15[%c5, %c0_33] : memref<25x896xf32, #tpu.memory_space<vmem>>, vector<1x896xf32>
    tpu.vector_store %arg15[%c5, %c0_33], %22 {strides = array<i32>} : memref<25x896xf32, #tpu.memory_space<vmem>>, vector<1x896xf32>,
    %c0_i32_34 = arith.constant 0 : i32
    %c0_i32_35 = arith.constant 0 : i32
    %c0_i32_36 = arith.constant 0 : i32
    %24 = tpu.memref_slice %arg1[%c0_i32_34, %c0_i32_35, %c0_i32_36] : memref<1x1x1028xf32, #tpu.memory_space<vmem>> -> memref<1x1x1028xf32, #tpu.memory_space<vmem>>
    %25 = tpu.memref_squeeze %24 : memref<1x1x1028xf32, #tpu.memory_space<vmem>> -> memref<1x1028xf32, #tpu.memory_space<vmem>>
    %c0_37 = arith.constant 0 : index
    %c33 = arith.constant 33 : index
    %26 = vector.load %25[%c0_37, %c33] : memref<1x1028xf32, #tpu.memory_space<vmem>>, vector<1x896xf32>
    %c6 = arith.constant 6 : index
    %c0_38 = arith.constant 0 : index
    %27 = vector.load %arg15[%c6, %c0_38] : memref<25x896xf32, #tpu.memory_space<vmem>>, vector<1x896xf32>
    tpu.vector_store %arg15[%c6, %c0_38], %26 {strides = array<i32>} : memref<25x896xf32, #tpu.memory_space<vmem>>, vector<1x896xf32>,
    %c0_i32_39 = arith.constant 0 : i32
    %c0_i32_40 = arith.constant 0 : i32
    %c0_i32_41 = arith.constant 0 : i32
    %28 = tpu.memref_slice %arg1[%c0_i32_39, %c0_i32_40, %c0_i32_41] : memref<1x1x1028xf32, #tpu.memory_space<vmem>> -> memref<1x1x1028xf32, #tpu.memory_space<vmem>>
    %29 = tpu.memref_squeeze %28 : memref<1x1x1028xf32, #tpu.memory_space<vmem>> -> memref<1x1028xf32, #tpu.memory_space<vmem>>
    %c0_42 = arith.constant 0 : index
    %c34 = arith.constant 34 : index
    %30 = vector.load %29[%c0_42, %c34] : memref<1x1028xf32, #tpu.memory_space<vmem>>, vector<1x896xf32>
    %c7 = arith.constant 7 : index
    %c0_43 = arith.constant 0 : index
    %31 = vector.load %arg15[%c7, %c0_43] : memref<25x896xf32, #tpu.memory_space<vmem>>, vector<1x896xf32>
    tpu.vector_store %arg15[%c7, %c0_43], %30 {strides = array<i32>} : memref<25x896xf32, #tpu.memory_space<vmem>>, vector<1x896xf32>,
    %c0_i32_44 = arith.constant 0 : i32
    %c0_i32_45 = arith.constant 0 : i32
    %c0_i32_46 = arith.constant 0 : i32
    %32 = tpu.memref_slice %arg1[%c0_i32_44, %c0_i32_45, %c0_i32_46] : memref<1x1x1028xf32, #tpu.memory_space<vmem>> -> memref<1x1x1028xf32, #tpu.memory_space<vmem>>
    %33 = tpu.memref_squeeze %32 : memref<1x1x1028xf32, #tpu.memory_space<vmem>> -> memref<1x1028xf32, #tpu.memory_space<vmem>>
    %c0_47 = arith.constant 0 : index
    %c35 = arith.constant 35 : index
    %34 = vector.load %33[%c0_47, %c35] : memref<1x1028xf32, #tpu.memory_space<vmem>>, vector<1x896xf32>
    %c8 = arith.constant 8 : index
    %c0_48 = arith.constant 0 : index
    %35 = vector.load %arg15[%c8, %c0_48] : memref<25x896xf32, #tpu.memory_space<vmem>>, vector<1x896xf32>
    tpu.vector_store %arg15[%c8, %c0_48], %34 {strides = array<i32>} : memref<25x896xf32, #tpu.memory_space<vmem>>, vector<1x896xf32>,
    %c0_i32_49 = arith.constant 0 : i32
    %c0_i32_50 = arith.constant 0 : i32
    %c0_i32_51 = arith.constant 0 : i32
    %36 = tpu.memref_slice %arg1[%c0_i32_49, %c0_i32_50, %c0_i32_51] : memref<1x1x1028xf32, #tpu.memory_space<vmem>> -> memref<1x1x1028xf32, #tpu.memory_space<vmem>>
    %37 = tpu.memref_squeeze %36 : memref<1x1x1028xf32, #tpu.memory_space<vmem>> -> memref<1x1028xf32, #tpu.memory_space<vmem>>
    %c0_52 = arith.constant 0 : index
    %c36 = arith.constant 36 : index
    %38 = vector.load %37[%c0_52, %c36] : memref<1x1028xf32, #tpu.memory_space<vmem>>, vector<1x896xf32>
    %c9 = arith.constant 9 : index
    %c0_53 = arith.constant 0 : index
    %39 = vector.load %arg15[%c9, %c0_53] : memref<25x896xf32, #tpu.memory_space<vmem>>, vector<1x896xf32>
    tpu.vector_store %arg15[%c9, %c0_53], %38 {strides = array<i32>} : memref<25x896xf32, #tpu.memory_space<vmem>>, vector<1x896xf32>,
    %c0_i32_54 = arith.constant 0 : i32
    %c0_i32_55 = arith.constant 0 : i32
    %c0_i32_56 = arith.constant 0 : i32
    %40 = tpu.memref_slice %arg1[%c0_i32_54, %c0_i32_55, %c0_i32_56] : memref<1x1x1028xf32, #tpu.memory_space<vmem>> -> memref<1x1x1028xf32, #tpu.memory_space<vmem>>
    %41 = tpu.memref_squeeze %40 : memref<1x1x1028xf32, #tpu.memory_space<vmem>> -> memref<1x1028xf32, #tpu.memory_space<vmem>>
    %c0_57 = arith.constant 0 : index
    %c64 = arith.constant 64 : index
    %42 = vector.load %41[%c0_57, %c64] : memref<1x1028xf32, #tpu.memory_space<vmem>>, vector<1x896xf32>
    %c10 = arith.constant 10 : index
    %c0_58 = arith.constant 0 : index
    %43 = vector.load %arg15[%c10, %c0_58] : memref<25x896xf32, #tpu.memory_space<vmem>>, vector<1x896xf32>
    tpu.vector_store %arg15[%c10, %c0_58], %42 {strides = array<i32>} : memref<25x896xf32, #tpu.memory_space<vmem>>, vector<1x896xf32>,
    %c0_i32_59 = arith.constant 0 : i32
    %c0_i32_60 = arith.constant 0 : i32
    %c0_i32_61 = arith.constant 0 : i32
    %44 = tpu.memref_slice %arg1[%c0_i32_59, %c0_i32_60, %c0_i32_61] : memref<1x1x1028xf32, #tpu.memory_space<vmem>> -> memref<1x1x1028xf32, #tpu.memory_space<vmem>>
    %45 = tpu.memref_squeeze %44 : memref<1x1x1028xf32, #tpu.memory_space<vmem>> -> memref<1x1028xf32, #tpu.memory_space<vmem>>
    %c0_62 = arith.constant 0 : index
    %c65 = arith.constant 65 : index
    %46 = vector.load %45[%c0_62, %c65] : memref<1x1028xf32, #tpu.memory_space<vmem>>, vector<1x896xf32>
    %c11 = arith.constant 11 : index
    %c0_63 = arith.constant 0 : index
    %47 = vector.load %arg15[%c11, %c0_63] : memref<25x896xf32, #tpu.memory_space<vmem>>, vector<1x896xf32>
    tpu.vector_store %arg15[%c11, %c0_63], %46 {strides = array<i32>} : memref<25x896xf32, #tpu.memory_space<vmem>>, vector<1x896xf32>,
    %c0_i32_64 = arith.constant 0 : i32
    %c0_i32_65 = arith.constant 0 : i32
    %c0_i32_66 = arith.constant 0 : i32
    %48 = tpu.memref_slice %arg1[%c0_i32_64, %c0_i32_65, %c0_i32_66] : memref<1x1x1028xf32, #tpu.memory_space<vmem>> -> memref<1x1x1028xf32, #tpu.memory_space<vmem>>
    %49 = tpu.memref_squeeze %48 : memref<1x1x1028xf32, #tpu.memory_space<vmem>> -> memref<1x1028xf32, #tpu.memory_space<vmem>>
    %c0_67 = arith.constant 0 : index
    %c66 = arith.constant 66 : index
    %50 = vector.load %49[%c0_67, %c66] : memref<1x1028xf32, #tpu.memory_space<vmem>>, vector<1x896xf32>
    %c12 = arith.constant 12 : index
    %c0_68 = arith.constant 0 : index
    %51 = vector.load %arg15[%c12, %c0_68] : memref<25x896xf32, #tpu.memory_space<vmem>>, vector<1x896xf32>
    tpu.vector_store %arg15[%c12, %c0_68], %50 {strides = array<i32>} : memref<25x896xf32, #tpu.memory_space<vmem>>, vector<1x896xf32>,
    %c0_i32_69 = arith.constant 0 : i32
    %c0_i32_70 = arith.constant 0 : i32
    %c0_i32_71 = arith.constant 0 : i32
    %52 = tpu.memref_slice %arg1[%c0_i32_69, %c0_i32_70, %c0_i32_71] : memref<1x1x1028xf32, #tpu.memory_space<vmem>> -> memref<1x1x1028xf32, #tpu.memory_space<vmem>>
    %53 = tpu.memref_squeeze %52 : memref<1x1x1028xf32, #tpu.memory_space<vmem>> -> memref<1x1028xf32, #tpu.memory_space<vmem>>
    %c0_72 = arith.constant 0 : index
    %c67 = arith.constant 67 : index
    %54 = vector.load %53[%c0_72, %c67] : memref<1x1028xf32, #tpu.memory_space<vmem>>, vector<1x896xf32>
    %c13 = arith.constant 13 : index
    %c0_73 = arith.constant 0 : index
    %55 = vector.load %arg15[%c13, %c0_73] : memref<25x896xf32, #tpu.memory_space<vmem>>, vector<1x896xf32>
    tpu.vector_store %arg15[%c13, %c0_73], %54 {strides = array<i32>} : memref<25x896xf32, #tpu.memory_space<vmem>>, vector<1x896xf32>,
    %c0_i32_74 = arith.constant 0 : i32
    %c0_i32_75 = arith.constant 0 : i32
    %c0_i32_76 = arith.constant 0 : i32
    %56 = tpu.memref_slice %arg1[%c0_i32_74, %c0_i32_75, %c0_i32_76] : memref<1x1x1028xf32, #tpu.memory_space<vmem>> -> memref<1x1x1028xf32, #tpu.memory_space<vmem>>
    %57 = tpu.memref_squeeze %56 : memref<1x1x1028xf32, #tpu.memory_space<vmem>> -> memref<1x1028xf32, #tpu.memory_space<vmem>>
    %c0_77 = arith.constant 0 : index
    %c68 = arith.constant 68 : index
    %58 = vector.load %57[%c0_77, %c68] : memref<1x1028xf32, #tpu.memory_space<vmem>>, vector<1x896xf32>
    %c14 = arith.constant 14 : index
    %c0_78 = arith.constant 0 : index
    %59 = vector.load %arg15[%c14, %c0_78] : memref<25x896xf32, #tpu.memory_space<vmem>>, vector<1x896xf32>
    tpu.vector_store %arg15[%c14, %c0_78], %58 {strides = array<i32>} : memref<25x896xf32, #tpu.memory_space<vmem>>, vector<1x896xf32>,
    %c0_i32_79 = arith.constant 0 : i32
    %c0_i32_80 = arith.constant 0 : i32
    %c0_i32_81 = arith.constant 0 : i32
    %60 = tpu.memref_slice %arg1[%c0_i32_79, %c0_i32_80, %c0_i32_81] : memref<1x1x1028xf32, #tpu.memory_space<vmem>> -> memref<1x1x1028xf32, #tpu.memory_space<vmem>>
    %61 = tpu.memref_squeeze %60 : memref<1x1x1028xf32, #tpu.memory_space<vmem>> -> memref<1x1028xf32, #tpu.memory_space<vmem>>
    %c0_82 = arith.constant 0 : index
    %c96 = arith.constant 96 : index
    %62 = vector.load %61[%c0_82, %c96] : memref<1x1028xf32, #tpu.memory_space<vmem>>, vector<1x896xf32>
    %c15 = arith.constant 15 : index
    %c0_83 = arith.constant 0 : index
    %63 = vector.load %arg15[%c15, %c0_83] : memref<25x896xf32, #tpu.memory_space<vmem>>, vector<1x896xf32>
    tpu.vector_store %arg15[%c15, %c0_83], %62 {strides = array<i32>} : memref<25x896xf32, #tpu.memory_space<vmem>>, vector<1x896xf32>,
    %c0_i32_84 = arith.constant 0 : i32
    %c0_i32_85 = arith.constant 0 : i32
    %c0_i32_86 = arith.constant 0 : i32
    %64 = tpu.memref_slice %arg1[%c0_i32_84, %c0_i32_85, %c0_i32_86] : memref<1x1x1028xf32, #tpu.memory_space<vmem>> -> memref<1x1x1028xf32, #tpu.memory_space<vmem>>
    %65 = tpu.memref_squeeze %64 : memref<1x1x1028xf32, #tpu.memory_space<vmem>> -> memref<1x1028xf32, #tpu.memory_space<vmem>>
    %c0_87 = arith.constant 0 : index
    %c97 = arith.constant 97 : index
    %66 = vector.load %65[%c0_87, %c97] : memref<1x1028xf32, #tpu.memory_space<vmem>>, vector<1x896xf32>
    %c16 = arith.constant 16 : index
    %c0_88 = arith.constant 0 : index
    %67 = vector.load %arg15[%c16, %c0_88] : memref<25x896xf32, #tpu.memory_space<vmem>>, vector<1x896xf32>
    tpu.vector_store %arg15[%c16, %c0_88], %66 {strides = array<i32>} : memref<25x896xf32, #tpu.memory_space<vmem>>, vector<1x896xf32>,
    %c0_i32_89 = arith.constant 0 : i32
    %c0_i32_90 = arith.constant 0 : i32
    %c0_i32_91 = arith.constant 0 : i32
    %68 = tpu.memref_slice %arg1[%c0_i32_89, %c0_i32_90, %c0_i32_91] : memref<1x1x1028xf32, #tpu.memory_space<vmem>> -> memref<1x1x1028xf32, #tpu.memory_space<vmem>>
    %69 = tpu.memref_squeeze %68 : memref<1x1x1028xf32, #tpu.memory_space<vmem>> -> memref<1x1028xf32, #tpu.memory_space<vmem>>
    %c0_92 = arith.constant 0 : index
    %c98 = arith.constant 98 : index
    %70 = vector.load %69[%c0_92, %c98] : memref<1x1028xf32, #tpu.memory_space<vmem>>, vector<1x896xf32>
    %c17 = arith.constant 17 : index
    %c0_93 = arith.constant 0 : index
    %71 = vector.load %arg15[%c17, %c0_93] : memref<25x896xf32, #tpu.memory_space<vmem>>, vector<1x896xf32>
    tpu.vector_store %arg15[%c17, %c0_93], %70 {strides = array<i32>} : memref<25x896xf32, #tpu.memory_space<vmem>>, vector<1x896xf32>,
    %c0_i32_94 = arith.constant 0 : i32
    %c0_i32_95 = arith.constant 0 : i32
    %c0_i32_96 = arith.constant 0 : i32
    %72 = tpu.memref_slice %arg1[%c0_i32_94, %c0_i32_95, %c0_i32_96] : memref<1x1x1028xf32, #tpu.memory_space<vmem>> -> memref<1x1x1028xf32, #tpu.memory_space<vmem>>
    %73 = tpu.memref_squeeze %72 : memref<1x1x1028xf32, #tpu.memory_space<vmem>> -> memref<1x1028xf32, #tpu.memory_space<vmem>>
    %c0_97 = arith.constant 0 : index
    %c99 = arith.constant 99 : index
    %74 = vector.load %73[%c0_97, %c99] : memref<1x1028xf32, #tpu.memory_space<vmem>>, vector<1x896xf32>
    %c18 = arith.constant 18 : index
    %c0_98 = arith.constant 0 : index
    %75 = vector.load %arg15[%c18, %c0_98] : memref<25x896xf32, #tpu.memory_space<vmem>>, vector<1x896xf32>
    tpu.vector_store %arg15[%c18, %c0_98], %74 {strides = array<i32>} : memref<25x896xf32, #tpu.memory_space<vmem>>, vector<1x896xf32>,
    %c0_i32_99 = arith.constant 0 : i32
    %c0_i32_100 = arith.constant 0 : i32
    %c0_i32_101 = arith.constant 0 : i32
    %76 = tpu.memref_slice %arg1[%c0_i32_99, %c0_i32_100, %c0_i32_101] : memref<1x1x1028xf32, #tpu.memory_space<vmem>> -> memref<1x1x1028xf32, #tpu.memory_space<vmem>>
    %77 = tpu.memref_squeeze %76 : memref<1x1x1028xf32, #tpu.memory_space<vmem>> -> memref<1x1028xf32, #tpu.memory_space<vmem>>
    %c0_102 = arith.constant 0 : index
    %c100 = arith.constant 100 : index
    %78 = vector.load %77[%c0_102, %c100] : memref<1x1028xf32, #tpu.memory_space<vmem>>, vector<1x896xf32>
    %c19 = arith.constant 19 : index
    %c0_103 = arith.constant 0 : index
    %79 = vector.load %arg15[%c19, %c0_103] : memref<25x896xf32, #tpu.memory_space<vmem>>, vector<1x896xf32>
    tpu.vector_store %arg15[%c19, %c0_103], %78 {strides = array<i32>} : memref<25x896xf32, #tpu.memory_space<vmem>>, vector<1x896xf32>,
    %c0_i32_104 = arith.constant 0 : i32
    %c0_i32_105 = arith.constant 0 : i32
    %c0_i32_106 = arith.constant 0 : i32
    %80 = tpu.memref_slice %arg1[%c0_i32_104, %c0_i32_105, %c0_i32_106] : memref<1x1x1028xf32, #tpu.memory_space<vmem>> -> memref<1x1x1028xf32, #tpu.memory_space<vmem>>
    %81 = tpu.memref_squeeze %80 : memref<1x1x1028xf32, #tpu.memory_space<vmem>> -> memref<1x1028xf32, #tpu.memory_space<vmem>>
    %c0_107 = arith.constant 0 : index
    %c128 = arith.constant 128 : index
    %82 = vector.load %81[%c0_107, %c128] : memref<1x1028xf32, #tpu.memory_space<vmem>>, vector<1x896xf32>
    %c20 = arith.constant 20 : index
    %c0_108 = arith.constant 0 : index
    %83 = vector.load %arg15[%c20, %c0_108] : memref<25x896xf32, #tpu.memory_space<vmem>>, vector<1x896xf32>
    tpu.vector_store %arg15[%c20, %c0_108], %82 {strides = array<i32>} : memref<25x896xf32, #tpu.memory_space<vmem>>, vector<1x896xf32>,
    %c0_i32_109 = arith.constant 0 : i32
    %c0_i32_110 = arith.constant 0 : i32
    %c0_i32_111 = arith.constant 0 : i32
    %84 = tpu.memref_slice %arg1[%c0_i32_109, %c0_i32_110, %c0_i32_111] : memref<1x1x1028xf32, #tpu.memory_space<vmem>> -> memref<1x1x1028xf32, #tpu.memory_space<vmem>>
    %85 = tpu.memref_squeeze %84 : memref<1x1x1028xf32, #tpu.memory_space<vmem>> -> memref<1x1028xf32, #tpu.memory_space<vmem>>
    %c0_112 = arith.constant 0 : index
    %c129 = arith.constant 129 : index
    %86 = vector.load %85[%c0_112, %c129] : memref<1x1028xf32, #tpu.memory_space<vmem>>, vector<1x896xf32>
    %c21 = arith.constant 21 : index
    %c0_113 = arith.constant 0 : index
    %87 = vector.load %arg15[%c21, %c0_113] : memref<25x896xf32, #tpu.memory_space<vmem>>, vector<1x896xf32>
    tpu.vector_store %arg15[%c21, %c0_113], %86 {strides = array<i32>} : memref<25x896xf32, #tpu.memory_space<vmem>>, vector<1x896xf32>,
    %c0_i32_114 = arith.constant 0 : i32
    %c0_i32_115 = arith.constant 0 : i32
    %c0_i32_116 = arith.constant 0 : i32
    %88 = tpu.memref_slice %arg1[%c0_i32_114, %c0_i32_115, %c0_i32_116] : memref<1x1x1028xf32, #tpu.memory_space<vmem>> -> memref<1x1x1028xf32, #tpu.memory_space<vmem>>
    %89 = tpu.memref_squeeze %88 : memref<1x1x1028xf32, #tpu.memory_space<vmem>> -> memref<1x1028xf32, #tpu.memory_space<vmem>>
    %c0_117 = arith.constant 0 : index
    %c130 = arith.constant 130 : index
    %90 = vector.load %89[%c0_117, %c130] : memref<1x1028xf32, #tpu.memory_space<vmem>>, vector<1x896xf32>
    %c22 = arith.constant 22 : index
    %c0_118 = arith.constant 0 : index
    %91 = vector.load %arg15[%c22, %c0_118] : memref<25x896xf32, #tpu.memory_space<vmem>>, vector<1x896xf32>
    tpu.vector_store %arg15[%c22, %c0_118], %90 {strides = array<i32>} : memref<25x896xf32, #tpu.memory_space<vmem>>, vector<1x896xf32>,
    %c0_i32_119 = arith.constant 0 : i32
    %c0_i32_120 = arith.constant 0 : i32
    %c0_i32_121 = arith.constant 0 : i32
    %92 = tpu.memref_slice %arg1[%c0_i32_119, %c0_i32_120, %c0_i32_121] : memref<1x1x1028xf32, #tpu.memory_space<vmem>> -> memref<1x1x1028xf32, #tpu.memory_space<vmem>>
    %93 = tpu.memref_squeeze %92 : memref<1x1x1028xf32, #tpu.memory_space<vmem>> -> memref<1x1028xf32, #tpu.memory_space<vmem>>
    %c0_122 = arith.constant 0 : index
    %c131 = arith.constant 131 : index
    %94 = vector.load %93[%c0_122, %c131] : memref<1x1028xf32, #tpu.memory_space<vmem>>, vector<1x896xf32>
    %c23 = arith.constant 23 : index
    %c0_123 = arith.constant 0 : index
    %95 = vector.load %arg15[%c23, %c0_123] : memref<25x896xf32, #tpu.memory_space<vmem>>, vector<1x896xf32>
    tpu.vector_store %arg15[%c23, %c0_123], %94 {strides = array<i32>} : memref<25x896xf32, #tpu.memory_space<vmem>>, vector<1x896xf32>,
    %c0_i32_124 = arith.constant 0 : i32
    %c0_i32_125 = arith.constant 0 : i32
    %c0_i32_126 = arith.constant 0 : i32
    %96 = tpu.memref_slice %arg1[%c0_i32_124, %c0_i32_125, %c0_i32_126] : memref<1x1x1028xf32, #tpu.memory_space<vmem>> -> memref<1x1x1028xf32, #tpu.memory_space<vmem>>
    %97 = tpu.memref_squeeze %96 : memref<1x1x1028xf32, #tpu.memory_space<vmem>> -> memref<1x1028xf32, #tpu.memory_space<vmem>>
    %c0_127 = arith.constant 0 : index
    %c132 = arith.constant 132 : index
    %98 = vector.load %97[%c0_127, %c132] : memref<1x1028xf32, #tpu.memory_space<vmem>>, vector<1x896xf32>
    %c24 = arith.constant 24 : index
    %c0_128 = arith.constant 0 : index
    %99 = vector.load %arg15[%c24, %c0_128] : memref<25x896xf32, #tpu.memory_space<vmem>>, vector<1x896xf32>
    tpu.vector_store %arg15[%c24, %c0_128], %98 {strides = array<i32>} : memref<25x896xf32, #tpu.memory_space<vmem>>, vector<1x896xf32>,
    %c0_129 = arith.constant 0 : index
    %c0_130 = arith.constant 0 : index
    %100 = vector.load %arg2[%c0_129, %c0_130] : memref<6x25xf32, #tpu.memory_space<vmem>>, vector<6x25xf32>
    %c0_131 = arith.constant 0 : index
    %c0_132 = arith.constant 0 : index
    %101 = vector.load %arg15[%c0_131, %c0_132] : memref<25x896xf32, #tpu.memory_space<vmem>>, vector<25x896xf32>
    %cst = arith.constant dense<0.000000e+00> : vector<6x896xf32>
    %102 = tpu.matmul %100, %101, %cst {dimension_numbers = #tpu.dot_dimension_numbers<[1], [0], [0], [1], [0, 0, 1, 1], [], []>} : vector<6x25xf32>, vector<25x896xf32>, vector<6x896xf32> -> vector<6x896xf32>
    %c0_133 = arith.constant 0 : index
    %c0_134 = arith.constant 0 : index
    %103 = vector.load %arg3[%c0_133, %c0_134] : memref<6x1xf32, #tpu.memory_space<vmem>>, vector<6x1xf32>
    %104 = vector.broadcast %103 : vector<6x1xf32> to vector<6x896xf32>
    %105 = arith.addf %102, %104 : vector<6x896xf32>
    %106 = math.tanh %105 : vector<6x896xf32>
    %c0_135 = arith.constant 0 : index
    %c0_136 = arith.constant 0 : index
    %107 = vector.load %arg4[%c0_135, %c0_136] : memref<896x200xf32, #tpu.memory_space<vmem>>, vector<896x200xf32>
    %cst_137 = arith.constant dense<0.000000e+00> : vector<6x200xf32>
    %108 = tpu.matmul %106, %107, %cst_137 {dimension_numbers = #tpu.dot_dimension_numbers<[1], [0], [0], [1], [0, 0, 1, 1], [], []>} : vector<6x896xf32>, vector<896x200xf32>, vector<6x200xf32> -> vector<6x200xf32>
    %c0_138 = arith.constant 0 : index
    %c0_139 = arith.constant 0 : index
    %109 = vector.load %arg18[%c0_138, %c0_139] : memref<6x200xf32, #tpu.memory_space<vmem>>, vector<6x200xf32>
    tpu.vector_store %arg18[%c0_138, %c0_139], %108 {strides = array<i32>} : memref<6x200xf32, #tpu.memory_space<vmem>>, vector<6x200xf32>,
    %c0_140 = arith.constant 0 : index
    %c0_141 = arith.constant 0 : index
    %110 = vector.load %arg18[%c0_140, %c0_141] : memref<6x200xf32, #tpu.memory_space<vmem>>, vector<6x140xf32>
    %c0_142 = arith.constant 0 : index
    %c0_143 = arith.constant 0 : index
    %111 = vector.load %arg16[%c0_142, %c0_143] : memref<150x140xf32, #tpu.memory_space<vmem>>, vector<6x140xf32>
    tpu.vector_store %arg16[%c0_142, %c0_143], %110 {strides = array<i32>} : memref<150x140xf32, #tpu.memory_space<vmem>>, vector<6x140xf32>,
    %c0_144 = arith.constant 0 : index
    %c1_145 = arith.constant 1 : index
    %112 = vector.load %arg18[%c0_144, %c1_145] : memref<6x200xf32, #tpu.memory_space<vmem>>, vector<6x140xf32>
    %c6_146 = arith.constant 6 : index
    %c0_147 = arith.constant 0 : index
    %113 = vector.load %arg16[%c6_146, %c0_147] : memref<150x140xf32, #tpu.memory_space<vmem>>, vector<6x140xf32>
    tpu.vector_store %arg16[%c6_146, %c0_147], %112 {strides = array<i32>} : memref<150x140xf32, #tpu.memory_space<vmem>>, vector<6x140xf32>,
    %c0_148 = arith.constant 0 : index
    %c2_149 = arith.constant 2 : index
    %114 = vector.load %arg18[%c0_148, %c2_149] : memref<6x200xf32, #tpu.memory_space<vmem>>, vector<6x140xf32>
    %c12_150 = arith.constant 12 : index
    %c0_151 = arith.constant 0 : index
    %115 = vector.load %arg16[%c12_150, %c0_151] : memref<150x140xf32, #tpu.memory_space<vmem>>, vector<6x140xf32>
    tpu.vector_store %arg16[%c12_150, %c0_151], %114 {strides = array<i32>} : memref<150x140xf32, #tpu.memory_space<vmem>>, vector<6x140xf32>,
    %c0_152 = arith.constant 0 : index
    %c3_153 = arith.constant 3 : index
    %116 = vector.load %arg18[%c0_152, %c3_153] : memref<6x200xf32, #tpu.memory_space<vmem>>, vector<6x140xf32>
    %c18_154 = arith.constant 18 : index
    %c0_155 = arith.constant 0 : index
    %117 = vector.load %arg16[%c18_154, %c0_155] : memref<150x140xf32, #tpu.memory_space<vmem>>, vector<6x140xf32>
    tpu.vector_store %arg16[%c18_154, %c0_155], %116 {strides = array<i32>} : memref<150x140xf32, #tpu.memory_space<vmem>>, vector<6x140xf32>,
    %c0_156 = arith.constant 0 : index
    %c4_157 = arith.constant 4 : index
    %118 = vector.load %arg18[%c0_156, %c4_157] : memref<6x200xf32, #tpu.memory_space<vmem>>, vector<6x140xf32>
    %c24_158 = arith.constant 24 : index
    %c0_159 = arith.constant 0 : index
    %119 = vector.load %arg16[%c24_158, %c0_159] : memref<150x140xf32, #tpu.memory_space<vmem>>, vector<6x140xf32>
    tpu.vector_store %arg16[%c24_158, %c0_159], %118 {strides = array<i32>} : memref<150x140xf32, #tpu.memory_space<vmem>>, vector<6x140xf32>,
    %c0_160 = arith.constant 0 : index
    %c14_161 = arith.constant 14 : index
    %120 = vector.load %arg18[%c0_160, %c14_161] : memref<6x200xf32, #tpu.memory_space<vmem>>, vector<6x140xf32>
    %c30 = arith.constant 30 : index
    %c0_162 = arith.constant 0 : index
    %121 = vector.load %arg16[%c30, %c0_162] : memref<150x140xf32, #tpu.memory_space<vmem>>, vector<6x140xf32>
    tpu.vector_store %arg16[%c30, %c0_162], %120 {strides = array<i32>} : memref<150x140xf32, #tpu.memory_space<vmem>>, vector<6x140xf32>,
    %c0_163 = arith.constant 0 : index
    %c15_164 = arith.constant 15 : index
    %122 = vector.load %arg18[%c0_163, %c15_164] : memref<6x200xf32, #tpu.memory_space<vmem>>, vector<6x140xf32>
    %c36_165 = arith.constant 36 : index
    %c0_166 = arith.constant 0 : index
    %123 = vector.load %arg16[%c36_165, %c0_166] : memref<150x140xf32, #tpu.memory_space<vmem>>, vector<6x140xf32>
    tpu.vector_store %arg16[%c36_165, %c0_166], %122 {strides = array<i32>} : memref<150x140xf32, #tpu.memory_space<vmem>>, vector<6x140xf32>,
    %c0_167 = arith.constant 0 : index
    %c16_168 = arith.constant 16 : index
    %124 = vector.load %arg18[%c0_167, %c16_168] : memref<6x200xf32, #tpu.memory_space<vmem>>, vector<6x140xf32>
    %c42 = arith.constant 42 : index
    %c0_169 = arith.constant 0 : index
    %125 = vector.load %arg16[%c42, %c0_169] : memref<150x140xf32, #tpu.memory_space<vmem>>, vector<6x140xf32>
    tpu.vector_store %arg16[%c42, %c0_169], %124 {strides = array<i32>} : memref<150x140xf32, #tpu.memory_space<vmem>>, vector<6x140xf32>,
    %c0_170 = arith.constant 0 : index
    %c17_171 = arith.constant 17 : index
    %126 = vector.load %arg18[%c0_170, %c17_171] : memref<6x200xf32, #tpu.memory_space<vmem>>, vector<6x140xf32>
    %c48 = arith.constant 48 : index
    %c0_172 = arith.constant 0 : index
    %127 = vector.load %arg16[%c48, %c0_172] : memref<150x140xf32, #tpu.memory_space<vmem>>, vector<6x140xf32>
    tpu.vector_store %arg16[%c48, %c0_172], %126 {strides = array<i32>} : memref<150x140xf32, #tpu.memory_space<vmem>>, vector<6x140xf32>,
    %c0_173 = arith.constant 0 : index
    %c18_174 = arith.constant 18 : index
    %128 = vector.load %arg18[%c0_173, %c18_174] : memref<6x200xf32, #tpu.memory_space<vmem>>, vector<6x140xf32>
    %c54 = arith.constant 54 : index
    %c0_175 = arith.constant 0 : index
    %129 = vector.load %arg16[%c54, %c0_175] : memref<150x140xf32, #tpu.memory_space<vmem>>, vector<6x140xf32>
    tpu.vector_store %arg16[%c54, %c0_175], %128 {strides = array<i32>} : memref<150x140xf32, #tpu.memory_space<vmem>>, vector<6x140xf32>,
    %c0_176 = arith.constant 0 : index
    %c28 = arith.constant 28 : index
    %130 = vector.load %arg18[%c0_176, %c28] : memref<6x200xf32, #tpu.memory_space<vmem>>, vector<6x140xf32>
    %c60 = arith.constant 60 : index
    %c0_177 = arith.constant 0 : index
    %131 = vector.load %arg16[%c60, %c0_177] : memref<150x140xf32, #tpu.memory_space<vmem>>, vector<6x140xf32>
    tpu.vector_store %arg16[%c60, %c0_177], %130 {strides = array<i32>} : memref<150x140xf32, #tpu.memory_space<vmem>>, vector<6x140xf32>,
    %c0_178 = arith.constant 0 : index
    %c29 = arith.constant 29 : index
    %132 = vector.load %arg18[%c0_178, %c29] : memref<6x200xf32, #tpu.memory_space<vmem>>, vector<6x140xf32>
    %c66_179 = arith.constant 66 : index
    %c0_180 = arith.constant 0 : index
    %133 = vector.load %arg16[%c66_179, %c0_180] : memref<150x140xf32, #tpu.memory_space<vmem>>, vector<6x140xf32>
    tpu.vector_store %arg16[%c66_179, %c0_180], %132 {strides = array<i32>} : memref<150x140xf32, #tpu.memory_space<vmem>>, vector<6x140xf32>,
    %c0_181 = arith.constant 0 : index
    %c30_182 = arith.constant 30 : index
    %134 = vector.load %arg18[%c0_181, %c30_182] : memref<6x200xf32, #tpu.memory_space<vmem>>, vector<6x140xf32>
    %c72 = arith.constant 72 : index
    %c0_183 = arith.constant 0 : index
    %135 = vector.load %arg16[%c72, %c0_183] : memref<150x140xf32, #tpu.memory_space<vmem>>, vector<6x140xf32>
    tpu.vector_store %arg16[%c72, %c0_183], %134 {strides = array<i32>} : memref<150x140xf32, #tpu.memory_space<vmem>>, vector<6x140xf32>,
    %c0_184 = arith.constant 0 : index
    %c31 = arith.constant 31 : index
    %136 = vector.load %arg18[%c0_184, %c31] : memref<6x200xf32, #tpu.memory_space<vmem>>, vector<6x140xf32>
    %c78 = arith.constant 78 : index
    %c0_185 = arith.constant 0 : index
    %137 = vector.load %arg16[%c78, %c0_185] : memref<150x140xf32, #tpu.memory_space<vmem>>, vector<6x140xf32>
    tpu.vector_store %arg16[%c78, %c0_185], %136 {strides = array<i32>} : memref<150x140xf32, #tpu.memory_space<vmem>>, vector<6x140xf32>,
    %c0_186 = arith.constant 0 : index
    %c32_187 = arith.constant 32 : index
    %138 = vector.load %arg18[%c0_186, %c32_187] : memref<6x200xf32, #tpu.memory_space<vmem>>, vector<6x140xf32>
    %c84 = arith.constant 84 : index
    %c0_188 = arith.constant 0 : index
    %139 = vector.load %arg16[%c84, %c0_188] : memref<150x140xf32, #tpu.memory_space<vmem>>, vector<6x140xf32>
    tpu.vector_store %arg16[%c84, %c0_188], %138 {strides = array<i32>} : memref<150x140xf32, #tpu.memory_space<vmem>>, vector<6x140xf32>,
    %c0_189 = arith.constant 0 : index
    %c42_190 = arith.constant 42 : index
    %140 = vector.load %arg18[%c0_189, %c42_190] : memref<6x200xf32, #tpu.memory_space<vmem>>, vector<6x140xf32>
    %c90 = arith.constant 90 : index
    %c0_191 = arith.constant 0 : index
    %141 = vector.load %arg16[%c90, %c0_191] : memref<150x140xf32, #tpu.memory_space<vmem>>, vector<6x140xf32>
    tpu.vector_store %arg16[%c90, %c0_191], %140 {strides = array<i32>} : memref<150x140xf32, #tpu.memory_space<vmem>>, vector<6x140xf32>,
    %c0_192 = arith.constant 0 : index
    %c43 = arith.constant 43 : index
    %142 = vector.load %arg18[%c0_192, %c43] : memref<6x200xf32, #tpu.memory_space<vmem>>, vector<6x140xf32>
    %c96_193 = arith.constant 96 : index
    %c0_194 = arith.constant 0 : index
    %143 = vector.load %arg16[%c96_193, %c0_194] : memref<150x140xf32, #tpu.memory_space<vmem>>, vector<6x140xf32>
    tpu.vector_store %arg16[%c96_193, %c0_194], %142 {strides = array<i32>} : memref<150x140xf32, #tpu.memory_space<vmem>>, vector<6x140xf32>,
    %c0_195 = arith.constant 0 : index
    %c44 = arith.constant 44 : index
    %144 = vector.load %arg18[%c0_195, %c44] : memref<6x200xf32, #tpu.memory_space<vmem>>, vector<6x140xf32>
    %c102 = arith.constant 102 : index
    %c0_196 = arith.constant 0 : index
    %145 = vector.load %arg16[%c102, %c0_196] : memref<150x140xf32, #tpu.memory_space<vmem>>, vector<6x140xf32>
    tpu.vector_store %arg16[%c102, %c0_196], %144 {strides = array<i32>} : memref<150x140xf32, #tpu.memory_space<vmem>>, vector<6x140xf32>,
    %c0_197 = arith.constant 0 : index
    %c45 = arith.constant 45 : index
    %146 = vector.load %arg18[%c0_197, %c45] : memref<6x200xf32, #tpu.memory_space<vmem>>, vector<6x140xf32>
    %c108 = arith.constant 108 : index
    %c0_198 = arith.constant 0 : index
    %147 = vector.load %arg16[%c108, %c0_198] : memref<150x140xf32, #tpu.memory_space<vmem>>, vector<6x140xf32>
    tpu.vector_store %arg16[%c108, %c0_198], %146 {strides = array<i32>} : memref<150x140xf32, #tpu.memory_space<vmem>>, vector<6x140xf32>,
    %c0_199 = arith.constant 0 : index
    %c46 = arith.constant 46 : index
    %148 = vector.load %arg18[%c0_199, %c46] : memref<6x200xf32, #tpu.memory_space<vmem>>, vector<6x140xf32>
    %c114 = arith.constant 114 : index
    %c0_200 = arith.constant 0 : index
    %149 = vector.load %arg16[%c114, %c0_200] : memref<150x140xf32, #tpu.memory_space<vmem>>, vector<6x140xf32>
    tpu.vector_store %arg16[%c114, %c0_200], %148 {strides = array<i32>} : memref<150x140xf32, #tpu.memory_space<vmem>>, vector<6x140xf32>,
    %c0_201 = arith.constant 0 : index
    %c56 = arith.constant 56 : index
    %150 = vector.load %arg18[%c0_201, %c56] : memref<6x200xf32, #tpu.memory_space<vmem>>, vector<6x140xf32>
    %c120 = arith.constant 120 : index
    %c0_202 = arith.constant 0 : index
    %151 = vector.load %arg16[%c120, %c0_202] : memref<150x140xf32, #tpu.memory_space<vmem>>, vector<6x140xf32>
    tpu.vector_store %arg16[%c120, %c0_202], %150 {strides = array<i32>} : memref<150x140xf32, #tpu.memory_space<vmem>>, vector<6x140xf32>,
    %c0_203 = arith.constant 0 : index
    %c57 = arith.constant 57 : index
    %152 = vector.load %arg18[%c0_203, %c57] : memref<6x200xf32, #tpu.memory_space<vmem>>, vector<6x140xf32>
    %c126 = arith.constant 126 : index
    %c0_204 = arith.constant 0 : index
    %153 = vector.load %arg16[%c126, %c0_204] : memref<150x140xf32, #tpu.memory_space<vmem>>, vector<6x140xf32>
    tpu.vector_store %arg16[%c126, %c0_204], %152 {strides = array<i32>} : memref<150x140xf32, #tpu.memory_space<vmem>>, vector<6x140xf32>,
    %c0_205 = arith.constant 0 : index
    %c58 = arith.constant 58 : index
    %154 = vector.load %arg18[%c0_205, %c58] : memref<6x200xf32, #tpu.memory_space<vmem>>, vector<6x140xf32>
    %c132_206 = arith.constant 132 : index
    %c0_207 = arith.constant 0 : index
    %155 = vector.load %arg16[%c132_206, %c0_207] : memref<150x140xf32, #tpu.memory_space<vmem>>, vector<6x140xf32>
    tpu.vector_store %arg16[%c132_206, %c0_207], %154 {strides = array<i32>} : memref<150x140xf32, #tpu.memory_space<vmem>>, vector<6x140xf32>,
    %c0_208 = arith.constant 0 : index
    %c59 = arith.constant 59 : index
    %156 = vector.load %arg18[%c0_208, %c59] : memref<6x200xf32, #tpu.memory_space<vmem>>, vector<6x140xf32>
    %c138 = arith.constant 138 : index
    %c0_209 = arith.constant 0 : index
    %157 = vector.load %arg16[%c138, %c0_209] : memref<150x140xf32, #tpu.memory_space<vmem>>, vector<6x140xf32>
    tpu.vector_store %arg16[%c138, %c0_209], %156 {strides = array<i32>} : memref<150x140xf32, #tpu.memory_space<vmem>>, vector<6x140xf32>,
    %c0_210 = arith.constant 0 : index
    %c60_211 = arith.constant 60 : index
    %158 = vector.load %arg18[%c0_210, %c60_211] : memref<6x200xf32, #tpu.memory_space<vmem>>, vector<6x140xf32>
    %c144 = arith.constant 144 : index
    %c0_212 = arith.constant 0 : index
    %159 = vector.load %arg16[%c144, %c0_212] : memref<150x140xf32, #tpu.memory_space<vmem>>, vector<6x140xf32>
    tpu.vector_store %arg16[%c144, %c0_212], %158 {strides = array<i32>} : memref<150x140xf32, #tpu.memory_space<vmem>>, vector<6x140xf32>,
    %c0_213 = arith.constant 0 : index
    %c0_214 = arith.constant 0 : index
    %160 = vector.load %arg5[%c0_213, %c0_214] : memref<16x150xf32, #tpu.memory_space<vmem>>, vector<16x150xf32>
    %c0_215 = arith.constant 0 : index
    %c0_216 = arith.constant 0 : index
    %161 = vector.load %arg16[%c0_215, %c0_216] : memref<150x140xf32, #tpu.memory_space<vmem>>, vector<150x140xf32>
    %cst_217 = arith.constant dense<0.000000e+00> : vector<16x140xf32>
    %162 = tpu.matmul %160, %161, %cst_217 {dimension_numbers = #tpu.dot_dimension_numbers<[1], [0], [0], [1], [0, 0, 1, 1], [], []>} : vector<16x150xf32>, vector<150x140xf32>, vector<16x140xf32> -> vector<16x140xf32>
    %c0_218 = arith.constant 0 : index
    %c0_219 = arith.constant 0 : index
    %163 = vector.load %arg6[%c0_218, %c0_219] : memref<16x1xf32, #tpu.memory_space<vmem>>, vector<16x1xf32>
    %164 = vector.broadcast %163 : vector<16x1xf32> to vector<16x140xf32>
    %165 = arith.addf %162, %164 : vector<16x140xf32>
    %166 = math.tanh %165 : vector<16x140xf32>
    %c0_220 = arith.constant 0 : index
    %c0_221 = arith.constant 0 : index
    %167 = vector.load %arg7[%c0_220, %c0_221] : memref<140x29xf32, #tpu.memory_space<vmem>>, vector<140x29xf32>
    %cst_222 = arith.constant dense<0.000000e+00> : vector<16x29xf32>
    %168 = tpu.matmul %166, %167, %cst_222 {dimension_numbers = #tpu.dot_dimension_numbers<[1], [0], [0], [1], [0, 0, 1, 1], [], []>} : vector<16x140xf32>, vector<140x29xf32>, vector<16x29xf32> -> vector<16x29xf32>
    %c0_223 = arith.constant 0 : index
    %c0_224 = arith.constant 0 : index
    %169 = vector.load %arg19[%c0_223, %c0_224] : memref<16x29xf32, #tpu.memory_space<vmem>>, vector<16x29xf32>
    tpu.vector_store %arg19[%c0_223, %c0_224], %168 {strides = array<i32>} : memref<16x29xf32, #tpu.memory_space<vmem>>, vector<16x29xf32>,
    %c0_225 = arith.constant 0 : index
    %c0_226 = arith.constant 0 : index
    %170 = vector.load %arg19[%c0_225, %c0_226] : memref<16x29xf32, #tpu.memory_space<vmem>>, vector<16x5xf32>
    %c0_227 = arith.constant 0 : index
    %c0_228 = arith.constant 0 : index
    %171 = vector.load %arg17[%c0_227, %c0_228] : memref<400x5xf32, #tpu.memory_space<vmem>>, vector<16x5xf32>
    tpu.vector_store %arg17[%c0_227, %c0_228], %170 {strides = array<i32>} : memref<400x5xf32, #tpu.memory_space<vmem>>, vector<16x5xf32>,
    %c0_229 = arith.constant 0 : index
    %c1_230 = arith.constant 1 : index
    %172 = vector.load %arg19[%c0_229, %c1_230] : memref<16x29xf32, #tpu.memory_space<vmem>>, vector<16x5xf32>
    %c16_231 = arith.constant 16 : index
    %c0_232 = arith.constant 0 : index
    %173 = vector.load %arg17[%c16_231, %c0_232] : memref<400x5xf32, #tpu.memory_space<vmem>>, vector<16x5xf32>
    tpu.vector_store %arg17[%c16_231, %c0_232], %172 {strides = array<i32>} : memref<400x5xf32, #tpu.memory_space<vmem>>, vector<16x5xf32>,
    %c0_233 = arith.constant 0 : index
    %c2_234 = arith.constant 2 : index
    %174 = vector.load %arg19[%c0_233, %c2_234] : memref<16x29xf32, #tpu.memory_space<vmem>>, vector<16x5xf32>
    %c32_235 = arith.constant 32 : index
    %c0_236 = arith.constant 0 : index
    %175 = vector.load %arg17[%c32_235, %c0_236] : memref<400x5xf32, #tpu.memory_space<vmem>>, vector<16x5xf32>
    tpu.vector_store %arg17[%c32_235, %c0_236], %174 {strides = array<i32>} : memref<400x5xf32, #tpu.memory_space<vmem>>, vector<16x5xf32>,
    %c0_237 = arith.constant 0 : index
    %c3_238 = arith.constant 3 : index
    %176 = vector.load %arg19[%c0_237, %c3_238] : memref<16x29xf32, #tpu.memory_space<vmem>>, vector<16x5xf32>
    %c48_239 = arith.constant 48 : index
    %c0_240 = arith.constant 0 : index
    %177 = vector.load %arg17[%c48_239, %c0_240] : memref<400x5xf32, #tpu.memory_space<vmem>>, vector<16x5xf32>
    tpu.vector_store %arg17[%c48_239, %c0_240], %176 {strides = array<i32>} : memref<400x5xf32, #tpu.memory_space<vmem>>, vector<16x5xf32>,
    %c0_241 = arith.constant 0 : index
    %c4_242 = arith.constant 4 : index
    %178 = vector.load %arg19[%c0_241, %c4_242] : memref<16x29xf32, #tpu.memory_space<vmem>>, vector<16x5xf32>
    %c64_243 = arith.constant 64 : index
    %c0_244 = arith.constant 0 : index
    %179 = vector.load %arg17[%c64_243, %c0_244] : memref<400x5xf32, #tpu.memory_space<vmem>>, vector<16x5xf32>
    tpu.vector_store %arg17[%c64_243, %c0_244], %178 {strides = array<i32>} : memref<400x5xf32, #tpu.memory_space<vmem>>, vector<16x5xf32>,
    %c0_245 = arith.constant 0 : index
    %c5_246 = arith.constant 5 : index
    %180 = vector.load %arg19[%c0_245, %c5_246] : memref<16x29xf32, #tpu.memory_space<vmem>>, vector<16x5xf32>
    %c80 = arith.constant 80 : index
    %c0_247 = arith.constant 0 : index
    %181 = vector.load %arg17[%c80, %c0_247] : memref<400x5xf32, #tpu.memory_space<vmem>>, vector<16x5xf32>
    tpu.vector_store %arg17[%c80, %c0_247], %180 {strides = array<i32>} : memref<400x5xf32, #tpu.memory_space<vmem>>, vector<16x5xf32>,
    %c0_248 = arith.constant 0 : index
    %c6_249 = arith.constant 6 : index
    %182 = vector.load %arg19[%c0_248, %c6_249] : memref<16x29xf32, #tpu.memory_space<vmem>>, vector<16x5xf32>
    %c96_250 = arith.constant 96 : index
    %c0_251 = arith.constant 0 : index
    %183 = vector.load %arg17[%c96_250, %c0_251] : memref<400x5xf32, #tpu.memory_space<vmem>>, vector<16x5xf32>
    tpu.vector_store %arg17[%c96_250, %c0_251], %182 {strides = array<i32>} : memref<400x5xf32, #tpu.memory_space<vmem>>, vector<16x5xf32>,
    %c0_252 = arith.constant 0 : index
    %c7_253 = arith.constant 7 : index
    %184 = vector.load %arg19[%c0_252, %c7_253] : memref<16x29xf32, #tpu.memory_space<vmem>>, vector<16x5xf32>
    %c112 = arith.constant 112 : index
    %c0_254 = arith.constant 0 : index
    %185 = vector.load %arg17[%c112, %c0_254] : memref<400x5xf32, #tpu.memory_space<vmem>>, vector<16x5xf32>
    tpu.vector_store %arg17[%c112, %c0_254], %184 {strides = array<i32>} : memref<400x5xf32, #tpu.memory_space<vmem>>, vector<16x5xf32>,
    %c0_255 = arith.constant 0 : index
    %c8_256 = arith.constant 8 : index
    %186 = vector.load %arg19[%c0_255, %c8_256] : memref<16x29xf32, #tpu.memory_space<vmem>>, vector<16x5xf32>
    %c128_257 = arith.constant 128 : index
    %c0_258 = arith.constant 0 : index
    %187 = vector.load %arg17[%c128_257, %c0_258] : memref<400x5xf32, #tpu.memory_space<vmem>>, vector<16x5xf32>
    tpu.vector_store %arg17[%c128_257, %c0_258], %186 {strides = array<i32>} : memref<400x5xf32, #tpu.memory_space<vmem>>, vector<16x5xf32>,
    %c0_259 = arith.constant 0 : index
    %c9_260 = arith.constant 9 : index
    %188 = vector.load %arg19[%c0_259, %c9_260] : memref<16x29xf32, #tpu.memory_space<vmem>>, vector<16x5xf32>
    %c144_261 = arith.constant 144 : index
    %c0_262 = arith.constant 0 : index
    %189 = vector.load %arg17[%c144_261, %c0_262] : memref<400x5xf32, #tpu.memory_space<vmem>>, vector<16x5xf32>
    tpu.vector_store %arg17[%c144_261, %c0_262], %188 {strides = array<i32>} : memref<400x5xf32, #tpu.memory_space<vmem>>, vector<16x5xf32>,
    %c0_263 = arith.constant 0 : index
    %c10_264 = arith.constant 10 : index
    %190 = vector.load %arg19[%c0_263, %c10_264] : memref<16x29xf32, #tpu.memory_space<vmem>>, vector<16x5xf32>
    %c160 = arith.constant 160 : index
    %c0_265 = arith.constant 0 : index
    %191 = vector.load %arg17[%c160, %c0_265] : memref<400x5xf32, #tpu.memory_space<vmem>>, vector<16x5xf32>
    tpu.vector_store %arg17[%c160, %c0_265], %190 {strides = array<i32>} : memref<400x5xf32, #tpu.memory_space<vmem>>, vector<16x5xf32>,
    %c0_266 = arith.constant 0 : index
    %c11_267 = arith.constant 11 : index
    %192 = vector.load %arg19[%c0_266, %c11_267] : memref<16x29xf32, #tpu.memory_space<vmem>>, vector<16x5xf32>
    %c176 = arith.constant 176 : index
    %c0_268 = arith.constant 0 : index
    %193 = vector.load %arg17[%c176, %c0_268] : memref<400x5xf32, #tpu.memory_space<vmem>>, vector<16x5xf32>
    tpu.vector_store %arg17[%c176, %c0_268], %192 {strides = array<i32>} : memref<400x5xf32, #tpu.memory_space<vmem>>, vector<16x5xf32>,
    %c0_269 = arith.constant 0 : index
    %c12_270 = arith.constant 12 : index
    %194 = vector.load %arg19[%c0_269, %c12_270] : memref<16x29xf32, #tpu.memory_space<vmem>>, vector<16x5xf32>
    %c192 = arith.constant 192 : index
    %c0_271 = arith.constant 0 : index
    %195 = vector.load %arg17[%c192, %c0_271] : memref<400x5xf32, #tpu.memory_space<vmem>>, vector<16x5xf32>
    tpu.vector_store %arg17[%c192, %c0_271], %194 {strides = array<i32>} : memref<400x5xf32, #tpu.memory_space<vmem>>, vector<16x5xf32>,
    %c0_272 = arith.constant 0 : index
    %c13_273 = arith.constant 13 : index
    %196 = vector.load %arg19[%c0_272, %c13_273] : memref<16x29xf32, #tpu.memory_space<vmem>>, vector<16x5xf32>
    %c208 = arith.constant 208 : index
    %c0_274 = arith.constant 0 : index
    %197 = vector.load %arg17[%c208, %c0_274] : memref<400x5xf32, #tpu.memory_space<vmem>>, vector<16x5xf32>
    tpu.vector_store %arg17[%c208, %c0_274], %196 {strides = array<i32>} : memref<400x5xf32, #tpu.memory_space<vmem>>, vector<16x5xf32>,
    %c0_275 = arith.constant 0 : index
    %c14_276 = arith.constant 14 : index
    %198 = vector.load %arg19[%c0_275, %c14_276] : memref<16x29xf32, #tpu.memory_space<vmem>>, vector<16x5xf32>
    %c224 = arith.constant 224 : index
    %c0_277 = arith.constant 0 : index
    %199 = vector.load %arg17[%c224, %c0_277] : memref<400x5xf32, #tpu.memory_space<vmem>>, vector<16x5xf32>
    tpu.vector_store %arg17[%c224, %c0_277], %198 {strides = array<i32>} : memref<400x5xf32, #tpu.memory_space<vmem>>, vector<16x5xf32>,
    %c0_278 = arith.constant 0 : index
    %c15_279 = arith.constant 15 : index
    %200 = vector.load %arg19[%c0_278, %c15_279] : memref<16x29xf32, #tpu.memory_space<vmem>>, vector<16x5xf32>
    %c240 = arith.constant 240 : index
    %c0_280 = arith.constant 0 : index
    %201 = vector.load %arg17[%c240, %c0_280] : memref<400x5xf32, #tpu.memory_space<vmem>>, vector<16x5xf32>
    tpu.vector_store %arg17[%c240, %c0_280], %200 {strides = array<i32>} : memref<400x5xf32, #tpu.memory_space<vmem>>, vector<16x5xf32>,
    %c0_281 = arith.constant 0 : index
    %c16_282 = arith.constant 16 : index
    %202 = vector.load %arg19[%c0_281, %c16_282] : memref<16x29xf32, #tpu.memory_space<vmem>>, vector<16x5xf32>
    %c256 = arith.constant 256 : index
    %c0_283 = arith.constant 0 : index
    %203 = vector.load %arg17[%c256, %c0_283] : memref<400x5xf32, #tpu.memory_space<vmem>>, vector<16x5xf32>
    tpu.vector_store %arg17[%c256, %c0_283], %202 {strides = array<i32>} : memref<400x5xf32, #tpu.memory_space<vmem>>, vector<16x5xf32>,
    %c0_284 = arith.constant 0 : index
    %c17_285 = arith.constant 17 : index
    %204 = vector.load %arg19[%c0_284, %c17_285] : memref<16x29xf32, #tpu.memory_space<vmem>>, vector<16x5xf32>
    %c272 = arith.constant 272 : index
    %c0_286 = arith.constant 0 : index
    %205 = vector.load %arg17[%c272, %c0_286] : memref<400x5xf32, #tpu.memory_space<vmem>>, vector<16x5xf32>
    tpu.vector_store %arg17[%c272, %c0_286], %204 {strides = array<i32>} : memref<400x5xf32, #tpu.memory_space<vmem>>, vector<16x5xf32>,
    %c0_287 = arith.constant 0 : index
    %c18_288 = arith.constant 18 : index
    %206 = vector.load %arg19[%c0_287, %c18_288] : memref<16x29xf32, #tpu.memory_space<vmem>>, vector<16x5xf32>
    %c288 = arith.constant 288 : index
    %c0_289 = arith.constant 0 : index
    %207 = vector.load %arg17[%c288, %c0_289] : memref<400x5xf32, #tpu.memory_space<vmem>>, vector<16x5xf32>
    tpu.vector_store %arg17[%c288, %c0_289], %206 {strides = array<i32>} : memref<400x5xf32, #tpu.memory_space<vmem>>, vector<16x5xf32>,
    %c0_290 = arith.constant 0 : index
    %c19_291 = arith.constant 19 : index
    %208 = vector.load %arg19[%c0_290, %c19_291] : memref<16x29xf32, #tpu.memory_space<vmem>>, vector<16x5xf32>
    %c304 = arith.constant 304 : index
    %c0_292 = arith.constant 0 : index
    %209 = vector.load %arg17[%c304, %c0_292] : memref<400x5xf32, #tpu.memory_space<vmem>>, vector<16x5xf32>
    tpu.vector_store %arg17[%c304, %c0_292], %208 {strides = array<i32>} : memref<400x5xf32, #tpu.memory_space<vmem>>, vector<16x5xf32>,
    %c0_293 = arith.constant 0 : index
    %c20_294 = arith.constant 20 : index
    %210 = vector.load %arg19[%c0_293, %c20_294] : memref<16x29xf32, #tpu.memory_space<vmem>>, vector<16x5xf32>
    %c320 = arith.constant 320 : index
    %c0_295 = arith.constant 0 : index
    %211 = vector.load %arg17[%c320, %c0_295] : memref<400x5xf32, #tpu.memory_space<vmem>>, vector<16x5xf32>
    tpu.vector_store %arg17[%c320, %c0_295], %210 {strides = array<i32>} : memref<400x5xf32, #tpu.memory_space<vmem>>, vector<16x5xf32>,
    %c0_296 = arith.constant 0 : index
    %c21_297 = arith.constant 21 : index
    %212 = vector.load %arg19[%c0_296, %c21_297] : memref<16x29xf32, #tpu.memory_space<vmem>>, vector<16x5xf32>
    %c336 = arith.constant 336 : index
    %c0_298 = arith.constant 0 : index
    %213 = vector.load %arg17[%c336, %c0_298] : memref<400x5xf32, #tpu.memory_space<vmem>>, vector<16x5xf32>
    tpu.vector_store %arg17[%c336, %c0_298], %212 {strides = array<i32>} : memref<400x5xf32, #tpu.memory_space<vmem>>, vector<16x5xf32>,
    %c0_299 = arith.constant 0 : index
    %c22_300 = arith.constant 22 : index
    %214 = vector.load %arg19[%c0_299, %c22_300] : memref<16x29xf32, #tpu.memory_space<vmem>>, vector<16x5xf32>
    %c352 = arith.constant 352 : index
    %c0_301 = arith.constant 0 : index
    %215 = vector.load %arg17[%c352, %c0_301] : memref<400x5xf32, #tpu.memory_space<vmem>>, vector<16x5xf32>
    tpu.vector_store %arg17[%c352, %c0_301], %214 {strides = array<i32>} : memref<400x5xf32, #tpu.memory_space<vmem>>, vector<16x5xf32>,
    %c0_302 = arith.constant 0 : index
    %c23_303 = arith.constant 23 : index
    %216 = vector.load %arg19[%c0_302, %c23_303] : memref<16x29xf32, #tpu.memory_space<vmem>>, vector<16x5xf32>
    %c368 = arith.constant 368 : index
    %c0_304 = arith.constant 0 : index
    %217 = vector.load %arg17[%c368, %c0_304] : memref<400x5xf32, #tpu.memory_space<vmem>>, vector<16x5xf32>
    tpu.vector_store %arg17[%c368, %c0_304], %216 {strides = array<i32>} : memref<400x5xf32, #tpu.memory_space<vmem>>, vector<16x5xf32>,
    %c0_305 = arith.constant 0 : index
    %c24_306 = arith.constant 24 : index
    %218 = vector.load %arg19[%c0_305, %c24_306] : memref<16x29xf32, #tpu.memory_space<vmem>>, vector<16x5xf32>
    %c384 = arith.constant 384 : index
    %c0_307 = arith.constant 0 : index
    %219 = vector.load %arg17[%c384, %c0_307] : memref<400x5xf32, #tpu.memory_space<vmem>>, vector<16x5xf32>
    tpu.vector_store %arg17[%c384, %c0_307], %218 {strides = array<i32>} : memref<400x5xf32, #tpu.memory_space<vmem>>, vector<16x5xf32>,
    %c0_308 = arith.constant 0 : index
    %c0_309 = arith.constant 0 : index
    %220 = vector.load %arg8[%c0_308, %c0_309] : memref<120x400xf32, #tpu.memory_space<vmem>>, vector<120x400xf32>
    %c0_310 = arith.constant 0 : index
    %c0_311 = arith.constant 0 : index
    %221 = vector.load %arg17[%c0_310, %c0_311] : memref<400x5xf32, #tpu.memory_space<vmem>>, vector<400x5xf32>
    %cst_312 = arith.constant dense<0.000000e+00> : vector<120x5xf32>
    %222 = tpu.matmul %220, %221, %cst_312 {dimension_numbers = #tpu.dot_dimension_numbers<[1], [0], [0], [1], [0, 0, 1, 1], [], []>} : vector<120x400xf32>, vector<400x5xf32>, vector<120x5xf32> -> vector<120x5xf32>
    %c0_313 = arith.constant 0 : index
    %c0_314 = arith.constant 0 : index
    %223 = vector.load %arg9[%c0_313, %c0_314] : memref<120x1xf32, #tpu.memory_space<vmem>>, vector<120x1xf32>
    %224 = vector.broadcast %223 : vector<120x1xf32> to vector<120x5xf32>
    %225 = arith.addf %222, %224 : vector<120x5xf32>
    %226 = math.tanh %225 : vector<120x5xf32>
    %c0_315 = arith.constant 0 : index
    %c0_316 = arith.constant 0 : index
    %227 = vector.load %arg10[%c0_315, %c0_316] : memref<84x120xf32, #tpu.memory_space<vmem>>, vector<84x120xf32>
    %cst_317 = arith.constant dense<0.000000e+00> : vector<84x5xf32>
    %228 = tpu.matmul %227, %226, %cst_317 {dimension_numbers = #tpu.dot_dimension_numbers<[1], [0], [0], [1], [0, 0, 1, 1], [], []>} : vector<84x120xf32>, vector<120x5xf32>, vector<84x5xf32> -> vector<84x5xf32>
    %c0_318 = arith.constant 0 : index
    %c0_319 = arith.constant 0 : index
    %229 = vector.load %arg11[%c0_318, %c0_319] : memref<84x1xf32, #tpu.memory_space<vmem>>, vector<84x1xf32>
    %230 = vector.broadcast %229 : vector<84x1xf32> to vector<84x5xf32>
    %231 = arith.addf %228, %230 : vector<84x5xf32>
    %232 = math.tanh %231 : vector<84x5xf32>
    %c0_320 = arith.constant 0 : index
    %c0_321 = arith.constant 0 : index
    %233 = vector.load %arg12[%c0_320, %c0_321] : memref<10x84xf32, #tpu.memory_space<vmem>>, vector<10x84xf32>
    %cst_322 = arith.constant dense<0.000000e+00> : vector<10x5xf32>
    %234 = tpu.matmul %233, %232, %cst_322 {dimension_numbers = #tpu.dot_dimension_numbers<[1], [0], [0], [1], [0, 0, 1, 1], [], []>} : vector<10x84xf32>, vector<84x5xf32>, vector<10x5xf32> -> vector<10x5xf32>
    %c0_323 = arith.constant 0 : index
    %c0_324 = arith.constant 0 : index
    %235 = vector.load %arg13[%c0_323, %c0_324] : memref<10x1xf32, #tpu.memory_space<vmem>>, vector<10x1xf32>
    %236 = vector.broadcast %235 : vector<10x1xf32> to vector<10x5xf32>
    %237 = arith.addf %234, %236 : vector<10x5xf32>
    %238 = vector.extract_strided_slice %237 {offsets = [0, 0], sizes = [10, 1], strides = [1, 1]} : vector<10x5xf32> to vector<10x1xf32>
    %c0_325 = arith.constant 0 : index
    %c0_326 = arith.constant 0 : index
    %c0_327 = arith.constant 0 : index
    %239 = vector.load %arg14[%c0_325, %c0_326, %c0_327] : memref<1x10x1xf32, #tpu.memory_space<vmem>>, vector<1x10x1xf32>
    %240 = vector.shape_cast %239 : vector<1x10x1xf32> to vector<10x1xf32>
    %241 = vector.shape_cast %238 : vector<10x1xf32> to vector<1x10x1xf32>
    tpu.vector_store %arg14[%c0_325, %c0_326, %c0_327], %241 {strides = array<i32>} : memref<1x10x1xf32, #tpu.memory_space<vmem>>, vector<1x10x1xf32>,
    return
  }
  func.func @transform_0(%arg0: i32) -> (i32, i32, i32) {
    %c0_i32 = arith.constant 0 : i32
    %c0_i32_0 = arith.constant 0 : i32
    %c0_i32_1 = arith.constant 0 : i32
    return %arg0, %c0_i32, %c0_i32_0 : i32, i32, i32
  }
  func.func @transform_1(%arg0: i32) -> (i32, i32) {
    %c0_i32 = arith.constant 0 : i32
    %c0_i32_0 = arith.constant 0 : i32
    %c0_i32_1 = arith.constant 0 : i32
    return %c0_i32, %c0_i32_0 : i32, i32
  }
  func.func @transform_2(%arg0: i32) -> (i32, i32) {
    %c0_i32 = arith.constant 0 : i32
    %c0_i32_0 = arith.constant 0 : i32
    %c0_i32_1 = arith.constant 0 : i32
    return %c0_i32, %c0_i32_0 : i32, i32
  }
  func.func @transform_3(%arg0: i32) -> (i32, i32) {
    %c0_i32 = arith.constant 0 : i32
    %c0_i32_0 = arith.constant 0 : i32
    %c0_i32_1 = arith.constant 0 : i32
    return %c0_i32, %c0_i32_0 : i32, i32
  }
  func.func @transform_4(%arg0: i32) -> (i32, i32) {
    %c0_i32 = arith.constant 0 : i32
    %c0_i32_0 = arith.constant 0 : i32
    %c0_i32_1 = arith.constant 0 : i32
    return %c0_i32, %c0_i32_0 : i32, i32
  }
  func.func @transform_5(%arg0: i32) -> (i32, i32) {
    %c0_i32 = arith.constant 0 : i32
    %c0_i32_0 = arith.constant 0 : i32
    %c0_i32_1 = arith.constant 0 : i32
    return %c0_i32, %c0_i32_0 : i32, i32
  }
  func.func @transform_6(%arg0: i32) -> (i32, i32) {
    %c0_i32 = arith.constant 0 : i32
    %c0_i32_0 = arith.constant 0 : i32
    %c0_i32_1 = arith.constant 0 : i32
    return %c0_i32, %c0_i32_0 : i32, i32
  }
  func.func @transform_7(%arg0: i32) -> (i32, i32) {
    %c0_i32 = arith.constant 0 : i32
    %c0_i32_0 = arith.constant 0 : i32
    %c0_i32_1 = arith.constant 0 : i32
    return %c0_i32, %c0_i32_0 : i32, i32
  }
  func.func @transform_8(%arg0: i32) -> (i32, i32) {
    %c0_i32 = arith.constant 0 : i32
    %c0_i32_0 = arith.constant 0 : i32
    %c0_i32_1 = arith.constant 0 : i32
    return %c0_i32, %c0_i32_0 : i32, i32
  }
  func.func @transform_9(%arg0: i32) -> (i32, i32) {
    %c0_i32 = arith.constant 0 : i32
    %c0_i32_0 = arith.constant 0 : i32
    %c0_i32_1 = arith.constant 0 : i32
    return %c0_i32, %c0_i32_0 : i32, i32
  }
  func.func @transform_10(%arg0: i32) -> (i32, i32) {
    %c0_i32 = arith.constant 0 : i32
    %c0_i32_0 = arith.constant 0 : i32
    %c0_i32_1 = arith.constant 0 : i32
    return %c0_i32, %c0_i32_0 : i32, i32
  }
  func.func @transform_11(%arg0: i32) -> (i32, i32) {
    %c0_i32 = arith.constant 0 : i32
    %c0_i32_0 = arith.constant 0 : i32
    %c0_i32_1 = arith.constant 0 : i32
    return %c0_i32, %c0_i32_0 : i32, i32
  }
  func.func @transform_12(%arg0: i32) -> (i32, i32) {
    %c0_i32 = arith.constant 0 : i32
    %c0_i32_0 = arith.constant 0 : i32
    %c0_i32_1 = arith.constant 0 : i32
    return %c0_i32, %c0_i32_0 : i32, i32
  }
  func.func @transform_13(%arg0: i32) -> (i32, i32, i32) {
    %c0_i32 = arith.constant 0 : i32
    %c0_i32_0 = arith.constant 0 : i32
    %c0_i32_1 = arith.constant 0 : i32
    return %arg0, %c0_i32, %c0_i32_0 : i32, i32, i32
  }
}

</mosaic_0001>

<llo_original>
// kernel: lenet5_forward.1
$region0: #{lenet5_forward.1}
  #allocation0 [shape = 'u32[]', space=smem, size = 0x4, offset = 0x4, fixed_abs, tag = 'smem constant byte address 0x4 - core index']
  #allocation1 [shape = 'u32[144,128]{1,0:T(1,128)}', space=vmem, size = 0x12000, scoped, tag = 'internal scratch']
  #allocation2 [shape = 'f32[25,896]{1,0:T(8,128)}', space=vmem, size = 0x1c000, scoped, tag = 'scratch operand']
  #allocation3 [shape = 'f32[150,140]{1,0:T(8,128)}', space=vmem, size = 0x26000, scoped, tag = 'scratch operand']
  #allocation4 [shape = 'f32[400,5]{1,0:T(8,128)}', space=vmem, size = 0x32000, scoped, tag = 'scratch operand']
  #allocation5 [shape = 'f32[6,200]{1,0:T(8,128)}', space=vmem, size = 0x2000, scoped, tag = 'scratch operand']
  #allocation6 [shape = 'f32[16,29]{1,0:T(8,128)}', space=vmem, size = 0x2000, scoped, tag = 'scratch operand']
  %s0 = inlined_call_operand.vmem [shape: f32[2,1,1028], index: 0, kind: input, shape index: {}]
  %s1 = inlined_call_operand.vmem [shape: f32[6,25], index: 1, kind: input, shape index: {}]
  %s2 = inlined_call_operand.vmem [shape: f32[6,1], index: 2, kind: input, shape index: {}]
  %s3 = inlined_call_operand.vmem [shape: f32[896,200], index: 3, kind: input, shape index: {}]
  %s4 = inlined_call_operand.vmem [shape: f32[16,150], index: 4, kind: input, shape index: {}]
  %s5 = inlined_call_operand.vmem [shape: f32[16,1], index: 5, kind: input, shape index: {}]
  %s6 = inlined_call_operand.vmem [shape: f32[140,29], index: 6, kind: input, shape index: {}]
  %s7 = inlined_call_operand.vmem [shape: f32[120,400], index: 7, kind: input, shape index: {}]
  %s8 = inlined_call_operand.vmem [shape: f32[120,1], index: 8, kind: input, shape index: {}]
  %s9 = inlined_call_operand.vmem [shape: f32[84,120], index: 9, kind: input, shape index: {}]
  %s10 = inlined_call_operand.vmem [shape: f32[84,1], index: 10, kind: input, shape index: {}]
  %s11 = inlined_call_operand.vmem [shape: f32[10,84], index: 11, kind: input, shape index: {}]
  %s12 = inlined_call_operand.vmem [shape: f32[10,1], index: 12, kind: input, shape index: {}]
  %s13 = inlined_call_operand.vmem [shape: f32[2,10,1], index: 13, kind: output, shape index: {}]
  %s14 = sld [smem:[#allocation0]]
  $region85: #{lenet5_forward.1} parent=0
    _
  %s16 = ssub.s32 1, %s14
  %s17 = scalar_select 0, %s16, %s14
  loop: start=0, step=1, limit=4
  $region2: #{lenet5_forward.1} parent=0 // loop_pre_header
    _
  $region3: #{lenet5_forward.1} parent=0 // loop_header
    %s19 = sphi 0, %s23
    %p20 = scmp.ge.s32.totalorder %s19, 4
    %s29 = sphi 0, %s31
    %s32 = sphi 0, %s29
    %s33 = sphi 0, %s32
    %s49 = sphi 0, %s33
    %s53 = sphi 0, %s53
    %s55 = sphi 0, %s53
    %s56 = sphi 0, %s55
    %s70 = sphi 0, %s56
    %s74 = sphi 0, %s74
    %s76 = sphi 0, %s74
    %s77 = sphi 0, %s76
    %s91 = sphi 0, %s77
    %s95 = sphi 0, %s95
    %s97 = sphi 0, %s95
    %s98 = sphi 0, %s97
    %s112 = sphi 0, %s98
    %s116 = sphi 0, %s116
    %s118 = sphi 0, %s116
    %s119 = sphi 0, %s118
    %s133 = sphi 0, %s119
    %s137 = sphi 0, %s137
    %s139 = sphi 0, %s137
    %s140 = sphi 0, %s139
    %s154 = sphi 0, %s140
    %s158 = sphi 0, %s158
    %s160 = sphi 0, %s158
    %s161 = sphi 0, %s160
    %s175 = sphi 0, %s161
    %s179 = sphi 0, %s179
    %s181 = sphi 0, %s179
    %s182 = sphi 0, %s181
    %s196 = sphi 0, %s182
    %s200 = sphi 0, %s200
    %s202 = sphi 0, %s200
    %s203 = sphi 0, %s202
    %s217 = sphi 0, %s203
    %s221 = sphi 0, %s221
    %s223 = sphi 0, %s221
    %s224 = sphi 0, %s223
    %s238 = sphi 0, %s224
    %s242 = sphi 0, %s242
    %s244 = sphi 0, %s242
    %s245 = sphi 0, %s244
    %s259 = sphi 0, %s245
    %s263 = sphi 0, %s263
    %s265 = sphi 0, %s263
    %s266 = sphi 0, %s265
    %s280 = sphi 0, %s266
    %s284 = sphi 0, %s284
    %s286 = sphi 0, %s284
    %s287 = sphi 0, %s286
    %s301 = sphi 0, %s287
    %s307 = sphi 0, %s309
    %s310 = sphi 0, %s307
    %s311 = sphi 0, %s310
    %s327 = sphi 0, %s311
  $region4: #{lenet5_forward.1} parent=0 // loop_header_branch
    %22 = sbr.rel (%p20) target = $region8
  $region5: #{lenet5_forward.1} parent=0 // loop_body
    %s24 = ssub.s32 %s19, 1
    %s25 = ssub.s32 %s19, 2
    %s26 = sadd.s32 %s19, 1
    %s27 = ssub.s32 %s19, %s26
    %p28 = scmp.eq.s32.totalorder %s27, 0
    %s30 = sadd.s32 %s29, 1
    %s31 = scalar_select %p28, %s29, %s30
    %p34 = pneg %p28
    %p35 = scmp.eq.s32.totalorder %s19, 1
    %p36 = por %p34, %p35
    %p37 = scmp.ne.s32.totalorder %s29, %s32
    %p38 = scmp.eq.s32.totalorder %s19, 0
    %p39 = por %p37, %p38
    %p40 = scmp.ne.s32.totalorder %s29, %s32
    %p41 = scmp.eq.s32.totalorder %s24, 1
    %p42 = por %p40, %p41
    %p43 = scmp.ne.s32.totalorder %s32, %s33
    %p44 = scmp.eq.s32.totalorder %s24, 0
    %p45 = por %p43, %p44
    %p46 = scmp.ne.s32.totalorder %s32, %s33
    %p47 = scmp.eq.s32.totalorder %s25, 1
    %p48 = por %p46, %p47
    %p50 = scmp.ne.s32.totalorder %s33, %s49
    %p51 = scmp.eq.s32.totalorder %s25, 0
    %p52 = por %p50, %p51
    %s54 = sadd.s32 %s53, 1
    %p57 = scmp.eq.s32.totalorder %s19, 1
    %p58 = scmp.ne.s32.totalorder %s53, %s55
    %p59 = scmp.eq.s32.totalorder %s19, 0
    %p60 = por %p58, %p59
    %p61 = scmp.ne.s32.totalorder %s53, %s55
    %p62 = scmp.eq.s32.totalorder %s24, 1
    %p63 = por %p61, %p62
    %p64 = scmp.ne.s32.totalorder %s55, %s56
    %p65 = scmp.eq.s32.totalorder %s24, 0
    %p66 = por %p64, %p65
    %p67 = scmp.ne.s32.totalorder %s55, %s56
    %p68 = scmp.eq.s32.totalorder %s25, 1
    %p69 = por %p67, %p68
    %p71 = scmp.ne.s32.totalorder %s56, %s70
    %p72 = scmp.eq.s32.totalorder %s25, 0
    %p73 = por %p71, %p72
    %s75 = sadd.s32 %s74, 1
    %p78 = scmp.eq.s32.totalorder %s19, 1
    %p79 = scmp.ne.s32.totalorder %s74, %s76
    %p80 = scmp.eq.s32.totalorder %s19, 0
    %p81 = por %p79, %p80
    %p82 = scmp.ne.s32.totalorder %s74, %s76
    %p83 = scmp.eq.s32.totalorder %s24, 1
    %p84 = por %p82, %p83
    %p85 = scmp.ne.s32.totalorder %s76, %s77
    %p86 = scmp.eq.s32.totalorder %s24, 0
    %p87 = por %p85, %p86
    %p88 = scmp.ne.s32.totalorder %s76, %s77
    %p89 = scmp.eq.s32.totalorder %s25, 1
    %p90 = por %p88, %p89
    %p92 = scmp.ne.s32.totalorder %s77, %s91
    %p93 = scmp.eq.s32.totalorder %s25, 0
    %p94 = por %p92, %p93
    %s96 = sadd.s32 %s95, 1
    %p99 = scmp.eq.s32.totalorder %s19, 1
    %p100 = scmp.ne.s32.totalorder %s95, %s97
    %p101 = scmp.eq.s32.totalorder %s19, 0
    %p102 = por %p100, %p101
    %p103 = scmp.ne.s32.totalorder %s95, %s97
    %p104 = scmp.eq.s32.totalorder %s24, 1
    %p105 = por %p103, %p104
    %p106 = scmp.ne.s32.totalorder %s97, %s98
    %p107 = scmp.eq.s32.totalorder %s24, 0
    %p108 = por %p106, %p107
    %p109 = scmp.ne.s32.totalorder %s97, %s98
    %p110 = scmp.eq.s32.totalorder %s25, 1
    %p111 = por %p109, %p110
    %p113 = scmp.ne.s32.totalorder %s98, %s112
    %p114 = scmp.eq.s32.totalorder %s25, 0
    %p115 = por %p113, %p114
    %s117 = sadd.s32 %s116, 1
    %p120 = scmp.eq.s32.totalorder %s19, 1
    %p121 = scmp.ne.s32.totalorder %s116, %s118
    %p122 = scmp.eq.s32.totalorder %s19, 0
    %p123 = por %p121, %p122
    %p124 = scmp.ne.s32.totalorder %s116, %s118
    %p125 = scmp.eq.s32.totalorder %s24, 1
    %p126 = por %p124, %p125
    %p127 = scmp.ne.s32.totalorder %s118, %s119
    %p128 = scmp.eq.s32.totalorder %s24, 0
    %p129 = por %p127, %p128
    %p130 = scmp.ne.s32.totalorder %s118, %s119
    %p131 = scmp.eq.s32.totalorder %s25, 1
    %p132 = por %p130, %p131
    %p134 = scmp.ne.s32.totalorder %s119, %s133
    %p135 = scmp.eq.s32.totalorder %s25, 0
    %p136 = por %p134, %p135
    %s138 = sadd.s32 %s137, 1
    %p141 = scmp.eq.s32.totalorder %s19, 1
    %p142 = scmp.ne.s32.totalorder %s137, %s139
    %p143 = scmp.eq.s32.totalorder %s19, 0
    %p144 = por %p142, %p143
    %p145 = scmp.ne.s32.totalorder %s137, %s139
    %p146 = scmp.eq.s32.totalorder %s24, 1
    %p147 = por %p145, %p146
    %p148 = scmp.ne.s32.totalorder %s139, %s140
    %p149 = scmp.eq.s32.totalorder %s24, 0
    %p150 = por %p148, %p149
    %p151 = scmp.ne.s32.totalorder %s139, %s140
    %p152 = scmp.eq.s32.totalorder %s25, 1
    %p153 = por %p151, %p152
    %p155 = scmp.ne.s32.totalorder %s140, %s154
    %p156 = scmp.eq.s32.totalorder %s25, 0
    %p157 = por %p155, %p156
    %s159 = sadd.s32 %s158, 1
    %p162 = scmp.eq.s32.totalorder %s19, 1
    %p163 = scmp.ne.s32.totalorder %s158, %s160
    %p164 = scmp.eq.s32.totalorder %s19, 0
    %p165 = por %p163, %p164
    %p166 = scmp.ne.s32.totalorder %s158, %s160
    %p167 = scmp.eq.s32.totalorder %s24, 1
    %p168 = por %p166, %p167
    %p169 = scmp.ne.s32.totalorder %s160, %s161
    %p170 = scmp.eq.s32.totalorder %s24, 0
    %p171 = por %p169, %p170
    %p172 = scmp.ne.s32.totalorder %s160, %s161
    %p173 = scmp.eq.s32.totalorder %s25, 1
    %p174 = por %p172, %p173
    %p176 = scmp.ne.s32.totalorder %s161, %s175
    %p177 = scmp.eq.s32.totalorder %s25, 0
    %p178 = por %p176, %p177
    %s180 = sadd.s32 %s179, 1
    %p183 = scmp.eq.s32.totalorder %s19, 1
    %p184 = scmp.ne.s32.totalorder %s179, %s181
    %p185 = scmp.eq.s32.totalorder %s19, 0
    %p186 = por %p184, %p185
    %p187 = scmp.ne.s32.totalorder %s179, %s181
    %p188 = scmp.eq.s32.totalorder %s24, 1
    %p189 = por %p187, %p188
    %p190 = scmp.ne.s32.totalorder %s181, %s182
    %p191 = scmp.eq.s32.totalorder %s24, 0
    %p192 = por %p190, %p191
    %p193 = scmp.ne.s32.totalorder %s181, %s182
    %p194 = scmp.eq.s32.totalorder %s25, 1
    %p195 = por %p193, %p194
    %p197 = scmp.ne.s32.totalorder %s182, %s196
    %p198 = scmp.eq.s32.totalorder %s25, 0
    %p199 = por %p197, %p198
    %s201 = sadd.s32 %s200, 1
    %p204 = scmp.eq.s32.totalorder %s19, 1
    %p205 = scmp.ne.s32.totalorder %s200, %s202
    %p206 = scmp.eq.s32.totalorder %s19, 0
    %p207 = por %p205, %p206
    %p208 = scmp.ne.s32.totalorder %s200, %s202
    %p209 = scmp.eq.s32.totalorder %s24, 1
    %p210 = por %p208, %p209
    %p211 = scmp.ne.s32.totalorder %s202, %s203
    %p212 = scmp.eq.s32.totalorder %s24, 0
    %p213 = por %p211, %p212
    %p214 = scmp.ne.s32.totalorder %s202, %s203
    %p215 = scmp.eq.s32.totalorder %s25, 1
    %p216 = por %p214, %p215
    %p218 = scmp.ne.s32.totalorder %s203, %s217
    %p219 = scmp.eq.s32.totalorder %s25, 0
    %p220 = por %p218, %p219
    %s222 = sadd.s32 %s221, 1
    %p225 = scmp.eq.s32.totalorder %s19, 1
    %p226 = scmp.ne.s32.totalorder %s221, %s223
    %p227 = scmp.eq.s32.totalorder %s19, 0
    %p228 = por %p226, %p227
    %p229 = scmp.ne.s32.totalorder %s221, %s223
    %p230 = scmp.eq.s32.totalorder %s24, 1
    %p231 = por %p229, %p230
    %p232 = scmp.ne.s32.totalorder %s223, %s224
    %p233 = scmp.eq.s32.totalorder %s24, 0
    %p234 = por %p232, %p233
    %p235 = scmp.ne.s32.totalorder %s223, %s224
    %p236 = scmp.eq.s32.totalorder %s25, 1
    %p237 = por %p235, %p236
    %p239 = scmp.ne.s32.totalorder %s224, %s238
    %p240 = scmp.eq.s32.totalorder %s25, 0
    %p241 = por %p239, %p240
    %s243 = sadd.s32 %s242, 1
    %p246 = scmp.eq.s32.totalorder %s19, 1
    %p247 = scmp.ne.s32.totalorder %s242, %s244
    %p248 = scmp.eq.s32.totalorder %s19, 0
    %p249 = por %p247, %p248
    %p250 = scmp.ne.s32.totalorder %s242, %s244
    %p251 = scmp.eq.s32.totalorder %s24, 1
    %p252 = por %p250, %p251
    %p253 = scmp.ne.s32.totalorder %s244, %s245
    %p254 = scmp.eq.s32.totalorder %s24, 0
    %p255 = por %p253, %p254
    %p256 = scmp.ne.s32.totalorder %s244, %s245
    %p257 = scmp.eq.s32.totalorder %s25, 1
    %p258 = por %p256, %p257
    %p260 = scmp.ne.s32.totalorder %s245, %s259
    %p261 = scmp.eq.s32.totalorder %s25, 0
    %p262 = por %p260, %p261
    %s264 = sadd.s32 %s263, 1
    %p267 = scmp.eq.s32.totalorder %s19, 1
    %p268 = scmp.ne.s32.totalorder %s263, %s265
    %p269 = scmp.eq.s32.totalorder %s19, 0
    %p270 = por %p268, %p269
    %p271 = scmp.ne.s32.totalorder %s263, %s265
    %p272 = scmp.eq.s32.totalorder %s24, 1
    %p273 = por %p271, %p272
    %p274 = scmp.ne.s32.totalorder %s265, %s266
    %p275 = scmp.eq.s32.totalorder %s24, 0
    %p276 = por %p274, %p275
    %p277 = scmp.ne.s32.totalorder %s265, %s266
    %p278 = scmp.eq.s32.totalorder %s25, 1
    %p279 = por %p277, %p278
    %p281 = scmp.ne.s32.totalorder %s266, %s280
    %p282 = scmp.eq.s32.totalorder %s25, 0
    %p283 = por %p281, %p282
    %s285 = sadd.s32 %s284, 1
    %p288 = scmp.eq.s32.totalorder %s19, 1
    %p289 = scmp.ne.s32.totalorder %s284, %s286
    %p290 = scmp.eq.s32.totalorder %s19, 0
    %p291 = por %p289, %p290
    %p292 = scmp.ne.s32.totalorder %s284, %s286
    %p293 = scmp.eq.s32.totalorder %s24, 1
    %p294 = por %p292, %p293
    %p295 = scmp.ne.s32.totalorder %s286, %s287
    %p296 = scmp.eq.s32.totalorder %s24, 0
    %p297 = por %p295, %p296
    %p298 = scmp.ne.s32.totalorder %s286, %s287
    %p299 = scmp.eq.s32.totalorder %s25, 1
    %p300 = por %p298, %p299
    %p302 = scmp.ne.s32.totalorder %s287, %s301
    %p303 = scmp.eq.s32.totalorder %s25, 0
    %p304 = por %p302, %p303
    %s305 = ssub.s32 %s19, %s26
    %p306 = scmp.eq.s32.totalorder %s305, 0
    %s308 = sadd.s32 %s307, 1
    %s309 = scalar_select %p306, %s307, %s308
    %p312 = pneg %p306
    %p313 = scmp.eq.s32.totalorder %s19, 1
    %p314 = por %p312, %p313
    %p315 = scmp.ne.s32.totalorder %s307, %s310
    %p316 = scmp.eq.s32.totalorder %s19, 0
    %p317 = por %p315, %p316
    %p318 = scmp.ne.s32.totalorder %s307, %s310
    %p319 = scmp.eq.s32.totalorder %s24, 1
    %p320 = por %p318, %p319
    %p321 = scmp.ne.s32.totalorder %s310, %s311
    %p322 = scmp.eq.s32.totalorder %s24, 0
    %p323 = por %p321, %p322
    %p324 = scmp.ne.s32.totalorder %s310, %s311
    %p325 = scmp.eq.s32.totalorder %s25, 1
    %p326 = por %p324, %p325
    %p328 = scmp.ne.s32.totalorder %s311, %s327
    %p329 = scmp.eq.s32.totalorder %s25, 0
    %p330 = por %p328, %p329
    %p331 = scmp.le.s32.totalorder 1, %s19
    %p332 = scmp.lt.s32.totalorder %s19, 3
    %p333 = pnand %p331, %p332
    %p334 = pneg %p333
    // Predicated region
    $region9: #{lenet5_forward.1} parent=5 // pred_check
      _
    $region10: #{lenet5_forward.1} parent=5 // pred_check_branch
      %336 = sbr.rel (%p333) target = $region12
    $region11: #{lenet5_forward.1} parent=5 // pred_region
      %s337 = ssub.s32 %s19, 1
      // Predicated region
      $region13: #{lenet5_forward.1} parent=11 // pred_check
        %p338 = pneg %p66
      $region14: #{lenet5_forward.1} parent=11 // pred_check_branch
        %340 = sbr.rel (%p338) target = $region16
      $region15: #{lenet5_forward.1} parent=11 // pred_region
        _
      $region16: #{lenet5_forward.1} parent=11 // pred_fallthru
        _
      // Predicated region
      $region17: #{lenet5_forward.1} parent=11 // pred_check
        %p341 = pneg %p87
      $region18: #{lenet5_forward.1} parent=11 // pred_check_branch
        %343 = sbr.rel (%p341) target = $region20
      $region19: #{lenet5_forward.1} parent=11 // pred_region
        _
      $region20: #{lenet5_forward.1} parent=11 // pred_fallthru
        _
      // Predicated region
      $region21: #{lenet5_forward.1} parent=11 // pred_check
        %p344 = pneg %p108
      $region22: #{lenet5_forward.1} parent=11 // pred_check_branch
        %346 = sbr.rel (%p344) target = $region24
      $region23: #{lenet5_forward.1} parent=11 // pred_region
        _
      $region24: #{lenet5_forward.1} parent=11 // pred_fallthru
        _
      // Predicated region
      $region25: #{lenet5_forward.1} parent=11 // pred_check
        %p347 = pneg %p129
      $region26: #{lenet5_forward.1} parent=11 // pred_check_branch
        %349 = sbr.rel (%p347) target = $region28
      $region27: #{lenet5_forward.1} parent=11 // pred_region
        _
      $region28: #{lenet5_forward.1} parent=11 // pred_fallthru
        _
      // Predicated region
      $region29: #{lenet5_forward.1} parent=11 // pred_check
        %p350 = pneg %p150
      $region30: #{lenet5_forward.1} parent=11 // pred_check_branch
        %352 = sbr.rel (%p350) target = $region32
      $region31: #{lenet5_forward.1} parent=11 // pred_region
        _
      $region32: #{lenet5_forward.1} parent=11 // pred_fallthru
        _
      // Predicated region
      $region33: #{lenet5_forward.1} parent=11 // pred_check
        %p353 = pneg %p171
      $region34: #{lenet5_forward.1} parent=11 // pred_check_branch
        %355 = sbr.rel (%p353) target = $region36
      $region35: #{lenet5_forward.1} parent=11 // pred_region
        _
      $region36: #{lenet5_forward.1} parent=11 // pred_fallthru
        _
      // Predicated region
      $region37: #{lenet5_forward.1} parent=11 // pred_check
        %p356 = pneg %p192
      $region38: #{lenet5_forward.1} parent=11 // pred_check_branch
        %358 = sbr.rel (%p356) target = $region40
      $region39: #{lenet5_forward.1} parent=11 // pred_region
        _
      $region40: #{lenet5_forward.1} parent=11 // pred_fallthru
        _
      // Predicated region
      $region41: #{lenet5_forward.1} parent=11 // pred_check
        %p359 = pneg %p213
      $region42: #{lenet5_forward.1} parent=11 // pred_check_branch
        %361 = sbr.rel (%p359) target = $region44
      $region43: #{lenet5_forward.1} parent=11 // pred_region
        _
      $region44: #{lenet5_forward.1} parent=11 // pred_fallthru
        _
      // Predicated region
      $region45: #{lenet5_forward.1} parent=11 // pred_check
        %p362 = pneg %p234
      $region46: #{lenet5_forward.1} parent=11 // pred_check_branch
        %364 = sbr.rel (%p362) target = $region48
      $region47: #{lenet5_forward.1} parent=11 // pred_region
        _
      $region48: #{lenet5_forward.1} parent=11 // pred_fallthru
        _
      // Predicated region
      $region49: #{lenet5_forward.1} parent=11 // pred_check
        %p365 = pneg %p255
      $region50: #{lenet5_forward.1} parent=11 // pred_check_branch
        %367 = sbr.rel (%p365) target = $region52
      $region51: #{lenet5_forward.1} parent=11 // pred_region
        _
      $region52: #{lenet5_forward.1} parent=11 // pred_fallthru
        _
      // Predicated region
      $region53: #{lenet5_forward.1} parent=11 // pred_check
        %p368 = pneg %p276
      $region54: #{lenet5_forward.1} parent=11 // pred_check_branch
        %370 = sbr.rel (%p368) target = $region56
      $region55: #{lenet5_forward.1} parent=11 // pred_region
        _
      $region56: #{lenet5_forward.1} parent=11 // pred_fallthru
        _
      // Predicated region
      $region57: #{lenet5_forward.1} parent=11 // pred_check
        %p371 = pneg %p297
      $region58: #{lenet5_forward.1} parent=11 // pred_check_branch
        %373 = sbr.rel (%p371) target = $region60
      $region59: #{lenet5_forward.1} parent=11 // pred_region
        _
      $region60: #{lenet5_forward.1} parent=11 // pred_fallthru
        _
    $region12: #{lenet5_forward.1} parent=5 // pred_fallthru
      _
    %p374 = scmp.lt.s32.totalorder %s19, 2
    // Predicated region
    $region61: #{lenet5_forward.1} parent=5 // pred_check
      %p375 = pneg %p374
    $region62: #{lenet5_forward.1} parent=5 // pred_check_branch
      %377 = sbr.rel (%p375) target = $region64
    $region63: #{lenet5_forward.1} parent=5 // pred_region
      // Predicated region
      $region65: #{lenet5_forward.1} parent=63 // pred_check
        %p378 = pneg %p39
      $region66: #{lenet5_forward.1} parent=63 // pred_check_branch
        %380 = sbr.rel (%p378) target = $region68
      $region67: #{lenet5_forward.1} parent=63 // pred_region
        %p381 = scmp.lt.s32.totalorder %s19, 1
        %s382 = scalar_select %p381, %s19, 1
        %s383 = smul.addr %s382, 9
        %s384 = scalar_lea.vmem %s0, %s383
      $region68: #{lenet5_forward.1} parent=63 // pred_fallthru
        _
    $region64: #{lenet5_forward.1} parent=5 // pred_fallthru
      _
    %p385 = scmp.le.s32.totalorder 1, %s19
    %p386 = scmp.lt.s32.totalorder %s19, 3
    %p387 = pnand %p385, %p386
    %p388 = pneg %p387
    // Predicated region
    $region69: #{lenet5_forward.1} parent=5 // pred_check
      _
    $region70: #{lenet5_forward.1} parent=5 // pred_check_branch
      %390 = sbr.rel (%p387) target = $region72
    $region71: #{lenet5_forward.1} parent=5 // pred_region
      %s391 = ssub.s32 %s19, 1
      %p392 = scmp.lt.s32.totalorder %s24, 1
      %s393 = scalar_select %p392, %s24, 1
      %s394 = smul.addr %s393, 9
      %s395 = scalar_lea.vmem %s0, %s394
      %p396 = pneg %p45
      %p397 = pneg %p42
      %p398 = pneg %p66
      %p399 = pneg %p63
      %p400 = pneg %p87
      %p401 = pneg %p84
      %p402 = pneg %p108
      %p403 = pneg %p105
      %p404 = pneg %p129
      %p405 = pneg %p126
      %p406 = pneg %p150
      %p407 = pneg %p147
      %p408 = pneg %p171
      %p409 = pneg %p168
      %p410 = pneg %p192
      %p411 = pneg %p189
      %p412 = pneg %p213
      %p413 = pneg %p210
      %p414 = pneg %p234
      %p415 = pneg %p231
      %p416 = pneg %p255
      %p417 = pneg %p252
      %p418 = pneg %p276
      %p419 = pneg %p273
      %p420 = pneg %p297
      %p421 = pneg %p294
      %p422 = pneg %p323
      %p423 = pneg %p320
      %p424 = scmp.lt.s32.totalorder %s24, 1
      %s425 = scalar_select %p424, %s24, 1
      %s426 = smul.addr %s425, 2
      %s427 = smul.addr %s426, 8
      %s428 = scalar_lea.vmem %s13, %s427
      %p429 = scmp.lt.s32.totalorder %s24, 1
      %s430 = scalar_select %p429, %s24, 1
      %s431 = smul.addr %s430, 9
      %s432 = scalar_lea.vmem %s0, %s431
      %p433 = scmp.lt.s32.totalorder %s24, 1
      %s434 = scalar_select %p433, %s24, 1
      %s435 = smul.addr %s434, 2
      %s436 = smul.addr %s435, 8
      %s437 = scalar_lea.vmem %s13, %s436
      %v438 = vld [vmem:[%s432] sm:$0xff]
      %v439 = vlaneseq
      %vm440 = vcmp.ge.s32.totalorder %v439, 0
      %vm441 = vcmp.lt.s32.totalorder %v439, 896
      %vm442 = vmand %vm440, %vm441
      %443 = vst.msk [vmem:[#allocation2] ss:$8 sm:$0xf] %vm442, %v438
      %444 = vst.msk [vmem:[#allocation2] ss:$8 sm:$0x70] %vm442, %v438
      %v445 = vld [vmem:[%s432] sm:$0xff]
      %447 = vrot.lane.b32.xlu0 %v445, 127
      %v448 = vpop.permute.xlu0 %447
      %v449 = vrot.slane %v448, 1
      %vm450 = vcmask 1039360
      %v451 = vsel %vm450, %v448, %v449
      %s453 = scalar_lea.vmem [#allocation2], 1
      %454 = vst.msk [vmem:[%s453] ss:$8 sm:$0xf] %vm442, %v451
      %455 = vst.msk [vmem:[%s453] ss:$8 sm:$0x70] %vm442, %v451
      %v456 = vld [vmem:[%s432] sm:$0xff]
      %458 = vrot.lane.b32.xlu0 %v456, 126
      %v459 = vpop.permute.xlu0 %458
      %v460 = vrot.slane %v459, 1
      %vm461 = vcmask 1031168
      %v462 = vsel %vm461, %v459, %v460
      %s464 = scalar_lea.vmem [#allocation2], 2
      %465 = vst.msk [vmem:[%s464] ss:$8 sm:$0xf] %vm442, %v462
      %466 = vst.msk [vmem:[%s464] ss:$8 sm:$0x70] %vm442, %v462
      %v467 = vld [vmem:[%s432] sm:$0xff]
      %469 = vrot.lane.b32.xlu0 %v467, 125
      %v470 = vpop.permute.xlu0 %469
      %v471 = vrot.slane %v470, 1
      %vm472 = vcmask 1022976
      %v473 = vsel %vm472, %v470, %v471
      %s475 = scalar_lea.vmem [#allocation2], 3
      %476 = vst.msk [vmem:[%s475] ss:$8 sm:$0xf] %vm442, %v473
      %477 = vst.msk [vmem:[%s475] ss:$8 sm:$0x70] %vm442, %v473
      %v478 = vld [vmem:[%s432] sm:$0xff]
      %480 = vrot.lane.b32.xlu0 %v478, 124
      %v481 = vpop.permute.xlu0 %480
      %v482 = vrot.slane %v481, 1
      %vm483 = vcmask 1014784
      %v484 = vsel %vm483, %v481, %v482
      %s486 = scalar_lea.vmem [#allocation2], 4
      %487 = vst.msk [vmem:[%s486] ss:$8 sm:$0xf] %vm442, %v484
      %488 = vst.msk [vmem:[%s486] ss:$8 sm:$0x70] %vm442, %v484
      %v489 = vld [vmem:[%s432] sm:$0xff]
      %491 = vrot.lane.b32.xlu0 %v489, 96
      %v492 = vpop.permute.xlu0 %491
      %v493 = vrot.slane %v492, 1
      %vm494 = vcmask 785408
      %v495 = vsel %vm494, %v492, %v493
      %s497 = scalar_lea.vmem [#allocation2], 5
      %498 = vst.msk [vmem:[%s497] ss:$8 sm:$0xf] %vm442, %v495
      %499 = vst.msk [vmem:[%s497] ss:$8 sm:$0x70] %vm442, %v495
      %v500 = vld [vmem:[%s432] sm:$0xff]
      %502 = vrot.lane.b32.xlu0 %v500, 95
      %v503 = vpop.permute.xlu0 %502
      %v504 = vrot.slane %v503, 1
      %vm505 = vcmask 777216
      %v506 = vsel %vm505, %v503, %v504
      %s508 = scalar_lea.vmem [#allocation2], 6
      %509 = vst.msk [vmem:[%s508] ss:$8 sm:$0xf] %vm442, %v506
      %510 = vst.msk [vmem:[%s508] ss:$8 sm:$0x70] %vm442, %v506
      %v511 = vld [vmem:[%s432] sm:$0xff]
      %513 = vrot.lane.b32.xlu0 %v511, 94
      %v514 = vpop.permute.xlu0 %513
      %v515 = vrot.slane %v514, 1
      %vm516 = vcmask 769024
      %v517 = vsel %vm516, %v514, %v515
      %s519 = scalar_lea.vmem [#allocation2], 7
      %520 = vst.msk [vmem:[%s519] ss:$8 sm:$0xf] %vm442, %v517
      %521 = vst.msk [vmem:[%s519] ss:$8 sm:$0x70] %vm442, %v517
      %v522 = vld [vmem:[%s432] sm:$0xff]
      %524 = vrot.lane.b32.xlu0 %v522, 93
      %v525 = vpop.permute.xlu0 %524
      %v526 = vrot.slane %v525, 1
      %vm527 = vcmask 760832
      %v528 = vsel %vm527, %v525, %v526
      %s530 = scalar_lea.vmem [#allocation2], 56
      %531 = vst.msk [vmem:[%s530] ss:$8 sm:$0xf] %vm442, %v528
      %532 = vst.msk [vmem:[%s530] ss:$8 sm:$0x70] %vm442, %v528
      %v533 = vld [vmem:[%s432] sm:$0xff]
      %535 = vrot.lane.b32.xlu0 %v533, 92
      %v536 = vpop.permute.xlu0 %535
      %v537 = vrot.slane %v536, 1
      %vm538 = vcmask 752640
      %v539 = vsel %vm538, %v536, %v537
      %s541 = scalar_lea.vmem [#allocation2], 57
      %542 = vst.msk [vmem:[%s541] ss:$8 sm:$0xf] %vm442, %v539
      %543 = vst.msk [vmem:[%s541] ss:$8 sm:$0x70] %vm442, %v539
      %v544 = vld [vmem:[%s432] sm:$0xff]
      %546 = vrot.lane.b32.xlu0 %v544, 64
      %v547 = vpop.permute.xlu0 %546
      %v548 = vrot.slane %v547, 1
      %vm549 = vcmask 523264
      %v550 = vsel %vm549, %v547, %v548
      %s552 = scalar_lea.vmem [#allocation2], 58
      %553 = vst.msk [vmem:[%s552] ss:$8 sm:$0xf] %vm442, %v550
      %554 = vst.msk [vmem:[%s552] ss:$8 sm:$0x70] %vm442, %v550
      %v555 = vld [vmem:[%s432] sm:$0xff]
      %557 = vrot.lane.b32.xlu0 %v555, 63
      %v558 = vpop.permute.xlu0 %557
      %v559 = vrot.slane %v558, 1
      %vm560 = vcmask 515072
      %v561 = vsel %vm560, %v558, %v559
      %s563 = scalar_lea.vmem [#allocation2], 59
      %564 = vst.msk [vmem:[%s563] ss:$8 sm:$0xf] %vm442, %v561
      %565 = vst.msk [vmem:[%s563] ss:$8 sm:$0x70] %vm442, %v561
      %v566 = vld [vmem:[%s432] sm:$0xff]
      %568 = vrot.lane.b32.xlu0 %v566, 62
      %v569 = vpop.permute.xlu0 %568
      %v570 = vrot.slane %v569, 1
      %vm571 = vcmask 506880
      %v572 = vsel %vm571, %v569, %v570
      %s574 = scalar_lea.vmem [#allocation2], 60
      %575 = vst.msk [vmem:[%s574] ss:$8 sm:$0xf] %vm442, %v572
      %576 = vst.msk [vmem:[%s574] ss:$8 sm:$0x70] %vm442, %v572
      %v577 = vld [vmem:[%s432] sm:$0xff]
      %579 = vrot.lane.b32.xlu0 %v577, 61
      %v580 = vpop.permute.xlu0 %579
      %v581 = vrot.slane %v580, 1
      %vm582 = vcmask 498688
      %v583 = vsel %vm582, %v580, %v581
      %s585 = scalar_lea.vmem [#allocation2], 61
      %586 = vst.msk [vmem:[%s585] ss:$8 sm:$0xf] %vm442, %v583
      %587 = vst.msk [vmem:[%s585] ss:$8 sm:$0x70] %vm442, %v583
      %v588 = vld [vmem:[%s432] sm:$0xff]
      %590 = vrot.lane.b32.xlu0 %v588, 60
      %v591 = vpop.permute.xlu0 %590
      %v592 = vrot.slane %v591, 1
      %vm593 = vcmask 490496
      %v594 = vsel %vm593, %v591, %v592
      %s596 = scalar_lea.vmem [#allocation2], 62
      %597 = vst.msk [vmem:[%s596] ss:$8 sm:$0xf] %vm442, %v594
      %598 = vst.msk [vmem:[%s596] ss:$8 sm:$0x70] %vm442, %v594
      %v599 = vld [vmem:[%s432] sm:$0xff]
      %601 = vrot.lane.b32.xlu0 %v599, 32
      %v602 = vpop.permute.xlu0 %601
      %v603 = vrot.slane %v602, 1
      %vm604 = vcmask 261120
      %v605 = vsel %vm604, %v602, %v603
      %s607 = scalar_lea.vmem [#allocation2], 63
      %608 = vst.msk [vmem:[%s607] ss:$8 sm:$0xf] %vm442, %v605
      %609 = vst.msk [vmem:[%s607] ss:$8 sm:$0x70] %vm442, %v605
      %v610 = vld [vmem:[%s432] sm:$0xff]
      %612 = vrot.lane.b32.xlu0 %v610, 31
      %v613 = vpop.permute.xlu0 %612
      %v614 = vrot.slane %v613, 1
      %vm615 = vcmask 252928
      %v616 = vsel %vm615, %v613, %v614
      %s618 = scalar_lea.vmem [#allocation2], 112
      %619 = vst.msk [vmem:[%s618] ss:$8 sm:$0xf] %vm442, %v616
      %620 = vst.msk [vmem:[%s618] ss:$8 sm:$0x70] %vm442, %v616
      %v621 = vld [vmem:[%s432] sm:$0xff]
      %623 = vrot.lane.b32.xlu0 %v621, 30
      %v624 = vpop.permute.xlu0 %623
      %v625 = vrot.slane %v624, 1
      %vm626 = vcmask 244736
      %v627 = vsel %vm626, %v624, %v625
      %s629 = scalar_lea.vmem [#allocation2], 113
      %630 = vst.msk [vmem:[%s629] ss:$8 sm:$0xf] %vm442, %v627
      %631 = vst.msk [vmem:[%s629] ss:$8 sm:$0x70] %vm442, %v627
      %v632 = vld [vmem:[%s432] sm:$0xff]
      %634 = vrot.lane.b32.xlu0 %v632, 29
      %v635 = vpop.permute.xlu0 %634
      %v636 = vrot.slane %v635, 1
      %vm637 = vcmask 236544
      %v638 = vsel %vm637, %v635, %v636
      %s640 = scalar_lea.vmem [#allocation2], 114
      %641 = vst.msk [vmem:[%s640] ss:$8 sm:$0xf] %vm442, %v638
      %642 = vst.msk [vmem:[%s640] ss:$8 sm:$0x70] %vm442, %v638
      %v643 = vld [vmem:[%s432] sm:$0xff]
      %645 = vrot.lane.b32.xlu0 %v643, 28
      %v646 = vpop.permute.xlu0 %645
      %v647 = vrot.slane %v646, 1
      %vm648 = vcmask 228352
      %v649 = vsel %vm648, %v646, %v647
      %s651 = scalar_lea.vmem [#allocation2], 115
      %652 = vst.msk [vmem:[%s651] ss:$8 sm:$0xf] %vm442, %v649
      %653 = vst.msk [vmem:[%s651] ss:$8 sm:$0x70] %vm442, %v649
      %v654 = vld [vmem:[%s432 + $0x1] sm:$0xff]
      %s655 = scalar_lea.vmem [#allocation2], 116
      %656 = vst.msk [vmem:[%s655] ss:$8 sm:$0xf] %vm442, %v654
      %657 = vst.msk [vmem:[%s655] ss:$8 sm:$0x70] %vm442, %v654
      %v658 = vld [vmem:[%s432 + $0x1] sm:$0xff]
      %660 = vrot.lane.b32.xlu0 %v658, 127
      %v661 = vpop.permute.xlu0 %660
      %v662 = vrot.slane %v661, 1
      %v663 = vsel %vm450, %v661, %v662
      %s665 = scalar_lea.vmem [#allocation2], 117
      %666 = vst.msk [vmem:[%s665] ss:$8 sm:$0xf] %vm442, %v663
      %667 = vst.msk [vmem:[%s665] ss:$8 sm:$0x70] %vm442, %v663
      %v668 = vld [vmem:[%s432 + $0x1] sm:$0xff]
      %670 = vrot.lane.b32.xlu0 %v668, 126
      %v671 = vpop.permute.xlu0 %670
      %v672 = vrot.slane %v671, 1
      %v673 = vsel %vm461, %v671, %v672
      %s675 = scalar_lea.vmem [#allocation2], 118
      %676 = vst.msk [vmem:[%s675] ss:$8 sm:$0xf] %vm442, %v673
      %677 = vst.msk [vmem:[%s675] ss:$8 sm:$0x70] %vm442, %v673
      %v678 = vld [vmem:[%s432 + $0x1] sm:$0xff]
      %680 = vrot.lane.b32.xlu0 %v678, 125
      %v681 = vpop.permute.xlu0 %680
      %v682 = vrot.slane %v681, 1
      %v683 = vsel %vm472, %v681, %v682
      %s685 = scalar_lea.vmem [#allocation2], 119
      %686 = vst.msk [vmem:[%s685] ss:$8 sm:$0xf] %vm442, %v683
      %687 = vst.msk [vmem:[%s685] ss:$8 sm:$0x70] %vm442, %v683
      %v688 = vld [vmem:[%s432 + $0x1] sm:$0xff]
      %690 = vrot.lane.b32.xlu0 %v688, 124
      %v691 = vpop.permute.xlu0 %690
      %v692 = vrot.slane %v691, 1
      %v693 = vsel %vm483, %v691, %v692
      %s695 = scalar_lea.vmem [#allocation2], 168
      %696 = vst.msk [vmem:[%s695] ss:$8 sm:$0xf] %vm442, %v693
      %697 = vst.msk [vmem:[%s695] ss:$8 sm:$0x70] %vm442, %v693
      %v698 = vld [vmem:[%s1] sm:$0x3f]
      %v699 = vld [vmem:[#allocation2] sm:$0xff]
      %v700 = vld [vmem:[#allocation2 + $0x8] sm:$0xff]
      %v701 = vld [vmem:[#allocation2 + $0x10] sm:$0xff]
      %v702 = vld [vmem:[#allocation2 + $0x18] sm:$0xff]
      %v703 = vld [vmem:[#allocation2 + $0x20] sm:$0xff]
      %v704 = vld [vmem:[#allocation2 + $0x28] sm:$0xff]
      %v705 = vld [vmem:[#allocation2 + $0x30] sm:$0xff]
      %v706 = vld [vmem:[#allocation2 + $0x38] sm:$0xff]
      %v707 = vld [vmem:[#allocation2 + $0x40] sm:$0xff]
      %v708 = vld [vmem:[#allocation2 + $0x48] sm:$0xff]
      %v709 = vld [vmem:[#allocation2 + $0x50] sm:$0xff]
      %v710 = vld [vmem:[#allocation2 + $0x58] sm:$0xff]
      %v711 = vld [vmem:[#allocation2 + $0x60] sm:$0xff]
      %v712 = vld [vmem:[#allocation2 + $0x68] sm:$0xff]
      %v713 = vld [vmem:[#allocation2 + $0x70] sm:$0xff]
      %v714 = vld [vmem:[#allocation2 + $0x78] sm:$0xff]
      %v715 = vld [vmem:[#allocation2 + $0x80] sm:$0xff]
      %v716 = vld [vmem:[#allocation2 + $0x88] sm:$0xff]
      %v717 = vld [vmem:[#allocation2 + $0x90] sm:$0xff]
      %v718 = vld [vmem:[#allocation2 + $0x98] sm:$0xff]
      %v719 = vld [vmem:[#allocation2 + $0xa0] sm:$0xff]
      %v720 = vld [vmem:[#allocation2 + $0xa8] sm:$0x1]
      %v721 = vld [vmem:[#allocation2 + $0xb0] sm:$0x1]
      %v722 = vld [vmem:[#allocation2 + $0xb8] sm:$0x1]
      %v723 = vld [vmem:[#allocation2 + $0xc0] sm:$0x1]
      %v724 = vld [vmem:[#allocation2 + $0xc8] sm:$0x1]
      %v725 = vld [vmem:[#allocation2 + $0xd0] sm:$0x1]
      %v726 = vld [vmem:[#allocation2 + $0xd8] sm:$0x1]
      %v727 = vld [vmem:[%s2] sm:$0x3f]
      %729 = vset.pattern.permute.xlu0 0
      %730 = vperm.xlu0 %729, %v727
      %v731 = vpop.permute.xlu0 %730
      %vm733 = vcmask 203776
      %v735 = vsel %vm733, %v698, 0
      %vm737 = vcmask 1040384
      %v739 = vsel %vm737, %v720, 0
      %v742 = vsel %vm737, %v721, 0
      %v745 = vsel %vm737, %v722, 0
      %v748 = vsel %vm737, %v723, 0
      %v751 = vsel %vm737, %v724, 0
      %v754 = vsel %vm737, %v725, 0
      %v757 = vsel %vm737, %v726, 0
      %759 = vmatprep.subr.mxu0 %v700
      %760 = vmatpush1.msra.mxu0 %v699
      %761 = vmatprep.subr.mxu0 %v707
      %762 = vmatpush1.msra.mxu0 %v706
      %763 = vmatprep.subr.mxu0 %v714
      %764 = vmatpush1.msra.mxu0 %v713
      %765 = vmatprep.subr.mxu0 %v742
      %766 = vmatpush1.msra.mxu0 %v739
      %767 = vmatprep.subr.mxu0 0.0
      %768 = vmatpush1.msra.mxu0 0.0
      %769 = vmatprep.subr.mxu0 0.0
      %770 = vmatpush1.msra.mxu0 0.0
      %771 = vmatprep.subr.mxu0 0.0
      %772 = vmatpush1.msra.mxu0 0.0
      %773 = vmatprep.subr.mxu0 0.0
      %774 = vmatpush1.msra.mxu0 0.0
      %775 = vmatprep.subr.mxu0 0.0
      %776 = vmatpush1.msra.mxu0 0.0
      %777 = vmatprep.subr.mxu0 0.0
      %778 = vmatpush1.msra.mxu0 0.0
      %779 = vmatprep.subr.mxu0 0.0
      %780 = vmatpush1.msra.mxu0 0.0
      %781 = vmatprep.subr.mxu0 0.0
      %782 = vmatpush1.msra.mxu0 0.0
      %783 = vmatprep.subr.mxu0 0.0
      %784 = vmatpush1.msra.mxu0 0.0
      %785 = vmatprep.subr.mxu0 0.0
      %786 = vmatpush1.msra.mxu0 0.0
      %787 = vmatprep.subr.mxu0 0.0
      %788 = vmatpush1.msra.mxu0 0.0
      %789 = vmatprep.subr.mxu0 0.0
      %790 = vmatpush1.msra.mxu0 0.0
      %791 = vmatprep.subr.mxu0 0.0
      %792 = vmatpush1.msra.mxu0 0.0
      %793 = vmatprep.subr.mxu0 0.0
      %794 = vmatpush1.msra.mxu0 0.0
      %795 = vmatprep.subr.mxu0 0.0
      %796 = vmatpush1.msra.mxu0 0.0
      %797 = vmatprep.subr.mxu0 0.0
      %798 = vmatpush1.msra.mxu0 0.0
      %799 = vmatprep.subr.mxu0 0.0
      %800 = vmatpush1.msra.mxu0 0.0
      %801 = vmatprep.subr.mxu0 0.0
      %802 = vmatpush1.msra.mxu0 0.0
      %803 = vmatprep.subr.mxu0 0.0
      %804 = vmatpush1.msra.mxu0 0.0
      %805 = vmatprep.subr.mxu0 0.0
      %806 = vmatpush1.msra.mxu0 0.0
      %807 = vmatprep.subr.mxu0 0.0
      %808 = vmatpush1.msra.mxu0 0.0
      %809 = vmatprep.subr.mxu0 0.0
      %810 = vmatpush1.msra.mxu0 0.0
      %811 = vmatprep.subr.mxu0 0.0
      %812 = vmatpush1.msra.mxu0 0.0
      %813 = vmatprep.subr.mxu0 0.0
      %814 = vmatpush1.msra.mxu0 0.0
      %815 = vmatprep.subr.mxu0 0.0
      %816 = vmatpush1.msra.mxu0 0.0
      %817 = vmatprep.subr.mxu0 0.0
      %818 = vmatpush1.msra.mxu0 0.0
      %819 = vmatprep.subr.mxu0 0.0
      %820 = vmatpush1.msra.mxu0 0.0
      %821 = vmatprep.subr.mxu0 0.0
      %822 = vmatpush1.msra.mxu0 0.0
      %823 = vmatprep.mubr.f32.mxu0 0.0
      %824 = vmatmul.mubr.f32.gmra.mrb[0].mxu0 %v735
      %v825 = vpop.f32.mrb[0].mxu0
      %v826 = vadd.f32 %v731, %v825
      %v827 = vpop.f32.mrb[0].mxu0
      %v828 = vadd.f32 %v731, %v827
      %829 = vdwg.mxu0
      %830 = vmatprep.subr.mxu0 %v702
      %831 = vmatpush1.msra.mxu0 %v701
      %832 = vmatprep.subr.mxu0 %v709
      %833 = vmatpush1.msra.mxu0 %v708
      %834 = vmatprep.subr.mxu0 %v716
      %835 = vmatpush1.msra.mxu0 %v715
      %836 = vmatprep.subr.mxu0 %v748
      %837 = vmatpush1.msra.mxu0 %v745
      %838 = vmatprep.subr.mxu0 0.0
      %839 = vmatpush1.msra.mxu0 0.0
      %840 = vmatprep.subr.mxu0 0.0
      %841 = vmatpush1.msra.mxu0 0.0
      %842 = vmatprep.subr.mxu0 0.0
      %843 = vmatpush1.msra.mxu0 0.0
      %844 = vmatprep.subr.mxu0 0.0
      %845 = vmatpush1.msra.mxu0 0.0
      %846 = vmatprep.subr.mxu0 0.0
      %847 = vmatpush1.msra.mxu0 0.0
      %848 = vmatprep.subr.mxu0 0.0
      %849 = vmatpush1.msra.mxu0 0.0
      %850 = vmatprep.subr.mxu0 0.0
      %851 = vmatpush1.msra.mxu0 0.0
      %852 = vmatprep.subr.mxu0 0.0
      %853 = vmatpush1.msra.mxu0 0.0
      %854 = vmatprep.subr.mxu0 0.0
      %855 = vmatpush1.msra.mxu0 0.0
      %856 = vmatprep.subr.mxu0 0.0
      %857 = vmatpush1.msra.mxu0 0.0
      %858 = vmatprep.subr.mxu0 0.0
      %859 = vmatpush1.msra.mxu0 0.0
      %860 = vmatprep.subr.mxu0 0.0
      %861 = vmatpush1.msra.mxu0 0.0
      %862 = vmatprep.subr.mxu0 0.0
      %863 = vmatpush1.msra.mxu0 0.0
      %864 = vmatprep.subr.mxu0 0.0
      %865 = vmatpush1.msra.mxu0 0.0
      %866 = vmatprep.subr.mxu0 0.0
      %867 = vmatpush1.msra.mxu0 0.0
      %868 = vmatprep.subr.mxu0 0.0
      %869 = vmatpush1.msra.mxu0 0.0
      %870 = vmatprep.subr.mxu0 0.0
      %871 = vmatpush1.msra.mxu0 0.0
      %872 = vmatprep.subr.mxu0 0.0
      %873 = vmatpush1.msra.mxu0 0.0
      %874 = vmatprep.subr.mxu0 0.0
      %875 = vmatpush1.msra.mxu0 0.0
      %876 = vmatprep.subr.mxu0 0.0
      %877 = vmatpush1.msra.mxu0 0.0
      %878 = vmatprep.subr.mxu0 0.0
      %879 = vmatpush1.msra.mxu0 0.0
      %880 = vmatprep.subr.mxu0 0.0
      %881 = vmatpush1.msra.mxu0 0.0
      %882 = vmatprep.subr.mxu0 0.0
      %883 = vmatpush1.msra.mxu0 0.0
      %884 = vmatprep.subr.mxu0 0.0
      %885 = vmatpush1.msra.mxu0 0.0
      %886 = vmatprep.subr.mxu0 0.0
      %887 = vmatpush1.msra.mxu0 0.0
      %888 = vmatprep.subr.mxu0 0.0
      %889 = vmatpush1.msra.mxu0 0.0
      %890 = vmatprep.subr.mxu0 0.0
      %891 = vmatpush1.msra.mxu0 0.0
      %892 = vmatprep.subr.mxu0 0.0
      %893 = vmatpush1.msra.mxu0 0.0
      %894 = vmatprep.mubr.f32.mxu0 0.0
      %895 = vmatmul.mubr.f32.gmra.mrb[0].mxu0 %v735
      %v896 = vpop.f32.mrb[0].mxu0
      %v897 = vadd.f32 %v731, %v896
      %v898 = vpop.f32.mrb[0].mxu0
      %v899 = vadd.f32 %v731, %v898
      %900 = vdwg.mxu0
      %901 = vmatprep.subr.mxu0 %v704
      %902 = vmatpush1.msra.mxu0 %v703
      %903 = vmatprep.subr.mxu0 %v711
      %904 = vmatpush1.msra.mxu0 %v710
      %905 = vmatprep.subr.mxu0 %v718
      %906 = vmatpush1.msra.mxu0 %v717
      %907 = vmatprep.subr.mxu0 %v754
      %908 = vmatpush1.msra.mxu0 %v751
      %909 = vmatprep.subr.mxu0 0.0
      %910 = vmatpush1.msra.mxu0 0.0
      %911 = vmatprep.subr.mxu0 0.0
      %912 = vmatpush1.msra.mxu0 0.0
      %913 = vmatprep.subr.mxu0 0.0
      %914 = vmatpush1.msra.mxu0 0.0
      %915 = vmatprep.subr.mxu0 0.0
      %916 = vmatpush1.msra.mxu0 0.0
      %917 = vmatprep.subr.mxu0 0.0
      %918 = vmatpush1.msra.mxu0 0.0
      %919 = vmatprep.subr.mxu0 0.0
      %920 = vmatpush1.msra.mxu0 0.0
      %921 = vmatprep.subr.mxu0 0.0
      %922 = vmatpush1.msra.mxu0 0.0
      %923 = vmatprep.subr.mxu0 0.0
      %924 = vmatpush1.msra.mxu0 0.0
      %925 = vmatprep.subr.mxu0 0.0
      %926 = vmatpush1.msra.mxu0 0.0
      %927 = vmatprep.subr.mxu0 0.0
      %928 = vmatpush1.msra.mxu0 0.0
      %929 = vmatprep.subr.mxu0 0.0
      %930 = vmatpush1.msra.mxu0 0.0
      %931 = vmatprep.subr.mxu0 0.0
      %932 = vmatpush1.msra.mxu0 0.0
      %933 = vmatprep.subr.mxu0 0.0
      %934 = vmatpush1.msra.mxu0 0.0
      %935 = vmatprep.subr.mxu0 0.0
      %936 = vmatpush1.msra.mxu0 0.0
      %937 = vmatprep.subr.mxu0 0.0
      %938 = vmatpush1.msra.mxu0 0.0
      %939 = vmatprep.subr.mxu0 0.0
      %940 = vmatpush1.msra.mxu0 0.0
      %941 = vmatprep.subr.mxu0 0.0
      %942 = vmatpush1.msra.mxu0 0.0
      %943 = vmatprep.subr.mxu0 0.0
      %944 = vmatpush1.msra.mxu0 0.0
      %945 = vmatprep.subr.mxu0 0.0
      %946 = vmatpush1.msra.mxu0 0.0
      %947 = vmatprep.subr.mxu0 0.0
      %948 = vmatpush1.msra.mxu0 0.0
      %949 = vmatprep.subr.mxu0 0.0
      %950 = vmatpush1.msra.mxu0 0.0
      %951 = vmatprep.subr.mxu0 0.0
      %952 = vmatpush1.msra.mxu0 0.0
      %953 = vmatprep.subr.mxu0 0.0
      %954 = vmatpush1.msra.mxu0 0.0
      %955 = vmatprep.subr.mxu0 0.0
      %956 = vmatpush1.msra.mxu0 0.0
      %957 = vmatprep.subr.mxu0 0.0
      %958 = vmatpush1.msra.mxu0 0.0
      %959 = vmatprep.subr.mxu0 0.0
      %960 = vmatpush1.msra.mxu0 0.0
      %961 = vmatprep.subr.mxu0 0.0
      %962 = vmatpush1.msra.mxu0 0.0
      %963 = vmatprep.subr.mxu0 0.0
      %964 = vmatpush1.msra.mxu0 0.0
      %965 = vmatprep.mubr.f32.mxu0 0.0
      %966 = vmatmul.mubr.f32.gmra.mrb[0].mxu0 %v735
      %v967 = vpop.f32.mrb[0].mxu0
      %v968 = vadd.f32 %v731, %v967
      %v969 = vpop.f32.mrb[0].mxu0
      %v970 = vadd.f32 %v731, %v969
      %971 = vdwg.mxu0
      %972 = vmatprep.subr.mxu0 0.0
      %973 = vmatpush1.msra.mxu0 %v705
      %974 = vmatprep.subr.mxu0 0.0
      %975 = vmatpush1.msra.mxu0 %v712
      %976 = vmatprep.subr.mxu0 0.0
      %977 = vmatpush1.msra.mxu0 %v719
      %978 = vmatprep.subr.mxu0 0.0
      %979 = vmatpush1.msra.mxu0 %v757
      %980 = vmatprep.subr.mxu0 0.0
      %981 = vmatpush1.msra.mxu0 0.0
      %982 = vmatprep.subr.mxu0 0.0
      %983 = vmatpush1.msra.mxu0 0.0
      %984 = vmatprep.subr.mxu0 0.0
      %985 = vmatpush1.msra.mxu0 0.0
      %986 = vmatprep.subr.mxu0 0.0
      %987 = vmatpush1.msra.mxu0 0.0
      %988 = vmatprep.subr.mxu0 0.0
      %989 = vmatpush1.msra.mxu0 0.0
      %990 = vmatprep.subr.mxu0 0.0
      %991 = vmatpush1.msra.mxu0 0.0
      %992 = vmatprep.subr.mxu0 0.0
      %993 = vmatpush1.msra.mxu0 0.0
      %994 = vmatprep.subr.mxu0 0.0
      %995 = vmatpush1.msra.mxu0 0.0
      %996 = vmatprep.subr.mxu0 0.0
      %997 = vmatpush1.msra.mxu0 0.0
      %998 = vmatprep.subr.mxu0 0.0
      %999 = vmatpush1.msra.mxu0 0.0
      %1000 = vmatprep.subr.mxu0 0.0
      %1001 = vmatpush1.msra.mxu0 0.0
      %1002 = vmatprep.subr.mxu0 0.0
      %1003 = vmatpush1.msra.mxu0 0.0
      %1004 = vmatprep.subr.mxu0 0.0
      %1005 = vmatpush1.msra.mxu0 0.0
      %1006 = vmatprep.subr.mxu0 0.0
      %1007 = vmatpush1.msra.mxu0 0.0
      %1008 = vmatprep.subr.mxu0 0.0
      %1009 = vmatpush1.msra.mxu0 0.0
      %1010 = vmatprep.subr.mxu0 0.0
      %1011 = vmatpush1.msra.mxu0 0.0
      %1012 = vmatprep.subr.mxu0 0.0
      %1013 = vmatpush1.msra.mxu0 0.0
      %1014 = vmatprep.subr.mxu0 0.0
      %1015 = vmatpush1.msra.mxu0 0.0
      %1016 = vmatprep.subr.mxu0 0.0
      %1017 = vmatpush1.msra.mxu0 0.0
      %1018 = vmatprep.subr.mxu0 0.0
      %1019 = vmatpush1.msra.mxu0 0.0
      %1020 = vmatprep.subr.mxu0 0.0
      %1021 = vmatpush1.msra.mxu0 0.0
      %1022 = vmatprep.subr.mxu0 0.0
      %1023 = vmatpush1.msra.mxu0 0.0
      %1024 = vmatprep.subr.mxu0 0.0
      %1025 = vmatpush1.msra.mxu0 0.0
      %1026 = vmatprep.subr.mxu0 0.0
      %1027 = vmatpush1.msra.mxu0 0.0
      %1028 = vmatprep.subr.mxu0 0.0
      %1029 = vmatpush1.msra.mxu0 0.0
      %1030 = vmatprep.subr.mxu0 0.0
      %1031 = vmatpush1.msra.mxu0 0.0
      %1032 = vmatprep.subr.mxu0 0.0
      %1033 = vmatpush1.msra.mxu0 0.0
      %1034 = vmatprep.subr.mxu0 0.0
      %1035 = vmatpush1.msra.mxu0 0.0
      %1036 = vmatprep.mubr.f32.mxu0 0.0
      %1037 = vmatmul.mubr.f32.gmra.mrb[0].mxu0 %v735
      %v1038 = vpop.f32.mrb[0].mxu0
      %v1039 = vadd.f32 %v731, %v1038
      %v1040 = vpop.f32.mrb[0].mxu0
      %1041 = vdwg.mxu0
      %v1042 = vtanh.pop %v826
      %v1043 = vtanh.pop %v828
      %v1044 = vtanh.pop %v897
      %v1045 = vtanh.pop %v899
      %v1046 = vtanh.pop %v968
      %v1047 = vtanh.pop %v970
      %v1048 = vtanh.pop %v1039
      %v1049 = vld [vmem:[%s3] sm:$0xff]
      %v1050 = vld [vmem:[%s3 + $0x8] sm:$0xff]
      %v1051 = vld [vmem:[%s3 + $0x10] sm:$0xff]
      %v1052 = vld [vmem:[%s3 + $0x18] sm:$0xff]
      %v1053 = vld [vmem:[%s3 + $0x20] sm:$0xff]
      %v1054 = vld [vmem:[%s3 + $0x28] sm:$0xff]
      %v1055 = vld [vmem:[%s3 + $0x30] sm:$0xff]
      %v1056 = vld [vmem:[%s3 + $0x38] sm:$0xff]
      %v1057 = vld [vmem:[%s3 + $0x40] sm:$0xff]
      %v1058 = vld [vmem:[%s3 + $0x48] sm:$0xff]
      %v1059 = vld [vmem:[%s3 + $0x50] sm:$0xff]
      %v1060 = vld [vmem:[%s3 + $0x58] sm:$0xff]
      %v1061 = vld [vmem:[%s3 + $0x60] sm:$0xff]
      %v1062 = vld [vmem:[%s3 + $0x68] sm:$0xff]
      %v1063 = vld [vmem:[%s3 + $0x70] sm:$0xff]
      %v1064 = vld [vmem:[%s3 + $0x78] sm:$0xff]
      %v1065 = vld [vmem:[%s3 + $0x80] sm:$0xff]
      %v1066 = vld [vmem:[%s3 + $0x88] sm:$0xff]
      %v1067 = vld [vmem:[%s3 + $0x90] sm:$0xff]
      %v1068 = vld [vmem:[%s3 + $0x98] sm:$0xff]
      %v1069 = vld [vmem:[%s3 + $0xa0] sm:$0xff]
      %v1070 = vld [vmem:[%s3 + $0xa8] sm:$0xff]
      %v1071 = vld [vmem:[%s3 + $0xb0] sm:$0xff]
      %v1072 = vld [vmem:[%s3 + $0xb8] sm:$0xff]
      %v1073 = vld [vmem:[%s3 + $0xc0] sm:$0xff]
      %v1074 = vld [vmem:[%s3 + $0xc8] sm:$0xff]
      %v1075 = vld [vmem:[%s3 + $0xd0] sm:$0xff]
      %v1076 = vld [vmem:[%s3 + $0xd8] sm:$0xff]
      %v1077 = vld [vmem:[%s3 + $0xe0] sm:$0xff]
      %v1078 = vld [vmem:[%s3 + $0xe8] sm:$0xff]
      %v1079 = vld [vmem:[%s3 + $0xf0] sm:$0xff]
      %v1080 = vld [vmem:[%s3 + $0xf8] sm:$0xff]
      %v1081 = vld [vmem:[%s3 + $0x100] sm:$0xff]
      %v1082 = vld [vmem:[%s3 + $0x108] sm:$0xff]
      %v1083 = vld [vmem:[%s3 + $0x110] sm:$0xff]
      %v1084 = vld [vmem:[%s3 + $0x118] sm:$0xff]
      %v1085 = vld [vmem:[%s3 + $0x120] sm:$0xff]
      %v1086 = vld [vmem:[%s3 + $0x128] sm:$0xff]
      %v1087 = vld [vmem:[%s3 + $0x130] sm:$0xff]
      %v1088 = vld [vmem:[%s3 + $0x138] sm:$0xff]
      %v1089 = vld [vmem:[%s3 + $0x140] sm:$0xff]
      %v1090 = vld [vmem:[%s3 + $0x148] sm:$0xff]
      %v1091 = vld [vmem:[%s3 + $0x150] sm:$0xff]
      %v1092 = vld [vmem:[%s3 + $0x158] sm:$0xff]
      %v1093 = vld [vmem:[%s3 + $0x160] sm:$0xff]
      %v1094 = vld [vmem:[%s3 + $0x168] sm:$0xff]
      %v1095 = vld [vmem:[%s3 + $0x170] sm:$0xff]
      %v1096 = vld [vmem:[%s3 + $0x178] sm:$0xff]
      %v1097 = vld [vmem:[%s3 + $0x180] sm:$0xff]
      %v1098 = vld [vmem:[%s3 + $0x188] sm:$0xff]
      %v1099 = vld [vmem:[%s3 + $0x190] sm:$0xff]
      %v1100 = vld [vmem:[%s3 + $0x198] sm:$0xff]
      %v1101 = vld [vmem:[%s3 + $0x1a0] sm:$0xff]
      %v1102 = vld [vmem:[%s3 + $0x1a8] sm:$0xff]
      %v1103 = vld [vmem:[%s3 + $0x1b0] sm:$0xff]
      %v1104 = vld [vmem:[%s3 + $0x1b8] sm:$0xff]
      %v1105 = vld [vmem:[%s3 + $0x1c0] sm:$0xff]
      %v1106 = vld [vmem:[%s3 + $0x1c8] sm:$0xff]
      %v1107 = vld [vmem:[%s3 + $0x1d0] sm:$0xff]
      %v1108 = vld [vmem:[%s3 + $0x1d8] sm:$0xff]
      %v1109 = vld [vmem:[%s3 + $0x1e0] sm:$0xff]
      %v1110 = vld [vmem:[%s3 + $0x1e8] sm:$0xff]
      %v1111 = vld [vmem:[%s3 + $0x1f0] sm:$0xff]
      %v1112 = vld [vmem:[%s3 + $0x1f8] sm:$0xff]
      %v1113 = vld [vmem:[%s3 + $0x200] sm:$0xff]
      %v1114 = vld [vmem:[%s3 + $0x208] sm:$0xff]
      %v1115 = vld [vmem:[%s3 + $0x210] sm:$0xff]
      %v1116 = vld [vmem:[%s3 + $0x218] sm:$0xff]
      %v1117 = vld [vmem:[%s3 + $0x220] sm:$0xff]
      %v1118 = vld [vmem:[%s3 + $0x228] sm:$0xff]
      %v1119 = vld [vmem:[%s3 + $0x230] sm:$0xff]
      %v1120 = vld [vmem:[%s3 + $0x238] sm:$0xff]
      %v1121 = vld [vmem:[%s3 + $0x240] sm:$0xff]
      %v1122 = vld [vmem:[%s3 + $0x248] sm:$0xff]
      %v1123 = vld [vmem:[%s3 + $0x250] sm:$0xff]
      %v1124 = vld [vmem:[%s3 + $0x258] sm:$0xff]
      %v1125 = vld [vmem:[%s3 + $0x260] sm:$0xff]
      %v1126 = vld [vmem:[%s3 + $0x268] sm:$0xff]
      %v1127 = vld [vmem:[%s3 + $0x270] sm:$0xff]
      %v1128 = vld [vmem:[%s3 + $0x278] sm:$0xff]
      %v1129 = vld [vmem:[%s3 + $0x280] sm:$0xff]
      %v1130 = vld [vmem:[%s3 + $0x288] sm:$0xff]
      %v1131 = vld [vmem:[%s3 + $0x290] sm:$0xff]
      %v1132 = vld [vmem:[%s3 + $0x298] sm:$0xff]
      %v1133 = vld [vmem:[%s3 + $0x2a0] sm:$0xff]
      %v1134 = vld [vmem:[%s3 + $0x2a8] sm:$0xff]
      %v1135 = vld [vmem:[%s3 + $0x2b0] sm:$0xff]
      %v1136 = vld [vmem:[%s3 + $0x2b8] sm:$0xff]
      %v1137 = vld [vmem:[%s3 + $0x2c0] sm:$0xff]
      %v1138 = vld [vmem:[%s3 + $0x2c8] sm:$0xff]
      %v1139 = vld [vmem:[%s3 + $0x2d0] sm:$0xff]
      %v1140 = vld [vmem:[%s3 + $0x2d8] sm:$0xff]
      %v1141 = vld [vmem:[%s3 + $0x2e0] sm:$0xff]
      %v1142 = vld [vmem:[%s3 + $0x2e8] sm:$0xff]
      %v1143 = vld [vmem:[%s3 + $0x2f0] sm:$0xff]
      %v1144 = vld [vmem:[%s3 + $0x2f8] sm:$0xff]
      %v1145 = vld [vmem:[%s3 + $0x300] sm:$0xff]
      %v1146 = vld [vmem:[%s3 + $0x308] sm:$0xff]
      %v1147 = vld [vmem:[%s3 + $0x310] sm:$0xff]
      %v1148 = vld [vmem:[%s3 + $0x318] sm:$0xff]
      %v1149 = vld [vmem:[%s3 + $0x320] sm:$0xff]
      %v1150 = vld [vmem:[%s3 + $0x328] sm:$0xff]
      %v1151 = vld [vmem:[%s3 + $0x330] sm:$0xff]
      %v1152 = vld [vmem:[%s3 + $0x338] sm:$0xff]
      %v1153 = vld [vmem:[%s3 + $0x340] sm:$0xff]
      %v1154 = vld [vmem:[%s3 + $0x348] sm:$0xff]
      %v1155 = vld [vmem:[%s3 + $0x350] sm:$0xff]
      %v1156 = vld [vmem:[%s3 + $0x358] sm:$0xff]
      %v1157 = vld [vmem:[%s3 + $0x360] sm:$0xff]
      %v1158 = vld [vmem:[%s3 + $0x368] sm:$0xff]
      %v1159 = vld [vmem:[%s3 + $0x370] sm:$0xff]
      %v1160 = vld [vmem:[%s3 + $0x378] sm:$0xff]
      %v1161 = vld [vmem:[%s3 + $0x380] sm:$0xff]
      %v1162 = vld [vmem:[%s3 + $0x388] sm:$0xff]
      %v1163 = vld [vmem:[%s3 + $0x390] sm:$0xff]
      %v1164 = vld [vmem:[%s3 + $0x398] sm:$0xff]
      %v1165 = vld [vmem:[%s3 + $0x3a0] sm:$0xff]
      %v1166 = vld [vmem:[%s3 + $0x3a8] sm:$0xff]
      %v1167 = vld [vmem:[%s3 + $0x3b0] sm:$0xff]
      %v1168 = vld [vmem:[%s3 + $0x3b8] sm:$0xff]
      %v1169 = vld [vmem:[%s3 + $0x3c0] sm:$0xff]
      %v1170 = vld [vmem:[%s3 + $0x3c8] sm:$0xff]
      %v1171 = vld [vmem:[%s3 + $0x3d0] sm:$0xff]
      %v1172 = vld [vmem:[%s3 + $0x3d8] sm:$0xff]
      %v1173 = vld [vmem:[%s3 + $0x3e0] sm:$0xff]
      %v1174 = vld [vmem:[%s3 + $0x3e8] sm:$0xff]
      %v1175 = vld [vmem:[%s3 + $0x3f0] sm:$0xff]
      %v1176 = vld [vmem:[%s3 + $0x3f8] sm:$0xff]
      %v1177 = vld [vmem:[%s3 + $0x400] sm:$0xff]
      %v1178 = vld [vmem:[%s3 + $0x408] sm:$0xff]
      %v1179 = vld [vmem:[%s3 + $0x410] sm:$0xff]
      %v1180 = vld [vmem:[%s3 + $0x418] sm:$0xff]
      %v1181 = vld [vmem:[%s3 + $0x420] sm:$0xff]
      %v1182 = vld [vmem:[%s3 + $0x428] sm:$0xff]
      %v1183 = vld [vmem:[%s3 + $0x430] sm:$0xff]
      %v1184 = vld [vmem:[%s3 + $0x438] sm:$0xff]
      %v1185 = vld [vmem:[%s3 + $0x440] sm:$0xff]
      %v1186 = vld [vmem:[%s3 + $0x448] sm:$0xff]
      %v1187 = vld [vmem:[%s3 + $0x450] sm:$0xff]
      %v1188 = vld [vmem:[%s3 + $0x458] sm:$0xff]
      %v1189 = vld [vmem:[%s3 + $0x460] sm:$0xff]
      %v1190 = vld [vmem:[%s3 + $0x468] sm:$0xff]
      %v1191 = vld [vmem:[%s3 + $0x470] sm:$0xff]
      %v1192 = vld [vmem:[%s3 + $0x478] sm:$0xff]
      %v1193 = vld [vmem:[%s3 + $0x480] sm:$0xff]
      %v1194 = vld [vmem:[%s3 + $0x488] sm:$0xff]
      %v1195 = vld [vmem:[%s3 + $0x490] sm:$0xff]
      %v1196 = vld [vmem:[%s3 + $0x498] sm:$0xff]
      %v1197 = vld [vmem:[%s3 + $0x4a0] sm:$0xff]
      %v1198 = vld [vmem:[%s3 + $0x4a8] sm:$0xff]
      %v1199 = vld [vmem:[%s3 + $0x4b0] sm:$0xff]
      %v1200 = vld [vmem:[%s3 + $0x4b8] sm:$0xff]
      %v1201 = vld [vmem:[%s3 + $0x4c0] sm:$0xff]
      %v1202 = vld [vmem:[%s3 + $0x4c8] sm:$0xff]
      %v1203 = vld [vmem:[%s3 + $0x4d0] sm:$0xff]
      %v1204 = vld [vmem:[%s3 + $0x4d8] sm:$0xff]
      %v1205 = vld [vmem:[%s3 + $0x4e0] sm:$0xff]
      %v1206 = vld [vmem:[%s3 + $0x4e8] sm:$0xff]
      %v1207 = vld [vmem:[%s3 + $0x4f0] sm:$0xff]
      %v1208 = vld [vmem:[%s3 + $0x4f8] sm:$0xff]
      %v1209 = vld [vmem:[%s3 + $0x500] sm:$0xff]
      %v1210 = vld [vmem:[%s3 + $0x508] sm:$0xff]
      %v1211 = vld [vmem:[%s3 + $0x510] sm:$0xff]
      %v1212 = vld [vmem:[%s3 + $0x518] sm:$0xff]
      %v1213 = vld [vmem:[%s3 + $0x520] sm:$0xff]
      %v1214 = vld [vmem:[%s3 + $0x528] sm:$0xff]
      %v1215 = vld [vmem:[%s3 + $0x530] sm:$0xff]
      %v1216 = vld [vmem:[%s3 + $0x538] sm:$0xff]
      %v1217 = vld [vmem:[%s3 + $0x540] sm:$0xff]
      %v1218 = vld [vmem:[%s3 + $0x548] sm:$0xff]
      %v1219 = vld [vmem:[%s3 + $0x550] sm:$0xff]
      %v1220 = vld [vmem:[%s3 + $0x558] sm:$0xff]
      %v1221 = vld [vmem:[%s3 + $0x560] sm:$0xff]
      %v1222 = vld [vmem:[%s3 + $0x568] sm:$0xff]
      %v1223 = vld [vmem:[%s3 + $0x570] sm:$0xff]
      %v1224 = vld [vmem:[%s3 + $0x578] sm:$0xff]
      %v1225 = vld [vmem:[%s3 + $0x580] sm:$0xff]
      %v1226 = vld [vmem:[%s3 + $0x588] sm:$0xff]
      %v1227 = vld [vmem:[%s3 + $0x590] sm:$0xff]
      %v1228 = vld [vmem:[%s3 + $0x598] sm:$0xff]
      %v1229 = vld [vmem:[%s3 + $0x5a0] sm:$0xff]
      %v1230 = vld [vmem:[%s3 + $0x5a8] sm:$0xff]
      %v1231 = vld [vmem:[%s3 + $0x5b0] sm:$0xff]
      %v1232 = vld [vmem:[%s3 + $0x5b8] sm:$0xff]
      %v1233 = vld [vmem:[%s3 + $0x5c0] sm:$0xff]
      %v1234 = vld [vmem:[%s3 + $0x5c8] sm:$0xff]
      %v1235 = vld [vmem:[%s3 + $0x5d0] sm:$0xff]
      %v1236 = vld [vmem:[%s3 + $0x5d8] sm:$0xff]
      %v1237 = vld [vmem:[%s3 + $0x5e0] sm:$0xff]
      %v1238 = vld [vmem:[%s3 + $0x5e8] sm:$0xff]
      %v1239 = vld [vmem:[%s3 + $0x5f0] sm:$0xff]
      %v1240 = vld [vmem:[%s3 + $0x5f8] sm:$0xff]
      %v1241 = vld [vmem:[%s3 + $0x600] sm:$0xff]
      %v1242 = vld [vmem:[%s3 + $0x608] sm:$0xff]
      %v1243 = vld [vmem:[%s3 + $0x610] sm:$0xff]
      %v1244 = vld [vmem:[%s3 + $0x618] sm:$0xff]
      %v1245 = vld [vmem:[%s3 + $0x620] sm:$0xff]
      %v1246 = vld [vmem:[%s3 + $0x628] sm:$0xff]
      %v1247 = vld [vmem:[%s3 + $0x630] sm:$0xff]
      %v1248 = vld [vmem:[%s3 + $0x638] sm:$0xff]
      %v1249 = vld [vmem:[%s3 + $0x640] sm:$0xff]
      %v1250 = vld [vmem:[%s3 + $0x648] sm:$0xff]
      %v1251 = vld [vmem:[%s3 + $0x650] sm:$0xff]
      %v1252 = vld [vmem:[%s3 + $0x658] sm:$0xff]
      %v1253 = vld [vmem:[%s3 + $0x660] sm:$0xff]
      %v1254 = vld [vmem:[%s3 + $0x668] sm:$0xff]
      %v1255 = vld [vmem:[%s3 + $0x670] sm:$0xff]
      %v1256 = vld [vmem:[%s3 + $0x678] sm:$0xff]
      %v1257 = vld [vmem:[%s3 + $0x680] sm:$0xff]
      %v1258 = vld [vmem:[%s3 + $0x688] sm:$0xff]
      %v1259 = vld [vmem:[%s3 + $0x690] sm:$0xff]
      %v1260 = vld [vmem:[%s3 + $0x698] sm:$0xff]
      %v1261 = vld [vmem:[%s3 + $0x6a0] sm:$0xff]
      %v1262 = vld [vmem:[%s3 + $0x6a8] sm:$0xff]
      %v1263 = vld [vmem:[%s3 + $0x6b0] sm:$0xff]
      %v1264 = vld [vmem:[%s3 + $0x6b8] sm:$0xff]
      %v1265 = vld [vmem:[%s3 + $0x6c0] sm:$0xff]
      %v1266 = vld [vmem:[%s3 + $0x6c8] sm:$0xff]
      %v1267 = vld [vmem:[%s3 + $0x6d0] sm:$0xff]
      %v1268 = vld [vmem:[%s3 + $0x6d8] sm:$0xff]
      %v1269 = vld [vmem:[%s3 + $0x6e0] sm:$0xff]
      %v1270 = vld [vmem:[%s3 + $0x6e8] sm:$0xff]
      %v1271 = vld [vmem:[%s3 + $0x6f0] sm:$0xff]
      %v1272 = vld [vmem:[%s3 + $0x6f8] sm:$0xff]
      %1273 = vmatprep.subr.mxu0 %v1050
      %1274 = vmatpush1.msra.mxu0 %v1049
      %1275 = vmatprep.subr.mxu0 %v1052
      %1276 = vmatpush1.msra.mxu0 %v1051
      %1277 = vmatprep.subr.mxu0 %v1054
      %1278 = vmatpush1.msra.mxu0 %v1053
      %1279 = vmatprep.subr.mxu0 %v1056
      %1280 = vmatpush1.msra.mxu0 %v1055
      %1281 = vmatprep.subr.mxu0 %v1058
      %1282 = vmatpush1.msra.mxu0 %v1057
      %1283 = vmatprep.subr.mxu0 %v1060
      %1284 = vmatpush1.msra.mxu0 %v1059
      %1285 = vmatprep.subr.mxu0 %v1062
      %1286 = vmatpush1.msra.mxu0 %v1061
      %1287 = vmatprep.subr.mxu0 %v1064
      %1288 = vmatpush1.msra.mxu0 %v1063
      %1289 = vmatprep.subr.mxu0 %v1066
      %1290 = vmatpush1.msra.mxu0 %v1065
      %1291 = vmatprep.subr.mxu0 %v1068
      %1292 = vmatpush1.msra.mxu0 %v1067
      %1293 = vmatprep.subr.mxu0 %v1070
      %1294 = vmatpush1.msra.mxu0 %v1069
      %1295 = vmatprep.subr.mxu0 %v1072
      %1296 = vmatpush1.msra.mxu0 %v1071
      %1297 = vmatprep.subr.mxu0 %v1074
      %1298 = vmatpush1.msra.mxu0 %v1073
      %1299 = vmatprep.subr.mxu0 %v1076
      %1300 = vmatpush1.msra.mxu0 %v1075
      %1301 = vmatprep.subr.mxu0 %v1078
      %1302 = vmatpush1.msra.mxu0 %v1077
      %1303 = vmatprep.subr.mxu0 %v1080
      %1304 = vmatpush1.msra.mxu0 %v1079
      %1305 = vmatprep.subr.mxu0 %v1082
      %1306 = vmatpush1.msra.mxu0 %v1081
      %1307 = vmatprep.subr.mxu0 %v1084
      %1308 = vmatpush1.msra.mxu0 %v1083
      %1309 = vmatprep.subr.mxu0 %v1086
      %1310 = vmatpush1.msra.mxu0 %v1085
      %1311 = vmatprep.subr.mxu0 %v1088
      %1312 = vmatpush1.msra.mxu0 %v1087
      %1313 = vmatprep.subr.mxu0 %v1090
      %1314 = vmatpush1.msra.mxu0 %v1089
      %1315 = vmatprep.subr.mxu0 %v1092
      %1316 = vmatpush1.msra.mxu0 %v1091
      %1317 = vmatprep.subr.mxu0 %v1094
      %1318 = vmatpush1.msra.mxu0 %v1093
      %1319 = vmatprep.subr.mxu0 %v1096
      %1320 = vmatpush1.msra.mxu0 %v1095
      %1321 = vmatprep.subr.mxu0 %v1098
      %1322 = vmatpush1.msra.mxu0 %v1097
      %1323 = vmatprep.subr.mxu0 %v1100
      %1324 = vmatpush1.msra.mxu0 %v1099
      %1325 = vmatprep.subr.mxu0 %v1102
      %1326 = vmatpush1.msra.mxu0 %v1101
      %1327 = vmatprep.subr.mxu0 %v1104
      %1328 = vmatpush1.msra.mxu0 %v1103
      %1329 = vmatprep.subr.mxu0 %v1106
      %1330 = vmatpush1.msra.mxu0 %v1105
      %1331 = vmatprep.subr.mxu0 %v1108
      %1332 = vmatpush1.msra.mxu0 %v1107
      %1333 = vmatprep.subr.mxu0 %v1110
      %1334 = vmatpush1.msra.mxu0 %v1109
      %1335 = vmatprep.subr.mxu0 %v1112
      %1336 = vmatpush1.msra.mxu0 %v1111
      %1337 = vmatprep.mubr.f32.mxu0 %v1043
      %1338 = vmatmul.mubr.f32.gmra.mrb[0].mxu0 %v1042
      %v1339 = vpop.f32.mrb[0].mxu0
      %v1340 = vadd.f32 0.0, %v1339
      %v1341 = vpop.f32.mrb[0].mxu0
      %v1342 = vadd.f32 0.0, %v1341
      %1343 = vdwg.mxu0
      %1344 = vmatprep.subr.mxu0 %v1114
      %1345 = vmatpush1.msra.mxu0 %v1113
      %1346 = vmatprep.subr.mxu0 %v1116
      %1347 = vmatpush1.msra.mxu0 %v1115
      %1348 = vmatprep.subr.mxu0 %v1118
      %1349 = vmatpush1.msra.mxu0 %v1117
      %1350 = vmatprep.subr.mxu0 %v1120
      %1351 = vmatpush1.msra.mxu0 %v1119
      %1352 = vmatprep.subr.mxu0 %v1122
      %1353 = vmatpush1.msra.mxu0 %v1121
      %1354 = vmatprep.subr.mxu0 %v1124
      %1355 = vmatpush1.msra.mxu0 %v1123
      %1356 = vmatprep.subr.mxu0 %v1126
      %1357 = vmatpush1.msra.mxu0 %v1125
      %1358 = vmatprep.subr.mxu0 %v1128
      %1359 = vmatpush1.msra.mxu0 %v1127
      %1360 = vmatprep.subr.mxu0 %v1130
      %1361 = vmatpush1.msra.mxu0 %v1129
      %1362 = vmatprep.subr.mxu0 %v1132
      %1363 = vmatpush1.msra.mxu0 %v1131
      %1364 = vmatprep.subr.mxu0 %v1134
      %1365 = vmatpush1.msra.mxu0 %v1133
      %1366 = vmatprep.subr.mxu0 %v1136
      %1367 = vmatpush1.msra.mxu0 %v1135
      %1368 = vmatprep.subr.mxu0 %v1138
      %1369 = vmatpush1.msra.mxu0 %v1137
      %1370 = vmatprep.subr.mxu0 %v1140
      %1371 = vmatpush1.msra.mxu0 %v1139
      %1372 = vmatprep.subr.mxu0 %v1142
      %1373 = vmatpush1.msra.mxu0 %v1141
      %1374 = vmatprep.subr.mxu0 %v1144
      %1375 = vmatpush1.msra.mxu0 %v1143
      %1376 = vmatprep.subr.mxu0 %v1146
      %1377 = vmatpush1.msra.mxu0 %v1145
      %1378 = vmatprep.subr.mxu0 %v1148
      %1379 = vmatpush1.msra.mxu0 %v1147
      %1380 = vmatprep.subr.mxu0 %v1150
      %1381 = vmatpush1.msra.mxu0 %v1149
      %1382 = vmatprep.subr.mxu0 %v1152
      %1383 = vmatpush1.msra.mxu0 %v1151
      %1384 = vmatprep.subr.mxu0 %v1154
      %1385 = vmatpush1.msra.mxu0 %v1153
      %1386 = vmatprep.subr.mxu0 %v1156
      %1387 = vmatpush1.msra.mxu0 %v1155
      %1388 = vmatprep.subr.mxu0 %v1158
      %1389 = vmatpush1.msra.mxu0 %v1157
      %1390 = vmatprep.subr.mxu0 %v1160
      %1391 = vmatpush1.msra.mxu0 %v1159
      %1392 = vmatprep.subr.mxu0 %v1162
      %1393 = vmatpush1.msra.mxu0 %v1161
      %1394 = vmatprep.subr.mxu0 %v1164
      %1395 = vmatpush1.msra.mxu0 %v1163
      %1396 = vmatprep.subr.mxu0 %v1166
      %1397 = vmatpush1.msra.mxu0 %v1165
      %1398 = vmatprep.subr.mxu0 %v1168
      %1399 = vmatpush1.msra.mxu0 %v1167
      %1400 = vmatprep.subr.mxu0 %v1170
      %1401 = vmatpush1.msra.mxu0 %v1169
      %1402 = vmatprep.subr.mxu0 %v1172
      %1403 = vmatpush1.msra.mxu0 %v1171
      %1404 = vmatprep.subr.mxu0 %v1174
      %1405 = vmatpush1.msra.mxu0 %v1173
      %1406 = vmatprep.subr.mxu0 %v1176
      %1407 = vmatpush1.msra.mxu0 %v1175
      %1408 = vmatprep.mubr.f32.mxu0 %v1045
      %1409 = vmatmul.mubr.f32.gmra.mrb[0].mxu0 %v1044
      %v1410 = vpop.f32.mrb[0].mxu0
      %v1411 = vadd.f32 %v1340, %v1410
      %v1412 = vpop.f32.mrb[0].mxu0
      %v1413 = vadd.f32 %v1342, %v1412
      %1414 = vdwg.mxu0
      %1415 = vmatprep.subr.mxu0 %v1178
      %1416 = vmatpush1.msra.mxu0 %v1177
      %1417 = vmatprep.subr.mxu0 %v1180
      %1418 = vmatpush1.msra.mxu0 %v1179
      %1419 = vmatprep.subr.mxu0 %v1182
      %1420 = vmatpush1.msra.mxu0 %v1181
      %1421 = vmatprep.subr.mxu0 %v1184
      %1422 = vmatpush1.msra.mxu0 %v1183
      %1423 = vmatprep.subr.mxu0 %v1186
      %1424 = vmatpush1.msra.mxu0 %v1185
      %1425 = vmatprep.subr.mxu0 %v1188
      %1426 = vmatpush1.msra.mxu0 %v1187
      %1427 = vmatprep.subr.mxu0 %v1190
      %1428 = vmatpush1.msra.mxu0 %v1189
      %1429 = vmatprep.subr.mxu0 %v1192
      %1430 = vmatpush1.msra.mxu0 %v1191
      %1431 = vmatprep.subr.mxu0 %v1194
      %1432 = vmatpush1.msra.mxu0 %v1193
      %1433 = vmatprep.subr.mxu0 %v1196
      %1434 = vmatpush1.msra.mxu0 %v1195
      %1435 = vmatprep.subr.mxu0 %v1198
      %1436 = vmatpush1.msra.mxu0 %v1197
      %1437 = vmatprep.subr.mxu0 %v1200
      %1438 = vmatpush1.msra.mxu0 %v1199
      %1439 = vmatprep.subr.mxu0 %v1202
      %1440 = vmatpush1.msra.mxu0 %v1201
      %1441 = vmatprep.subr.mxu0 %v1204
      %1442 = vmatpush1.msra.mxu0 %v1203
      %1443 = vmatprep.subr.mxu0 %v1206
      %1444 = vmatpush1.msra.mxu0 %v1205
      %1445 = vmatprep.subr.mxu0 %v1208
      %1446 = vmatpush1.msra.mxu0 %v1207
      %1447 = vmatprep.subr.mxu0 %v1210
      %1448 = vmatpush1.msra.mxu0 %v1209
      %1449 = vmatprep.subr.mxu0 %v1212
      %1450 = vmatpush1.msra.mxu0 %v1211
      %1451 = vmatprep.subr.mxu0 %v1214
      %1452 = vmatpush1.msra.mxu0 %v1213
      %1453 = vmatprep.subr.mxu0 %v1216
      %1454 = vmatpush1.msra.mxu0 %v1215
      %1455 = vmatprep.subr.mxu0 %v1218
      %1456 = vmatpush1.msra.mxu0 %v1217
      %1457 = vmatprep.subr.mxu0 %v1220
      %1458 = vmatpush1.msra.mxu0 %v1219
      %1459 = vmatprep.subr.mxu0 %v1222
      %1460 = vmatpush1.msra.mxu0 %v1221
      %1461 = vmatprep.subr.mxu0 %v1224
      %1462 = vmatpush1.msra.mxu0 %v1223
      %1463 = vmatprep.subr.mxu0 %v1226
      %1464 = vmatpush1.msra.mxu0 %v1225
      %1465 = vmatprep.subr.mxu0 %v1228
      %1466 = vmatpush1.msra.mxu0 %v1227
      %1467 = vmatprep.subr.mxu0 %v1230
      %1468 = vmatpush1.msra.mxu0 %v1229
      %1469 = vmatprep.subr.mxu0 %v1232
      %1470 = vmatpush1.msra.mxu0 %v1231
      %1471 = vmatprep.subr.mxu0 %v1234
      %1472 = vmatpush1.msra.mxu0 %v1233
      %1473 = vmatprep.subr.mxu0 %v1236
      %1474 = vmatpush1.msra.mxu0 %v1235
      %1475 = vmatprep.subr.mxu0 %v1238
      %1476 = vmatpush1.msra.mxu0 %v1237
      %1477 = vmatprep.subr.mxu0 %v1240
      %1478 = vmatpush1.msra.mxu0 %v1239
      %1479 = vmatprep.mubr.f32.mxu0 %v1047
      %1480 = vmatmul.mubr.f32.gmra.mrb[0].mxu0 %v1046
      %v1481 = vpop.f32.mrb[0].mxu0
      %v1482 = vadd.f32 %v1411, %v1481
      %v1483 = vpop.f32.mrb[0].mxu0
      %v1484 = vadd.f32 %v1413, %v1483
      %1485 = vdwg.mxu0
      %1486 = vmatprep.subr.mxu0 %v1242
      %1487 = vmatpush1.msra.mxu0 %v1241
      %1488 = vmatprep.subr.mxu0 %v1244
      %1489 = vmatpush1.msra.mxu0 %v1243
      %1490 = vmatprep.subr.mxu0 %v1246
      %1491 = vmatpush1.msra.mxu0 %v1245
      %1492 = vmatprep.subr.mxu0 %v1248
      %1493 = vmatpush1.msra.mxu0 %v1247
      %1494 = vmatprep.subr.mxu0 %v1250
      %1495 = vmatpush1.msra.mxu0 %v1249
      %1496 = vmatprep.subr.mxu0 %v1252
      %1497 = vmatpush1.msra.mxu0 %v1251
      %1498 = vmatprep.subr.mxu0 %v1254
      %1499 = vmatpush1.msra.mxu0 %v1253
      %1500 = vmatprep.subr.mxu0 %v1256
      %1501 = vmatpush1.msra.mxu0 %v1255
      %1502 = vmatprep.subr.mxu0 %v1258
      %1503 = vmatpush1.msra.mxu0 %v1257
      %1504 = vmatprep.subr.mxu0 %v1260
      %1505 = vmatpush1.msra.mxu0 %v1259
      %1506 = vmatprep.subr.mxu0 %v1262
      %1507 = vmatpush1.msra.mxu0 %v1261
      %1508 = vmatprep.subr.mxu0 %v1264
      %1509 = vmatpush1.msra.mxu0 %v1263
      %1510 = vmatprep.subr.mxu0 %v1266
      %1511 = vmatpush1.msra.mxu0 %v1265
      %1512 = vmatprep.subr.mxu0 %v1268
      %1513 = vmatpush1.msra.mxu0 %v1267
      %1514 = vmatprep.subr.mxu0 %v1270
      %1515 = vmatpush1.msra.mxu0 %v1269
      %1516 = vmatprep.subr.mxu0 %v1272
      %1517 = vmatpush1.msra.mxu0 %v1271
      %1518 = vmatprep.subr.mxu0 0.0
      %1519 = vmatpush1.msra.mxu0 0.0
      %1520 = vmatprep.subr.mxu0 0.0
      %1521 = vmatpush1.msra.mxu0 0.0
      %1522 = vmatprep.subr.mxu0 0.0
      %1523 = vmatpush1.msra.mxu0 0.0
      %1524 = vmatprep.subr.mxu0 0.0
      %1525 = vmatpush1.msra.mxu0 0.0
      %1526 = vmatprep.subr.mxu0 0.0
      %1527 = vmatpush1.msra.mxu0 0.0
      %1528 = vmatprep.subr.mxu0 0.0
      %1529 = vmatpush1.msra.mxu0 0.0
      %1530 = vmatprep.subr.mxu0 0.0
      %1531 = vmatpush1.msra.mxu0 0.0
      %1532 = vmatprep.subr.mxu0 0.0
      %1533 = vmatpush1.msra.mxu0 0.0
      %1534 = vmatprep.subr.mxu0 0.0
      %1535 = vmatpush1.msra.mxu0 0.0
      %1536 = vmatprep.subr.mxu0 0.0
      %1537 = vmatpush1.msra.mxu0 0.0
      %1538 = vmatprep.subr.mxu0 0.0
      %1539 = vmatpush1.msra.mxu0 0.0
      %1540 = vmatprep.subr.mxu0 0.0
      %1541 = vmatpush1.msra.mxu0 0.0
      %1542 = vmatprep.subr.mxu0 0.0
      %1543 = vmatpush1.msra.mxu0 0.0
      %1544 = vmatprep.subr.mxu0 0.0
      %1545 = vmatpush1.msra.mxu0 0.0
      %1546 = vmatprep.subr.mxu0 0.0
      %1547 = vmatpush1.msra.mxu0 0.0
      %1548 = vmatprep.subr.mxu0 0.0
      %1549 = vmatpush1.msra.mxu0 0.0
      %1550 = vmatprep.mubr.f32.mxu0 0.0
      %1551 = vmatmul.mubr.f32.gmra.mrb[0].mxu0 %v1048
      %v1552 = vpop.f32.mrb[0].mxu0
      %v1553 = vadd.f32 %v1482, %v1552
      %v1554 = vpop.f32.mrb[0].mxu0
      %v1555 = vadd.f32 %v1484, %v1554
      %1556 = vdwg.mxu0
      %1557 = vst [vmem:[#allocation5] sm:$0x3f] %v1553
      %vm1558 = vcmask 586752
      %1559 = vst.msk [vmem:[#allocation5 + $0x8] sm:$0x3f] %vm1558, %v1555
      %v1560 = vld [vmem:[#allocation5] sm:$0x3f]
      %v1561 = vld [vmem:[#allocation5 + $0x8] sm:$0x3f]
      %1562 = vst [vmem:[#allocation3] sm:$0x3f] %v1560
      %vm1563 = vcmask 95232
      %1564 = vst.msk [vmem:[#allocation3 + $0x8] sm:$0x3f] %vm1563, %v1561
      %v1565 = vld [vmem:[#allocation5] sm:$0x3f]
      %v1566 = vld [vmem:[#allocation5 + $0x8] sm:$0x3f]
      %v1569 = vrot.slane %v1565, 2
      %v1570 = vrot.slane %v1566, 2
      %1571 = vrot.lane.b32.xlu0 %v1569, 127
      %v1572 = vpop.permute.xlu0 %1571
      %1573 = vrot.lane.b32.xlu0 %v1570, 127
      %v1574 = vpop.permute.xlu0 %1573
      %v1575 = vsel %vm450, %v1572, %v1574
      %1578 = vst [vmem:[#allocation3] sm:$0xc0] %v1575
      %vm1579 = vcmask 97286
      %1580 = vst.msk [vmem:[#allocation3 + $0x8] sm:$0xc0] %vm1579, %v1574
      %1581 = vst [vmem:[#allocation3 + $0x10] sm:$0xf] %v1575
      %vm1582 = vcmask 93184
      %1583 = vst.msk [vmem:[#allocation3 + $0x18] sm:$0xf] %vm1582, %v1574
      %v1584 = vld [vmem:[#allocation5] sm:$0x3f]
      %v1585 = vld [vmem:[#allocation5 + $0x8] sm:$0x3f]
      %v1588 = vrot.slane %v1584, 4
      %v1589 = vrot.slane %v1585, 4
      %1590 = vrot.lane.b32.xlu0 %v1588, 126
      %v1591 = vpop.permute.xlu0 %1590
      %1592 = vrot.lane.b32.xlu0 %v1589, 126
      %v1593 = vpop.permute.xlu0 %1592
      %v1594 = vsel %vm461, %v1591, %v1593
      %1597 = vst [vmem:[#allocation3 + $0x10] sm:$0xf0] %v1594
      %vm1598 = vcmask 97284
      %1599 = vst.msk [vmem:[#allocation3 + $0x18] sm:$0xf0] %vm1598, %v1593
      %1600 = vst [vmem:[#allocation3 + $0x20] sm:$0x3] %v1594
      %vm1601 = vcmask 91136
      %1602 = vst.msk [vmem:[#allocation3 + $0x28] sm:$0x3] %vm1601, %v1593
      %v1603 = vld [vmem:[#allocation5] sm:$0x3f]
      %v1604 = vld [vmem:[#allocation5 + $0x8] sm:$0x3f]
      %v1607 = vrot.slane %v1603, 6
      %v1608 = vrot.slane %v1604, 6
      %1609 = vrot.lane.b32.xlu0 %v1607, 125
      %v1610 = vpop.permute.xlu0 %1609
      %1611 = vrot.lane.b32.xlu0 %v1608, 125
      %v1612 = vpop.permute.xlu0 %1611
      %v1613 = vsel %vm472, %v1610, %v1612
      %1616 = vst [vmem:[#allocation3 + $0x20] sm:$0xfc] %v1613
      %vm1617 = vcmask 97282
      %1618 = vst.msk [vmem:[#allocation3 + $0x28] sm:$0xfc] %vm1617, %v1612
      %v1619 = vld [vmem:[#allocation5] sm:$0x3f]
      %v1620 = vld [vmem:[#allocation5 + $0x8] sm:$0x3f]
      %1623 = vrot.lane.b32.xlu0 %v1619, 124
      %v1624 = vpop.permute.xlu0 %1623
      %1625 = vrot.lane.b32.xlu0 %v1620, 124
      %v1626 = vpop.permute.xlu0 %1625
      %v1627 = vsel %vm483, %v1624, %v1626
      %1630 = vst [vmem:[#allocation3 + $0x30] sm:$0x3f] %v1627
      %1631 = vst.msk [vmem:[#allocation3 + $0x38] sm:$0x3f] %vm1563, %v1626
      %v1632 = vld [vmem:[#allocation5] sm:$0x3f]
      %v1633 = vld [vmem:[#allocation5 + $0x8] sm:$0x3f]
      %v1636 = vrot.slane %v1632, 2
      %v1637 = vrot.slane %v1633, 2
      %1638 = vrot.lane.b32.xlu0 %v1636, 114
      %v1639 = vpop.permute.xlu0 %1638
      %1640 = vrot.lane.b32.xlu0 %v1637, 114
      %v1641 = vpop.permute.xlu0 %1640
      %vm1642 = vcmask 932864
      %v1643 = vsel %vm1642, %v1639, %v1641
      %1646 = vst [vmem:[#allocation3 + $0x30] sm:$0xc0] %v1643
      %1647 = vst.msk [vmem:[#allocation3 + $0x38] sm:$0xc0] %vm1579, %v1641
      %1648 = vst [vmem:[#allocation3 + $0x40] sm:$0xf] %v1643
      %1649 = vst.msk [vmem:[#allocation3 + $0x48] sm:$0xf] %vm1582, %v1641
      %v1650 = vld [vmem:[#allocation5] sm:$0x3f]
      %v1651 = vld [vmem:[#allocation5 + $0x8] sm:$0x3f]
      %v1654 = vrot.slane %v1650, 4
      %v1655 = vrot.slane %v1651, 4
      %1656 = vrot.lane.b32.xlu0 %v1654, 113
      %v1657 = vpop.permute.xlu0 %1656
      %1658 = vrot.lane.b32.xlu0 %v1655, 113
      %v1659 = vpop.permute.xlu0 %1658
      %vm1660 = vcmask 924672
      %v1661 = vsel %vm1660, %v1657, %v1659
      %1664 = vst [vmem:[#allocation3 + $0x40] sm:$0xf0] %v1661
      %1665 = vst.msk [vmem:[#allocation3 + $0x48] sm:$0xf0] %vm1598, %v1659
      %1666 = vst [vmem:[#allocation3 + $0x50] sm:$0x3] %v1661
      %1667 = vst.msk [vmem:[#allocation3 + $0x58] sm:$0x3] %vm1601, %v1659
      %v1668 = vld [vmem:[#allocation5] sm:$0x3f]
      %v1669 = vld [vmem:[#allocation5 + $0x8] sm:$0x3f]
      %v1672 = vrot.slane %v1668, 6
      %v1673 = vrot.slane %v1669, 6
      %1674 = vrot.lane.b32.xlu0 %v1672, 112
      %v1675 = vpop.permute.xlu0 %1674
      %1676 = vrot.lane.b32.xlu0 %v1673, 112
      %v1677 = vpop.permute.xlu0 %1676
      %vm1678 = vcmask 916480
      %v1679 = vsel %vm1678, %v1675, %v1677
      %1682 = vst [vmem:[#allocation3 + $0x50] sm:$0xfc] %v1679
      %1683 = vst.msk [vmem:[#allocation3 + $0x58] sm:$0xfc] %vm1617, %v1677
      %v1684 = vld [vmem:[#allocation5] sm:$0x3f]
      %v1685 = vld [vmem:[#allocation5 + $0x8] sm:$0x3f]
      %1688 = vrot.lane.b32.xlu0 %v1684, 111
      %v1689 = vpop.permute.xlu0 %1688
      %1690 = vrot.lane.b32.xlu0 %v1685, 111
      %v1691 = vpop.permute.xlu0 %1690
      %vm1692 = vcmask 908288
      %v1693 = vsel %vm1692, %v1689, %v1691
      %1696 = vst [vmem:[#allocation3 + $0x60] sm:$0x3f] %v1693
      %1697 = vst.msk [vmem:[#allocation3 + $0x68] sm:$0x3f] %vm1563, %v1691
      %v1698 = vld [vmem:[#allocation5] sm:$0x3f]
      %v1699 = vld [vmem:[#allocation5 + $0x8] sm:$0x3f]
      %v1702 = vrot.slane %v1698, 2
      %v1703 = vrot.slane %v1699, 2
      %1704 = vrot.lane.b32.xlu0 %v1702, 110
      %v1705 = vpop.permute.xlu0 %1704
      %1706 = vrot.lane.b32.xlu0 %v1703, 110
      %v1707 = vpop.permute.xlu0 %1706
      %vm1708 = vcmask 900096
      %v1709 = vsel %vm1708, %v1705, %v1707
      %1712 = vst [vmem:[#allocation3 + $0x60] sm:$0xc0] %v1709
      %1713 = vst.msk [vmem:[#allocation3 + $0x68] sm:$0xc0] %vm1579, %v1707
      %1714 = vst [vmem:[#allocation3 + $0x70] sm:$0xf] %v1709
      %1715 = vst.msk [vmem:[#allocation3 + $0x78] sm:$0xf] %vm1582, %v1707
      %v1716 = vld [vmem:[#allocation5] sm:$0x3f]
      %v1717 = vld [vmem:[#allocation5 + $0x8] sm:$0x3f]
      %v1720 = vrot.slane %v1716, 4
      %v1721 = vrot.slane %v1717, 4
      %1722 = vrot.lane.b32.xlu0 %v1720, 100
      %v1723 = vpop.permute.xlu0 %1722
      %1724 = vrot.lane.b32.xlu0 %v1721, 100
      %v1725 = vpop.permute.xlu0 %1724
      %vm1726 = vcmask 818176
      %v1727 = vsel %vm1726, %v1723, %v1725
      %1730 = vst [vmem:[#allocation3 + $0x70] sm:$0xf0] %v1727
      %1731 = vst.msk [vmem:[#allocation3 + $0x78] sm:$0xf0] %vm1598, %v1725
      %1732 = vst [vmem:[#allocation3 + $0x80] sm:$0x3] %v1727
      %1733 = vst.msk [vmem:[#allocation3 + $0x88] sm:$0x3] %vm1601, %v1725
      %v1734 = vld [vmem:[#allocation5] sm:$0x3f]
      %v1735 = vld [vmem:[#allocation5 + $0x8] sm:$0x3f]
      %v1738 = vrot.slane %v1734, 6
      %v1739 = vrot.slane %v1735, 6
      %1740 = vrot.lane.b32.xlu0 %v1738, 99
      %v1741 = vpop.permute.xlu0 %1740
      %1742 = vrot.lane.b32.xlu0 %v1739, 99
      %v1743 = vpop.permute.xlu0 %1742
      %vm1744 = vcmask 809984
      %v1745 = vsel %vm1744, %v1741, %v1743
      %1748 = vst [vmem:[#allocation3 + $0x80] sm:$0xfc] %v1745
      %1749 = vst.msk [vmem:[#allocation3 + $0x88] sm:$0xfc] %vm1617, %v1743
      %v1750 = vld [vmem:[#allocation5] sm:$0x3f]
      %v1751 = vld [vmem:[#allocation5 + $0x8] sm:$0x3f]
      %1754 = vrot.lane.b32.xlu0 %v1750, 98
      %v1755 = vpop.permute.xlu0 %1754
      %1756 = vrot.lane.b32.xlu0 %v1751, 98
      %v1757 = vpop.permute.xlu0 %1756
      %vm1758 = vcmask 801792
      %v1759 = vsel %vm1758, %v1755, %v1757
      %1762 = vst [vmem:[#allocation3 + $0x90] sm:$0x3f] %v1759
      %1763 = vst.msk [vmem:[#allocation3 + $0x98] sm:$0x3f] %vm1563, %v1757
      %v1764 = vld [vmem:[#allocation5] sm:$0x3f]
      %v1765 = vld [vmem:[#allocation5 + $0x8] sm:$0x3f]
      %v1768 = vrot.slane %v1764, 2
      %v1769 = vrot.slane %v1765, 2
      %1770 = vrot.lane.b32.xlu0 %v1768, 97
      %v1771 = vpop.permute.xlu0 %1770
      %1772 = vrot.lane.b32.xlu0 %v1769, 97
      %v1773 = vpop.permute.xlu0 %1772
      %vm1774 = vcmask 793600
      %v1775 = vsel %vm1774, %v1771, %v1773
      %1778 = vst [vmem:[#allocation3 + $0x90] sm:$0xc0] %v1775
      %1779 = vst.msk [vmem:[#allocation3 + $0x98] sm:$0xc0] %vm1579, %v1773
      %1780 = vst [vmem:[#allocation3 + $0xa0] sm:$0xf] %v1775
      %1781 = vst.msk [vmem:[#allocation3 + $0xa8] sm:$0xf] %vm1582, %v1773
      %v1782 = vld [vmem:[#allocation5] sm:$0x3f]
      %v1783 = vld [vmem:[#allocation5 + $0x8] sm:$0x3f]
      %v1786 = vrot.slane %v1782, 4
      %v1787 = vrot.slane %v1783, 4
      %1788 = vrot.lane.b32.xlu0 %v1786, 96
      %v1789 = vpop.permute.xlu0 %1788
      %1790 = vrot.lane.b32.xlu0 %v1787, 96
      %v1791 = vpop.permute.xlu0 %1790
      %v1792 = vsel %vm494, %v1789, %v1791
      %1795 = vst [vmem:[#allocation3 + $0xa0] sm:$0xf0] %v1792
      %1796 = vst.msk [vmem:[#allocation3 + $0xa8] sm:$0xf0] %vm1598, %v1791
      %1797 = vst [vmem:[#allocation3 + $0xb0] sm:$0x3] %v1792
      %1798 = vst.msk [vmem:[#allocation3 + $0xb8] sm:$0x3] %vm1601, %v1791
      %v1799 = vld [vmem:[#allocation5] sm:$0x3f]
      %v1800 = vld [vmem:[#allocation5 + $0x8] sm:$0x3f]
      %v1803 = vrot.slane %v1799, 6
      %v1804 = vrot.slane %v1800, 6
      %1805 = vrot.lane.b32.xlu0 %v1803, 86
      %v1806 = vpop.permute.xlu0 %1805
      %1807 = vrot.lane.b32.xlu0 %v1804, 86
      %v1808 = vpop.permute.xlu0 %1807
      %vm1809 = vcmask 703488
      %v1810 = vsel %vm1809, %v1806, %v1808
      %1813 = vst [vmem:[#allocation3 + $0xb0] sm:$0xfc] %v1810
      %1814 = vst.msk [vmem:[#allocation3 + $0xb8] sm:$0xfc] %vm1617, %v1808
      %v1815 = vld [vmem:[#allocation5] sm:$0x3f]
      %v1816 = vld [vmem:[#allocation5 + $0x8] sm:$0x3f]
      %1819 = vrot.lane.b32.xlu0 %v1815, 85
      %v1820 = vpop.permute.xlu0 %1819
      %1821 = vrot.lane.b32.xlu0 %v1816, 85
      %v1822 = vpop.permute.xlu0 %1821
      %vm1823 = vcmask 695296
      %v1824 = vsel %vm1823, %v1820, %v1822
      %1827 = vst [vmem:[#allocation3 + $0xc0] sm:$0x3f] %v1824
      %1828 = vst.msk [vmem:[#allocation3 + $0xc8] sm:$0x3f] %vm1563, %v1822
      %v1829 = vld [vmem:[#allocation5] sm:$0x3f]
      %v1830 = vld [vmem:[#allocation5 + $0x8] sm:$0x3f]
      %v1833 = vrot.slane %v1829, 2
      %v1834 = vrot.slane %v1830, 2
      %1835 = vrot.lane.b32.xlu0 %v1833, 84
      %v1836 = vpop.permute.xlu0 %1835
      %1837 = vrot.lane.b32.xlu0 %v1834, 84
      %v1838 = vpop.permute.xlu0 %1837
      %vm1839 = vcmask 687104
      %v1840 = vsel %vm1839, %v1836, %v1838
      %1843 = vst [vmem:[#allocation3 + $0xc0] sm:$0xc0] %v1840
      %1844 = vst.msk [vmem:[#allocation3 + $0xc8] sm:$0xc0] %vm1579, %v1838
      %1845 = vst [vmem:[#allocation3 + $0xd0] sm:$0xf] %v1840
      %1846 = vst.msk [vmem:[#allocation3 + $0xd8] sm:$0xf] %vm1582, %v1838
      %v1847 = vld [vmem:[#allocation5] sm:$0x3f]
      %v1848 = vld [vmem:[#allocation5 + $0x8] sm:$0x3f]
      %v1851 = vrot.slane %v1847, 4
      %v1852 = vrot.slane %v1848, 4
      %1853 = vrot.lane.b32.xlu0 %v1851, 83
      %v1854 = vpop.permute.xlu0 %1853
      %1855 = vrot.lane.b32.xlu0 %v1852, 83
      %v1856 = vpop.permute.xlu0 %1855
      %vm1857 = vcmask 678912
      %v1858 = vsel %vm1857, %v1854, %v1856
      %1861 = vst [vmem:[#allocation3 + $0xd0] sm:$0xf0] %v1858
      %1862 = vst.msk [vmem:[#allocation3 + $0xd8] sm:$0xf0] %vm1598, %v1856
      %1863 = vst [vmem:[#allocation3 + $0xe0] sm:$0x3] %v1858
      %1864 = vst.msk [vmem:[#allocation3 + $0xe8] sm:$0x3] %vm1601, %v1856
      %v1865 = vld [vmem:[#allocation5] sm:$0x3f]
      %v1866 = vld [vmem:[#allocation5 + $0x8] sm:$0x3f]
      %v1869 = vrot.slane %v1865, 6
      %v1870 = vrot.slane %v1866, 6
      %1871 = vrot.lane.b32.xlu0 %v1869, 82
      %v1872 = vpop.permute.xlu0 %1871
      %1873 = vrot.lane.b32.xlu0 %v1870, 82
      %v1874 = vpop.permute.xlu0 %1873
      %vm1875 = vcmask 670720
      %v1876 = vsel %vm1875, %v1872, %v1874
      %1879 = vst [vmem:[#allocation3 + $0xe0] sm:$0xfc] %v1876
      %1880 = vst.msk [vmem:[#allocation3 + $0xe8] sm:$0xfc] %vm1617, %v1874
      %v1881 = vld [vmem:[#allocation5] sm:$0x3f]
      %v1882 = vld [vmem:[#allocation5 + $0x8] sm:$0x3f]
      %1885 = vrot.lane.b32.xlu0 %v1881, 72
      %v1886 = vpop.permute.xlu0 %1885
      %1887 = vrot.lane.b32.xlu0 %v1882, 72
      %v1888 = vpop.permute.xlu0 %1887
      %vm1889 = vcmask 588800
      %v1890 = vsel %vm1889, %v1886, %v1888
      %1893 = vst [vmem:[#allocation3 + $0xf0] sm:$0x3f] %v1890
      %1894 = vst.msk [vmem:[#allocation3 + $0xf8] sm:$0x3f] %vm1563, %v1888
      %v1895 = vld [vmem:[#allocation5] sm:$0x3f]
      %v1896 = vld [vmem:[#allocation5 + $0x8] sm:$0x3f]
      %v1899 = vrot.slane %v1895, 2
      %v1900 = vrot.slane %v1896, 2
      %1901 = vrot.lane.b32.xlu0 %v1899, 71
      %v1902 = vpop.permute.xlu0 %1901
      %1903 = vrot.lane.b32.xlu0 %v1900, 71
      %v1904 = vpop.permute.xlu0 %1903
      %vm1905 = vcmask 580608
      %v1906 = vsel %vm1905, %v1902, %v1904
      %1909 = vst [vmem:[#allocation3 + $0xf0] sm:$0xc0] %v1906
      %1910 = vst.msk [vmem:[#allocation3 + $0xf8] sm:$0xc0] %vm1579, %v1904
      %1911 = vst [vmem:[#allocation3 + $0x100] sm:$0xf] %v1906
      %1912 = vst.msk [vmem:[#allocation3 + $0x108] sm:$0xf] %vm1582, %v1904
      %v1913 = vld [vmem:[#allocation5] sm:$0x3f]
      %v1914 = vld [vmem:[#allocation5 + $0x8] sm:$0x3f]
      %v1917 = vrot.slane %v1913, 4
      %v1918 = vrot.slane %v1914, 4
      %1919 = vrot.lane.b32.xlu0 %v1917, 70
      %v1920 = vpop.permute.xlu0 %1919
      %1921 = vrot.lane.b32.xlu0 %v1918, 70
      %v1922 = vpop.permute.xlu0 %1921
      %vm1923 = vcmask 572416
      %v1924 = vsel %vm1923, %v1920, %v1922
      %1927 = vst [vmem:[#allocation3 + $0x100] sm:$0xf0] %v1924
      %1928 = vst.msk [vmem:[#allocation3 + $0x108] sm:$0xf0] %vm1598, %v1922
      %1929 = vst [vmem:[#allocation3 + $0x110] sm:$0x3] %v1924
      %1930 = vst.msk [vmem:[#allocation3 + $0x118] sm:$0x3] %vm1601, %v1922
      %v1931 = vld [vmem:[#allocation5] sm:$0x3f]
      %v1932 = vld [vmem:[#allocation5 + $0x8] sm:$0x3f]
      %v1935 = vrot.slane %v1931, 6
      %v1936 = vrot.slane %v1932, 6
      %1937 = vrot.lane.b32.xlu0 %v1935, 69
      %v1938 = vpop.permute.xlu0 %1937
      %1939 = vrot.lane.b32.xlu0 %v1936, 69
      %v1940 = vpop.permute.xlu0 %1939
      %vm1941 = vcmask 564224
      %v1942 = vsel %vm1941, %v1938, %v1940
      %1945 = vst [vmem:[#allocation3 + $0x110] sm:$0xfc] %v1942
      %1946 = vst.msk [vmem:[#allocation3 + $0x118] sm:$0xfc] %vm1617, %v1940
      %v1947 = vld [vmem:[#allocation5] sm:$0x3f]
      %v1948 = vld [vmem:[#allocation5 + $0x8] sm:$0x3f]
      %1951 = vrot.lane.b32.xlu0 %v1947, 68
      %v1952 = vpop.permute.xlu0 %1951
      %1953 = vrot.lane.b32.xlu0 %v1948, 68
      %v1954 = vpop.permute.xlu0 %1953
      %vm1955 = vcmask 556032
      %v1956 = vsel %vm1955, %v1952, %v1954
      %1959 = vst [vmem:[#allocation3 + $0x120] sm:$0x3f] %v1956
      %1960 = vst.msk [vmem:[#allocation3 + $0x128] sm:$0x3f] %vm1563, %v1954
      %v1961 = vld [vmem:[%s4] sm:$0xff]
      %v1962 = vld [vmem:[%s4 + $0x8] sm:$0xff]
      %v1963 = vld [vmem:[%s4 + $0x10] sm:$0xff]
      %v1964 = vld [vmem:[%s4 + $0x18] sm:$0xff]
      %v1965 = vld [vmem:[#allocation3] sm:$0xff]
      %v1966 = vld [vmem:[#allocation3 + $0x8] sm:$0xff]
      %v1967 = vld [vmem:[#allocation3 + $0x10] sm:$0xff]
      %v1968 = vld [vmem:[#allocation3 + $0x18] sm:$0xff]
      %v1969 = vld [vmem:[#allocation3 + $0x20] sm:$0xff]
      %v1970 = vld [vmem:[#allocation3 + $0x28] sm:$0xff]
      %v1971 = vld [vmem:[#allocation3 + $0x30] sm:$0xff]
      %v1972 = vld [vmem:[#allocation3 + $0x38] sm:$0xff]
      %v1973 = vld [vmem:[#allocation3 + $0x40] sm:$0xff]
      %v1974 = vld [vmem:[#allocation3 + $0x48] sm:$0xff]
      %v1975 = vld [vmem:[#allocation3 + $0x50] sm:$0xff]
      %v1976 = vld [vmem:[#allocation3 + $0x58] sm:$0xff]
      %v1977 = vld [vmem:[#allocation3 + $0x60] sm:$0xff]
      %v1978 = vld [vmem:[#allocation3 + $0x68] sm:$0xff]
      %v1979 = vld [vmem:[#allocation3 + $0x70] sm:$0xff]
      %v1980 = vld [vmem:[#allocation3 + $0x78] sm:$0xff]
      %v1981 = vld [vmem:[#allocation3 + $0x80] sm:$0xff]
      %v1982 = vld [vmem:[#allocation3 + $0x88] sm:$0xff]
      %v1983 = vld [vmem:[#allocation3 + $0x90] sm:$0xff]
      %v1984 = vld [vmem:[#allocation3 + $0x98] sm:$0xff]
      %v1985 = vld [vmem:[#allocation3 + $0xa0] sm:$0xff]
      %v1986 = vld [vmem:[#allocation3 + $0xa8] sm:$0xff]
      %v1987 = vld [vmem:[#allocation3 + $0xb0] sm:$0xff]
      %v1988 = vld [vmem:[#allocation3 + $0xb8] sm:$0xff]
      %v1989 = vld [vmem:[#allocation3 + $0xc0] sm:$0xff]
      %v1990 = vld [vmem:[#allocation3 + $0xc8] sm:$0xff]
      %v1991 = vld [vmem:[#allocation3 + $0xd0] sm:$0xff]
      %v1992 = vld [vmem:[#allocation3 + $0xd8] sm:$0xff]
      %v1993 = vld [vmem:[#allocation3 + $0xe0] sm:$0xff]
      %v1994 = vld [vmem:[#allocation3 + $0xe8] sm:$0xff]
      %v1995 = vld [vmem:[#allocation3 + $0xf0] sm:$0xff]
      %v1996 = vld [vmem:[#allocation3 + $0xf8] sm:$0xff]
      %v1997 = vld [vmem:[#allocation3 + $0x100] sm:$0xff]
      %v1998 = vld [vmem:[#allocation3 + $0x108] sm:$0xff]
      %v1999 = vld [vmem:[#allocation3 + $0x110] sm:$0xff]
      %v2000 = vld [vmem:[#allocation3 + $0x118] sm:$0xff]
      %v2001 = vld [vmem:[#allocation3 + $0x120] sm:$0x3f]
      %v2002 = vld [vmem:[#allocation3 + $0x128] sm:$0x3f]
      %v2003 = vld [vmem:[%s5] sm:$0xff]
      %v2004 = vld [vmem:[%s5 + $0x8] sm:$0xff]
      %2006 = vset.pattern.permute.xlu0 0
      %2007 = vperm.xlu0 %2006, %v2003
      %v2008 = vpop.permute.xlu0 %2007
      %2011 = vset.pattern.permute.xlu0 0
      %2012 = vperm.xlu0 %2011, %v2004
      %v2013 = vpop.permute.xlu0 %2012
      %vm2015 = vcmask 179200
      %v2017 = vsel %vm2015, %v1962, 0
      %v2020 = vsel %vm2015, %v1964, 0
      %vm2022 = vcmask 1045504
      %v2024 = vsel %vm2022, %v2001, 0
      %v2027 = vsel %vm2022, %v2002, 0
      %2029 = vmatprep.subr.mxu0 %v1966
      %2030 = vmatpush1.msra.mxu0 %v1965
      %2031 = vmatprep.subr.mxu0 %v1968
      %2032 = vmatpush1.msra.mxu0 %v1967
      %2033 = vmatprep.subr.mxu0 %v1970
      %2034 = vmatpush1.msra.mxu0 %v1969
      %2035 = vmatprep.subr.mxu0 %v1972
      %2036 = vmatpush1.msra.mxu0 %v1971
      %2037 = vmatprep.subr.mxu0 %v1974
      %2038 = vmatpush1.msra.mxu0 %v1973
      %2039 = vmatprep.subr.mxu0 %v1976
      %2040 = vmatpush1.msra.mxu0 %v1975
      %2041 = vmatprep.subr.mxu0 %v1978
      %2042 = vmatpush1.msra.mxu0 %v1977
      %2043 = vmatprep.subr.mxu0 %v1980
      %2044 = vmatpush1.msra.mxu0 %v1979
      %2045 = vmatprep.subr.mxu0 %v1982
      %2046 = vmatpush1.msra.mxu0 %v1981
      %2047 = vmatprep.subr.mxu0 %v1984
      %2048 = vmatpush1.msra.mxu0 %v1983
      %2049 = vmatprep.subr.mxu0 %v1986
      %2050 = vmatpush1.msra.mxu0 %v1985
      %2051 = vmatprep.subr.mxu0 %v1988
      %2052 = vmatpush1.msra.mxu0 %v1987
      %2053 = vmatprep.subr.mxu0 %v1990
      %2054 = vmatpush1.msra.mxu0 %v1989
      %2055 = vmatprep.subr.mxu0 %v1992
      %2056 = vmatpush1.msra.mxu0 %v1991
      %2057 = vmatprep.subr.mxu0 %v1994
      %2058 = vmatpush1.msra.mxu0 %v1993
      %2059 = vmatprep.subr.mxu0 %v1996
      %2060 = vmatpush1.msra.mxu0 %v1995
      %2061 = vmatprep.subr.mxu0 %v1998
      %2062 = vmatpush1.msra.mxu0 %v1997
      %2063 = vmatprep.subr.mxu0 %v2000
      %2064 = vmatpush1.msra.mxu0 %v1999
      %2065 = vmatprep.subr.mxu0 %v2027
      %2066 = vmatpush1.msra.mxu0 %v2024
      %2067 = vmatprep.subr.mxu0 0.0
      %2068 = vmatpush1.msra.mxu0 0.0
      %2069 = vmatprep.subr.mxu0 0.0
      %2070 = vmatpush1.msra.mxu0 0.0
      %2071 = vmatprep.subr.mxu0 0.0
      %2072 = vmatpush1.msra.mxu0 0.0
      %2073 = vmatprep.subr.mxu0 0.0
      %2074 = vmatpush1.msra.mxu0 0.0
      %2075 = vmatprep.subr.mxu0 0.0
      %2076 = vmatpush1.msra.mxu0 0.0
      %2077 = vmatprep.subr.mxu0 0.0
      %2078 = vmatpush1.msra.mxu0 0.0
      %2079 = vmatprep.subr.mxu0 0.0
      %2080 = vmatpush1.msra.mxu0 0.0
      %2081 = vmatprep.subr.mxu0 0.0
      %2082 = vmatpush1.msra.mxu0 0.0
      %2083 = vmatprep.subr.mxu0 0.0
      %2084 = vmatpush1.msra.mxu0 0.0
      %2085 = vmatprep.subr.mxu0 0.0
      %2086 = vmatpush1.msra.mxu0 0.0
      %2087 = vmatprep.subr.mxu0 0.0
      %2088 = vmatpush1.msra.mxu0 0.0
      %2089 = vmatprep.subr.mxu0 0.0
      %2090 = vmatpush1.msra.mxu0 0.0
      %2091 = vmatprep.subr.mxu0 0.0
      %2092 = vmatpush1.msra.mxu0 0.0
      %2093 = vmatprep.mubr.f32.mxu0 %v2017
      %2094 = vmatmul.mubr.f32.gmra.mrb[0].mxu0 %v1961
      %v2095 = vpop.f32.mrb[0].mxu0
      %v2096 = vadd.f32 %v2008, %v2095
      %v2097 = vpop.f32.mrb[0].mxu0
      %v2098 = vadd.f32 %v2008, %v2097
      %2099 = vmatprep.mubr.f32.mxu0 %v2020
      %2100 = vmatmul.mubr.f32.gmra.mrb[0].mxu0 %v1963
      %v2101 = vpop.f32.mrb[0].mxu0
      %v2102 = vadd.f32 %v2013, %v2101
      %v2103 = vpop.f32.mrb[0].mxu0
      %v2104 = vadd.f32 %v2013, %v2103
      %2105 = vdwg.mxu0
      %v2106 = vtanh.pop %v2096
      %v2107 = vtanh.pop %v2098
      %v2108 = vtanh.pop %v2102
      %v2109 = vtanh.pop %v2104
      %v2110 = vld [vmem:[%s6] sm:$0xff]
      %v2111 = vld [vmem:[%s6 + $0x8] sm:$0xff]
      %v2112 = vld [vmem:[%s6 + $0x10] sm:$0xff]
      %v2113 = vld [vmem:[%s6 + $0x18] sm:$0xff]
      %v2114 = vld [vmem:[%s6 + $0x20] sm:$0xff]
      %v2115 = vld [vmem:[%s6 + $0x28] sm:$0xff]
      %v2116 = vld [vmem:[%s6 + $0x30] sm:$0xff]
      %v2117 = vld [vmem:[%s6 + $0x38] sm:$0xff]
      %v2118 = vld [vmem:[%s6 + $0x40] sm:$0xff]
      %v2119 = vld [vmem:[%s6 + $0x48] sm:$0xff]
      %v2120 = vld [vmem:[%s6 + $0x50] sm:$0xff]
      %v2121 = vld [vmem:[%s6 + $0x58] sm:$0xff]
      %v2122 = vld [vmem:[%s6 + $0x60] sm:$0xff]
      %v2123 = vld [vmem:[%s6 + $0x68] sm:$0xff]
      %v2124 = vld [vmem:[%s6 + $0x70] sm:$0xff]
      %v2125 = vld [vmem:[%s6 + $0x78] sm:$0xff]
      %v2126 = vld [vmem:[%s6 + $0x80] sm:$0xff]
      %v2127 = vld [vmem:[%s6 + $0x88] sm:$0xf]
      %vm2128 = vcmask 97280
      %v2130 = vsel %vm2128, %v2107, 0
      %v2133 = vsel %vm2128, %v2109, 0
      %vm2135 = vcmask 1043456
      %v2137 = vsel %vm2135, %v2127, 0
      %2139 = vmatprep.subr.mxu0 0.0
      %2140 = vmatpush1.msra.mxu0 %v2110
      %2141 = vmatprep.subr.mxu0 0.0
      %2142 = vmatpush1.msra.mxu0 %v2111
      %2143 = vmatprep.subr.mxu0 0.0
      %2144 = vmatpush1.msra.mxu0 %v2112
      %2145 = vmatprep.subr.mxu0 0.0
      %2146 = vmatpush1.msra.mxu0 %v2113
      %2147 = vmatprep.subr.mxu0 0.0
      %2148 = vmatpush1.msra.mxu0 %v2114
      %2149 = vmatprep.subr.mxu0 0.0
      %2150 = vmatpush1.msra.mxu0 %v2115
      %2151 = vmatprep.subr.mxu0 0.0
      %2152 = vmatpush1.msra.mxu0 %v2116
      %2153 = vmatprep.subr.mxu0 0.0
      %2154 = vmatpush1.msra.mxu0 %v2117
      %2155 = vmatprep.subr.mxu0 0.0
      %2156 = vmatpush1.msra.mxu0 %v2118
      %2157 = vmatprep.subr.mxu0 0.0
      %2158 = vmatpush1.msra.mxu0 %v2119
      %2159 = vmatprep.subr.mxu0 0.0
      %2160 = vmatpush1.msra.mxu0 %v2120
      %2161 = vmatprep.subr.mxu0 0.0
      %2162 = vmatpush1.msra.mxu0 %v2121
      %2163 = vmatprep.subr.mxu0 0.0
      %2164 = vmatpush1.msra.mxu0 %v2122
      %2165 = vmatprep.subr.mxu0 0.0
      %2166 = vmatpush1.msra.mxu0 %v2123
      %2167 = vmatprep.subr.mxu0 0.0
      %2168 = vmatpush1.msra.mxu0 %v2124
      %2169 = vmatprep.subr.mxu0 0.0
      %2170 = vmatpush1.msra.mxu0 %v2125
      %2171 = vmatprep.subr.mxu0 0.0
      %2172 = vmatpush1.msra.mxu0 %v2126
      %2173 = vmatprep.subr.mxu0 0.0
      %2174 = vmatpush1.msra.mxu0 %v2137
      %2175 = vmatprep.subr.mxu0 0.0
      %2176 = vmatpush1.msra.mxu0 0.0
      %2177 = vmatprep.subr.mxu0 0.0
      %2178 = vmatpush1.msra.mxu0 0.0
      %2179 = vmatprep.subr.mxu0 0.0
      %2180 = vmatpush1.msra.mxu0 0.0
      %2181 = vmatprep.subr.mxu0 0.0
      %2182 = vmatpush1.msra.mxu0 0.0
      %2183 = vmatprep.subr.mxu0 0.0
      %2184 = vmatpush1.msra.mxu0 0.0
      %2185 = vmatprep.subr.mxu0 0.0
      %2186 = vmatpush1.msra.mxu0 0.0
      %2187 = vmatprep.subr.mxu0 0.0
      %2188 = vmatpush1.msra.mxu0 0.0
      %2189 = vmatprep.subr.mxu0 0.0
      %2190 = vmatpush1.msra.mxu0 0.0
      %2191 = vmatprep.subr.mxu0 0.0
      %2192 = vmatpush1.msra.mxu0 0.0
      %2193 = vmatprep.subr.mxu0 0.0
      %2194 = vmatpush1.msra.mxu0 0.0
      %2195 = vmatprep.subr.mxu0 0.0
      %2196 = vmatpush1.msra.mxu0 0.0
      %2197 = vmatprep.subr.mxu0 0.0
      %2198 = vmatpush1.msra.mxu0 0.0
      %2199 = vmatprep.subr.mxu0 0.0
      %2200 = vmatpush1.msra.mxu0 0.0
      %2201 = vmatprep.subr.mxu0 0.0
      %2202 = vmatpush1.msra.mxu0 0.0
      %2203 = vmatprep.mubr.f32.mxu0 %v2130
      %2204 = vmatmul.mubr.f32.gmra.mrb[0].mxu0 %v2106
      %v2205 = vpop.f32.mrb[0].mxu0
      %v2206 = vadd.f32 0.0, %v2205
      %v2207 = vpop.f32.mrb[0].mxu0
      %2208 = vmatprep.mubr.f32.mxu0 %v2133
      %2209 = vmatmul.mubr.f32.gmra.mrb[0].mxu0 %v2108
      %v2210 = vpop.f32.mrb[0].mxu0
      %v2211 = vadd.f32 0.0, %v2210
      %v2212 = vpop.f32.mrb[0].mxu0
      %2213 = vdwg.mxu0
      %2214 = vst.msk [vmem:[#allocation6] sm:$0xff] %vm637, %v2206
      %2215 = vst.msk [vmem:[#allocation6 + $0x8] sm:$0xff] %vm637, %v2211
      %v2216 = vld [vmem:[#allocation6] sm:$0xff]
      %v2217 = vld [vmem:[#allocation6 + $0x8] sm:$0xff]
      %vm2218 = vcmask 39936
      %2219 = vst.msk [vmem:[#allocation4] sm:$0xff] %vm2218, %v2216
      %2220 = vst.msk [vmem:[#allocation4 + $0x8] sm:$0xff] %vm2218, %v2217
      %v2221 = vld [vmem:[#allocation6] sm:$0xff]
      %v2222 = vld [vmem:[#allocation6 + $0x8] sm:$0xff]
      %2225 = vrot.lane.b32.xlu0 %v2221, 127
      %v2226 = vpop.permute.xlu0 %2225
      %2227 = vrot.lane.b32.xlu0 %v2222, 127
      %v2228 = vpop.permute.xlu0 %2227
      %2231 = vst.msk [vmem:[#allocation4 + $0x10] sm:$0xff] %vm2218, %v2226
      %2232 = vst.msk [vmem:[#allocation4 + $0x18] sm:$0xff] %vm2218, %v2228
      %v2233 = vld [vmem:[#allocation6] sm:$0xff]
      %v2234 = vld [vmem:[#allocation6 + $0x8] sm:$0xff]
      %2237 = vrot.lane.b32.xlu0 %v2233, 126
      %v2238 = vpop.permute.xlu0 %2237
      %2239 = vrot.lane.b32.xlu0 %v2234, 126
      %v2240 = vpop.permute.xlu0 %2239
      %2243 = vst.msk [vmem:[#allocation4 + $0x20] sm:$0xff] %vm2218, %v2238
      %2244 = vst.msk [vmem:[#allocation4 + $0x28] sm:$0xff] %vm2218, %v2240
      %v2245 = vld [vmem:[#allocation6] sm:$0xff]
      %v2246 = vld [vmem:[#allocation6 + $0x8] sm:$0xff]
      %2249 = vrot.lane.b32.xlu0 %v2245, 125
      %v2250 = vpop.permute.xlu0 %2249
      %2251 = vrot.lane.b32.xlu0 %v2246, 125
      %v2252 = vpop.permute.xlu0 %2251
      %2255 = vst.msk [vmem:[#allocation4 + $0x30] sm:$0xff] %vm2218, %v2250
      %2256 = vst.msk [vmem:[#allocation4 + $0x38] sm:$0xff] %vm2218, %v2252
      %v2257 = vld [vmem:[#allocation6] sm:$0xff]
      %v2258 = vld [vmem:[#allocation6 + $0x8] sm:$0xff]
      %2261 = vrot.lane.b32.xlu0 %v2257, 124
      %v2262 = vpop.permute.xlu0 %2261
      %2263 = vrot.lane.b32.xlu0 %v2258, 124
      %v2264 = vpop.permute.xlu0 %2263
      %2267 = vst.msk [vmem:[#allocation4 + $0x40] sm:$0xff] %vm2218, %v2262
      %2268 = vst.msk [vmem:[#allocation4 + $0x48] sm:$0xff] %vm2218, %v2264
      %v2269 = vld [vmem:[#allocation6] sm:$0xff]
      %v2270 = vld [vmem:[#allocation6 + $0x8] sm:$0xff]
      %2273 = vrot.lane.b32.xlu0 %v2269, 123
      %v2274 = vpop.permute.xlu0 %2273
      %2275 = vrot.lane.b32.xlu0 %v2270, 123
      %v2276 = vpop.permute.xlu0 %2275
      %2279 = vst.msk [vmem:[#allocation4 + $0x50] sm:$0xff] %vm2218, %v2274
      %2280 = vst.msk [vmem:[#allocation4 + $0x58] sm:$0xff] %vm2218, %v2276
      %v2281 = vld [vmem:[#allocation6] sm:$0xff]
      %v2282 = vld [vmem:[#allocation6 + $0x8] sm:$0xff]
      %2285 = vrot.lane.b32.xlu0 %v2281, 122
      %v2286 = vpop.permute.xlu0 %2285
      %2287 = vrot.lane.b32.xlu0 %v2282, 122
      %v2288 = vpop.permute.xlu0 %2287
      %2291 = vst.msk [vmem:[#allocation4 + $0x60] sm:$0xff] %vm2218, %v2286
      %2292 = vst.msk [vmem:[#allocation4 + $0x68] sm:$0xff] %vm2218, %v2288
      %v2293 = vld [vmem:[#allocation6] sm:$0xff]
      %v2294 = vld [vmem:[#allocation6 + $0x8] sm:$0xff]
      %2297 = vrot.lane.b32.xlu0 %v2293, 121
      %v2298 = vpop.permute.xlu0 %2297
      %2299 = vrot.lane.b32.xlu0 %v2294, 121
      %v2300 = vpop.permute.xlu0 %2299
      %2303 = vst.msk [vmem:[#allocation4 + $0x70] sm:$0xff] %vm2218, %v2298
      %2304 = vst.msk [vmem:[#allocation4 + $0x78] sm:$0xff] %vm2218, %v2300
      %v2305 = vld [vmem:[#allocation6] sm:$0xff]
      %v2306 = vld [vmem:[#allocation6 + $0x8] sm:$0xff]
      %2309 = vrot.lane.b32.xlu0 %v2305, 120
      %v2310 = vpop.permute.xlu0 %2309
      %2311 = vrot.lane.b32.xlu0 %v2306, 120
      %v2312 = vpop.permute.xlu0 %2311
      %2315 = vst.msk [vmem:[#allocation4 + $0x80] sm:$0xff] %vm2218, %v2310
      %2316 = vst.msk [vmem:[#allocation4 + $0x88] sm:$0xff] %vm2218, %v2312
      %v2317 = vld [vmem:[#allocation6] sm:$0xff]
      %v2318 = vld [vmem:[#allocation6 + $0x8] sm:$0xff]
      %2321 = vrot.lane.b32.xlu0 %v2317, 119
      %v2322 = vpop.permute.xlu0 %2321
      %2323 = vrot.lane.b32.xlu0 %v2318, 119
      %v2324 = vpop.permute.xlu0 %2323
      %2327 = vst.msk [vmem:[#allocation4 + $0x90] sm:$0xff] %vm2218, %v2322
      %2328 = vst.msk [vmem:[#allocation4 + $0x98] sm:$0xff] %vm2218, %v2324
      %v2329 = vld [vmem:[#allocation6] sm:$0xff]
      %v2330 = vld [vmem:[#allocation6 + $0x8] sm:$0xff]
      %2333 = vrot.lane.b32.xlu0 %v2329, 118
      %v2334 = vpop.permute.xlu0 %2333
      %2335 = vrot.lane.b32.xlu0 %v2330, 118
      %v2336 = vpop.permute.xlu0 %2335
      %2339 = vst.msk [vmem:[#allocation4 + $0xa0] sm:$0xff] %vm2218, %v2334
      %2340 = vst.msk [vmem:[#allocation4 + $0xa8] sm:$0xff] %vm2218, %v2336
      %v2341 = vld [vmem:[#allocation6] sm:$0xff]
      %v2342 = vld [vmem:[#allocation6 + $0x8] sm:$0xff]
      %2345 = vrot.lane.b32.xlu0 %v2341, 117
      %v2346 = vpop.permute.xlu0 %2345
      %2347 = vrot.lane.b32.xlu0 %v2342, 117
      %v2348 = vpop.permute.xlu0 %2347
      %2351 = vst.msk [vmem:[#allocation4 + $0xb0] sm:$0xff] %vm2218, %v2346
      %2352 = vst.msk [vmem:[#allocation4 + $0xb8] sm:$0xff] %vm2218, %v2348
      %v2353 = vld [vmem:[#allocation6] sm:$0xff]
      %v2354 = vld [vmem:[#allocation6 + $0x8] sm:$0xff]
      %2357 = vrot.lane.b32.xlu0 %v2353, 116
      %v2358 = vpop.permute.xlu0 %2357
      %2359 = vrot.lane.b32.xlu0 %v2354, 116
      %v2360 = vpop.permute.xlu0 %2359
      %2363 = vst.msk [vmem:[#allocation4 + $0xc0] sm:$0xff] %vm2218, %v2358
      %2364 = vst.msk [vmem:[#allocation4 + $0xc8] sm:$0xff] %vm2218, %v2360
      %v2365 = vld [vmem:[#allocation6] sm:$0xff]
      %v2366 = vld [vmem:[#allocation6 + $0x8] sm:$0xff]
      %2369 = vrot.lane.b32.xlu0 %v2365, 115
      %v2370 = vpop.permute.xlu0 %2369
      %2371 = vrot.lane.b32.xlu0 %v2366, 115
      %v2372 = vpop.permute.xlu0 %2371
      %2375 = vst.msk [vmem:[#allocation4 + $0xd0] sm:$0xff] %vm2218, %v2370
      %2376 = vst.msk [vmem:[#allocation4 + $0xd8] sm:$0xff] %vm2218, %v2372
      %v2377 = vld [vmem:[#allocation6] sm:$0xff]
      %v2378 = vld [vmem:[#allocation6 + $0x8] sm:$0xff]
      %2381 = vrot.lane.b32.xlu0 %v2377, 114
      %v2382 = vpop.permute.xlu0 %2381
      %2383 = vrot.lane.b32.xlu0 %v2378, 114
      %v2384 = vpop.permute.xlu0 %2383
      %2387 = vst.msk [vmem:[#allocation4 + $0xe0] sm:$0xff] %vm2218, %v2382
      %2388 = vst.msk [vmem:[#allocation4 + $0xe8] sm:$0xff] %vm2218, %v2384
      %v2389 = vld [vmem:[#allocation6] sm:$0xff]
      %v2390 = vld [vmem:[#allocation6 + $0x8] sm:$0xff]
      %2393 = vrot.lane.b32.xlu0 %v2389, 113
      %v2394 = vpop.permute.xlu0 %2393
      %2395 = vrot.lane.b32.xlu0 %v2390, 113
      %v2396 = vpop.permute.xlu0 %2395
      %2399 = vst.msk [vmem:[#allocation4 + $0xf0] sm:$0xff] %vm2218, %v2394
      %2400 = vst.msk [vmem:[#allocation4 + $0xf8] sm:$0xff] %vm2218, %v2396
      %v2401 = vld [vmem:[#allocation6] sm:$0xff]
      %v2402 = vld [vmem:[#allocation6 + $0x8] sm:$0xff]
      %2405 = vrot.lane.b32.xlu0 %v2401, 112
      %v2406 = vpop.permute.xlu0 %2405
      %2407 = vrot.lane.b32.xlu0 %v2402, 112
      %v2408 = vpop.permute.xlu0 %2407
      %2411 = vst.msk [vmem:[#allocation4 + $0x100] sm:$0xff] %vm2218, %v2406
      %2412 = vst.msk [vmem:[#allocation4 + $0x108] sm:$0xff] %vm2218, %v2408
      %v2413 = vld [vmem:[#allocation6] sm:$0xff]
      %v2414 = vld [vmem:[#allocation6 + $0x8] sm:$0xff]
      %2417 = vrot.lane.b32.xlu0 %v2413, 111
      %v2418 = vpop.permute.xlu0 %2417
      %2419 = vrot.lane.b32.xlu0 %v2414, 111
      %v2420 = vpop.permute.xlu0 %2419
      %2423 = vst.msk [vmem:[#allocation4 + $0x110] sm:$0xff] %vm2218, %v2418
      %2424 = vst.msk [vmem:[#allocation4 + $0x118] sm:$0xff] %vm2218, %v2420
      %v2425 = vld [vmem:[#allocation6] sm:$0xff]
      %v2426 = vld [vmem:[#allocation6 + $0x8] sm:$0xff]
      %2429 = vrot.lane.b32.xlu0 %v2425, 110
      %v2430 = vpop.permute.xlu0 %2429
      %2431 = vrot.lane.b32.xlu0 %v2426, 110
      %v2432 = vpop.permute.xlu0 %2431
      %2435 = vst.msk [vmem:[#allocation4 + $0x120] sm:$0xff] %vm2218, %v2430
      %2436 = vst.msk [vmem:[#allocation4 + $0x128] sm:$0xff] %vm2218, %v2432
      %v2437 = vld [vmem:[#allocation6] sm:$0xff]
      %v2438 = vld [vmem:[#allocation6 + $0x8] sm:$0xff]
      %2441 = vrot.lane.b32.xlu0 %v2437, 109
      %v2442 = vpop.permute.xlu0 %2441
      %2443 = vrot.lane.b32.xlu0 %v2438, 109
      %v2444 = vpop.permute.xlu0 %2443
      %2447 = vst.msk [vmem:[#allocation4 + $0x130] sm:$0xff] %vm2218, %v2442
      %2448 = vst.msk [vmem:[#allocation4 + $0x138] sm:$0xff] %vm2218, %v2444
      %v2449 = vld [vmem:[#allocation6] sm:$0xff]
      %v2450 = vld [vmem:[#allocation6 + $0x8] sm:$0xff]
      %2453 = vrot.lane.b32.xlu0 %v2449, 108
      %v2454 = vpop.permute.xlu0 %2453
      %2455 = vrot.lane.b32.xlu0 %v2450, 108
      %v2456 = vpop.permute.xlu0 %2455
      %2459 = vst.msk [vmem:[#allocation4 + $0x140] sm:$0xff] %vm2218, %v2454
      %2460 = vst.msk [vmem:[#allocation4 + $0x148] sm:$0xff] %vm2218, %v2456
      %v2461 = vld [vmem:[#allocation6] sm:$0xff]
      %v2462 = vld [vmem:[#allocation6 + $0x8] sm:$0xff]
      %2465 = vrot.lane.b32.xlu0 %v2461, 107
      %v2466 = vpop.permute.xlu0 %2465
      %2467 = vrot.lane.b32.xlu0 %v2462, 107
      %v2468 = vpop.permute.xlu0 %2467
      %2471 = vst.msk [vmem:[#allocation4 + $0x150] sm:$0xff] %vm2218, %v2466
      %2472 = vst.msk [vmem:[#allocation4 + $0x158] sm:$0xff] %vm2218, %v2468
      %v2473 = vld [vmem:[#allocation6] sm:$0xff]
      %v2474 = vld [vmem:[#allocation6 + $0x8] sm:$0xff]
      %2477 = vrot.lane.b32.xlu0 %v2473, 106
      %v2478 = vpop.permute.xlu0 %2477
      %2479 = vrot.lane.b32.xlu0 %v2474, 106
      %v2480 = vpop.permute.xlu0 %2479
      %2483 = vst.msk [vmem:[#allocation4 + $0x160] sm:$0xff] %vm2218, %v2478
      %2484 = vst.msk [vmem:[#allocation4 + $0x168] sm:$0xff] %vm2218, %v2480
      %v2485 = vld [vmem:[#allocation6] sm:$0xff]
      %v2486 = vld [vmem:[#allocation6 + $0x8] sm:$0xff]
      %2489 = vrot.lane.b32.xlu0 %v2485, 105
      %v2490 = vpop.permute.xlu0 %2489
      %2491 = vrot.lane.b32.xlu0 %v2486, 105
      %v2492 = vpop.permute.xlu0 %2491
      %2495 = vst.msk [vmem:[#allocation4 + $0x170] sm:$0xff] %vm2218, %v2490
      %2496 = vst.msk [vmem:[#allocation4 + $0x178] sm:$0xff] %vm2218, %v2492
      %v2497 = vld [vmem:[#allocation6] sm:$0xff]
      %v2498 = vld [vmem:[#allocation6 + $0x8] sm:$0xff]
      %2501 = vrot.lane.b32.xlu0 %v2497, 104
      %v2502 = vpop.permute.xlu0 %2501
      %2503 = vrot.lane.b32.xlu0 %v2498, 104
      %v2504 = vpop.permute.xlu0 %2503
      %2507 = vst.msk [vmem:[#allocation4 + $0x180] sm:$0xff] %vm2218, %v2502
      %2508 = vst.msk [vmem:[#allocation4 + $0x188] sm:$0xff] %vm2218, %v2504
      %v2509 = vld [vmem:[%s7] sm:$0xff]
      %v2510 = vld [vmem:[%s7 + $0x8] sm:$0xff]
      %v2511 = vld [vmem:[%s7 + $0x10] sm:$0xff]
      %v2512 = vld [vmem:[%s7 + $0x18] sm:$0xff]
      %v2513 = vld [vmem:[%s7 + $0x20] sm:$0xff]
      %v2514 = vld [vmem:[%s7 + $0x28] sm:$0xff]
      %v2515 = vld [vmem:[%s7 + $0x30] sm:$0xff]
      %v2516 = vld [vmem:[%s7 + $0x38] sm:$0xff]
      %v2517 = vld [vmem:[%s7 + $0x40] sm:$0xff]
      %v2518 = vld [vmem:[%s7 + $0x48] sm:$0xff]
      %v2519 = vld [vmem:[%s7 + $0x50] sm:$0xff]
      %v2520 = vld [vmem:[%s7 + $0x58] sm:$0xff]
      %v2521 = vld [vmem:[%s7 + $0x60] sm:$0xff]
      %v2522 = vld [vmem:[%s7 + $0x68] sm:$0xff]
      %v2523 = vld [vmem:[%s7 + $0x70] sm:$0xff]
      %v2524 = vld [vmem:[%s7 + $0x78] sm:$0xff]
      %v2525 = vld [vmem:[%s7 + $0x80] sm:$0xff]
      %v2526 = vld [vmem:[%s7 + $0x88] sm:$0xff]
      %v2527 = vld [vmem:[%s7 + $0x90] sm:$0xff]
      %v2528 = vld [vmem:[%s7 + $0x98] sm:$0xff]
      %v2529 = vld [vmem:[%s7 + $0xa0] sm:$0xff]
      %v2530 = vld [vmem:[%s7 + $0xa8] sm:$0xff]
      %v2531 = vld [vmem:[%s7 + $0xb0] sm:$0xff]
      %v2532 = vld [vmem:[%s7 + $0xb8] sm:$0xff]
      %v2533 = vld [vmem:[%s7 + $0xc0] sm:$0xff]
      %v2534 = vld [vmem:[%s7 + $0xc8] sm:$0xff]
      %v2535 = vld [vmem:[%s7 + $0xd0] sm:$0xff]
      %v2536 = vld [vmem:[%s7 + $0xd8] sm:$0xff]
      %v2537 = vld [vmem:[%s7 + $0xe0] sm:$0xff]
      %v2538 = vld [vmem:[%s7 + $0xe8] sm:$0xff]
      %v2539 = vld [vmem:[%s7 + $0xf0] sm:$0xff]
      %v2540 = vld [vmem:[%s7 + $0xf8] sm:$0xff]
      %v2541 = vld [vmem:[%s7 + $0x100] sm:$0xff]
      %v2542 = vld [vmem:[%s7 + $0x108] sm:$0xff]
      %v2543 = vld [vmem:[%s7 + $0x110] sm:$0xff]
      %v2544 = vld [vmem:[%s7 + $0x118] sm:$0xff]
      %v2545 = vld [vmem:[%s7 + $0x120] sm:$0xff]
      %v2546 = vld [vmem:[%s7 + $0x128] sm:$0xff]
      %v2547 = vld [vmem:[%s7 + $0x130] sm:$0xff]
      %v2548 = vld [vmem:[%s7 + $0x138] sm:$0xff]
      %v2549 = vld [vmem:[%s7 + $0x140] sm:$0xff]
      %v2550 = vld [vmem:[%s7 + $0x148] sm:$0xff]
      %v2551 = vld [vmem:[%s7 + $0x150] sm:$0xff]
      %v2552 = vld [vmem:[%s7 + $0x158] sm:$0xff]
      %v2553 = vld [vmem:[%s7 + $0x160] sm:$0xff]
      %v2554 = vld [vmem:[%s7 + $0x168] sm:$0xff]
      %v2555 = vld [vmem:[%s7 + $0x170] sm:$0xff]
      %v2556 = vld [vmem:[%s7 + $0x178] sm:$0xff]
      %v2557 = vld [vmem:[%s7 + $0x180] sm:$0xff]
      %v2558 = vld [vmem:[%s7 + $0x188] sm:$0xff]
      %v2559 = vld [vmem:[%s7 + $0x190] sm:$0xff]
      %v2560 = vld [vmem:[%s7 + $0x198] sm:$0xff]
      %v2561 = vld [vmem:[%s7 + $0x1a0] sm:$0xff]
      %v2562 = vld [vmem:[%s7 + $0x1a8] sm:$0xff]
      %v2563 = vld [vmem:[%s7 + $0x1b0] sm:$0xff]
      %v2564 = vld [vmem:[%s7 + $0x1b8] sm:$0xff]
      %v2565 = vld [vmem:[%s7 + $0x1c0] sm:$0xff]
      %v2566 = vld [vmem:[%s7 + $0x1c8] sm:$0xff]
      %v2567 = vld [vmem:[%s7 + $0x1d0] sm:$0xff]
      %v2568 = vld [vmem:[%s7 + $0x1d8] sm:$0xff]
      %v2569 = vld [vmem:[#allocation4] sm:$0xff]
      %v2570 = vld [vmem:[#allocation4 + $0x8] sm:$0xff]
      %v2571 = vld [vmem:[#allocation4 + $0x10] sm:$0xff]
      %v2572 = vld [vmem:[#allocation4 + $0x18] sm:$0xff]
      %v2573 = vld [vmem:[#allocation4 + $0x20] sm:$0xff]
      %v2574 = vld [vmem:[#allocation4 + $0x28] sm:$0xff]
      %v2575 = vld [vmem:[#allocation4 + $0x30] sm:$0xff]
      %v2576 = vld [vmem:[#allocation4 + $0x38] sm:$0xff]
      %v2577 = vld [vmem:[#allocation4 + $0x40] sm:$0xff]
      %v2578 = vld [vmem:[#allocation4 + $0x48] sm:$0xff]
      %v2579 = vld [vmem:[#allocation4 + $0x50] sm:$0xff]
      %v2580 = vld [vmem:[#allocation4 + $0x58] sm:$0xff]
      %v2581 = vld [vmem:[#allocation4 + $0x60] sm:$0xff]
      %v2582 = vld [vmem:[#allocation4 + $0x68] sm:$0xff]
      %v2583 = vld [vmem:[#allocation4 + $0x70] sm:$0xff]
      %v2584 = vld [vmem:[#allocation4 + $0x78] sm:$0xff]
      %v2585 = vld [vmem:[#allocation4 + $0x80] sm:$0xff]
      %v2586 = vld [vmem:[#allocation4 + $0x88] sm:$0xff]
      %v2587 = vld [vmem:[#allocation4 + $0x90] sm:$0xff]
      %v2588 = vld [vmem:[#allocation4 + $0x98] sm:$0xff]
      %v2589 = vld [vmem:[#allocation4 + $0xa0] sm:$0xff]
      %v2590 = vld [vmem:[#allocation4 + $0xa8] sm:$0xff]
      %v2591 = vld [vmem:[#allocation4 + $0xb0] sm:$0xff]
      %v2592 = vld [vmem:[#allocation4 + $0xb8] sm:$0xff]
      %v2593 = vld [vmem:[#allocation4 + $0xc0] sm:$0xff]
      %v2594 = vld [vmem:[#allocation4 + $0xc8] sm:$0xff]
      %v2595 = vld [vmem:[#allocation4 + $0xd0] sm:$0xff]
      %v2596 = vld [vmem:[#allocation4 + $0xd8] sm:$0xff]
      %v2597 = vld [vmem:[#allocation4 + $0xe0] sm:$0xff]
      %v2598 = vld [vmem:[#allocation4 + $0xe8] sm:$0xff]
      %v2599 = vld [vmem:[#allocation4 + $0xf0] sm:$0xff]
      %v2600 = vld [vmem:[#allocation4 + $0xf8] sm:$0xff]
      %v2601 = vld [vmem:[#allocation4 + $0x100] sm:$0xff]
      %v2602 = vld [vmem:[#allocation4 + $0x108] sm:$0xff]
      %v2603 = vld [vmem:[#allocation4 + $0x110] sm:$0xff]
      %v2604 = vld [vmem:[#allocation4 + $0x118] sm:$0xff]
      %v2605 = vld [vmem:[#allocation4 + $0x120] sm:$0xff]
      %v2606 = vld [vmem:[#allocation4 + $0x128] sm:$0xff]
      %v2607 = vld [vmem:[#allocation4 + $0x130] sm:$0xff]
      %v2608 = vld [vmem:[#allocation4 + $0x138] sm:$0xff]
      %v2609 = vld [vmem:[#allocation4 + $0x140] sm:$0xff]
      %v2610 = vld [vmem:[#allocation4 + $0x148] sm:$0xff]
      %v2611 = vld [vmem:[#allocation4 + $0x150] sm:$0xff]
      %v2612 = vld [vmem:[#allocation4 + $0x158] sm:$0xff]
      %v2613 = vld [vmem:[#allocation4 + $0x160] sm:$0xff]
      %v2614 = vld [vmem:[#allocation4 + $0x168] sm:$0xff]
      %v2615 = vld [vmem:[#allocation4 + $0x170] sm:$0xff]
      %v2616 = vld [vmem:[#allocation4 + $0x178] sm:$0xff]
      %v2617 = vld [vmem:[#allocation4 + $0x180] sm:$0xff]
      %v2618 = vld [vmem:[#allocation4 + $0x188] sm:$0xff]
      %v2619 = vld [vmem:[%s8] sm:$0xff]
      %v2620 = vld [vmem:[%s8 + $0x8] sm:$0xff]
      %v2621 = vld [vmem:[%s8 + $0x10] sm:$0xff]
      %v2622 = vld [vmem:[%s8 + $0x18] sm:$0xff]
      %v2623 = vld [vmem:[%s8 + $0x20] sm:$0xff]
      %v2624 = vld [vmem:[%s8 + $0x28] sm:$0xff]
      %v2625 = vld [vmem:[%s8 + $0x30] sm:$0xff]
      %v2626 = vld [vmem:[%s8 + $0x38] sm:$0xff]
      %v2627 = vld [vmem:[%s8 + $0x40] sm:$0xff]
      %v2628 = vld [vmem:[%s8 + $0x48] sm:$0xff]
      %v2629 = vld [vmem:[%s8 + $0x50] sm:$0xff]
      %v2630 = vld [vmem:[%s8 + $0x58] sm:$0xff]
      %v2631 = vld [vmem:[%s8 + $0x60] sm:$0xff]
      %v2632 = vld [vmem:[%s8 + $0x68] sm:$0xff]
      %v2633 = vld [vmem:[%s8 + $0x70] sm:$0xff]
      %2635 = vset.pattern.permute.xlu0 0
      %2636 = vperm.xlu0 %2635, %v2619
      %v2637 = vpop.permute.xlu0 %2636
      %2640 = vset.pattern.permute.xlu0 0
      %2641 = vperm.xlu0 %2640, %v2620
      %v2642 = vpop.permute.xlu0 %2641
      %2645 = vset.pattern.permute.xlu0 0
      %2646 = vperm.xlu0 %2645, %v2621
      %v2647 = vpop.permute.xlu0 %2646
      %2650 = vset.pattern.permute.xlu0 0
      %2651 = vperm.xlu0 %2650, %v2622
      %v2652 = vpop.permute.xlu0 %2651
      %2655 = vset.pattern.permute.xlu0 0
      %2656 = vperm.xlu0 %2655, %v2623
      %v2657 = vpop.permute.xlu0 %2656
      %2660 = vset.pattern.permute.xlu0 0
      %2661 = vperm.xlu0 %2660, %v2624
      %v2662 = vpop.permute.xlu0 %2661
      %2665 = vset.pattern.permute.xlu0 0
      %2666 = vperm.xlu0 %2665, %v2625
      %v2667 = vpop.permute.xlu0 %2666
      %2670 = vset.pattern.permute.xlu0 0
      %2671 = vperm.xlu0 %2670, %v2626
      %v2672 = vpop.permute.xlu0 %2671
      %2675 = vset.pattern.permute.xlu0 0
      %2676 = vperm.xlu0 %2675, %v2627
      %v2677 = vpop.permute.xlu0 %2676
      %2680 = vset.pattern.permute.xlu0 0
      %2681 = vperm.xlu0 %2680, %v2628
      %v2682 = vpop.permute.xlu0 %2681
      %2685 = vset.pattern.permute.xlu0 0
      %2686 = vperm.xlu0 %2685, %v2629
      %v2687 = vpop.permute.xlu0 %2686
      %2690 = vset.pattern.permute.xlu0 0
      %2691 = vperm.xlu0 %2690, %v2630
      %v2692 = vpop.permute.xlu0 %2691
      %2695 = vset.pattern.permute.xlu0 0
      %2696 = vperm.xlu0 %2695, %v2631
      %v2697 = vpop.permute.xlu0 %2696
      %2700 = vset.pattern.permute.xlu0 0
      %2701 = vperm.xlu0 %2700, %v2632
      %v2702 = vpop.permute.xlu0 %2701
      %2705 = vset.pattern.permute.xlu0 0
      %2706 = vperm.xlu0 %2705, %v2633
      %v2707 = vpop.permute.xlu0 %2706
      %vm2709 = vcmask 130048
      %v2711 = vsel %vm2709, %v2512, 0
      %v2714 = vsel %vm2709, %v2516, 0
      %v2717 = vsel %vm2709, %v2520, 0
      %v2720 = vsel %vm2709, %v2524, 0
      %v2723 = vsel %vm2709, %v2528, 0
      %v2726 = vsel %vm2709, %v2532, 0
      %v2729 = vsel %vm2709, %v2536, 0
      %v2732 = vsel %vm2709, %v2540, 0
      %v2735 = vsel %vm2709, %v2544, 0
      %v2738 = vsel %vm2709, %v2548, 0
      %v2741 = vsel %vm2709, %v2552, 0
      %v2744 = vsel %vm2709, %v2556, 0
      %v2747 = vsel %vm2709, %v2560, 0
      %v2750 = vsel %vm2709, %v2564, 0
      %v2753 = vsel %vm2709, %v2568, 0
      %2755 = vmatprep.subr.mxu0 0.0
      %2756 = vmatpush1.msra.mxu0 %v2569
      %2757 = vmatprep.subr.mxu0 0.0
      %2758 = vmatpush1.msra.mxu0 %v2570
      %2759 = vmatprep.subr.mxu0 0.0
      %2760 = vmatpush1.msra.mxu0 %v2571
      %2761 = vmatprep.subr.mxu0 0.0
      %2762 = vmatpush1.msra.mxu0 %v2572
      %2763 = vmatprep.subr.mxu0 0.0
      %2764 = vmatpush1.msra.mxu0 %v2573
      %2765 = vmatprep.subr.mxu0 0.0
      %2766 = vmatpush1.msra.mxu0 %v2574
      %2767 = vmatprep.subr.mxu0 0.0
      %2768 = vmatpush1.msra.mxu0 %v2575
      %2769 = vmatprep.subr.mxu0 0.0
      %2770 = vmatpush1.msra.mxu0 %v2576
      %2771 = vmatprep.subr.mxu0 0.0
      %2772 = vmatpush1.msra.mxu0 %v2577
      %2773 = vmatprep.subr.mxu0 0.0
      %2774 = vmatpush1.msra.mxu0 %v2578
      %2775 = vmatprep.subr.mxu0 0.0
      %2776 = vmatpush1.msra.mxu0 %v2579
      %2777 = vmatprep.subr.mxu0 0.0
      %2778 = vmatpush1.msra.mxu0 %v2580
      %2779 = vmatprep.subr.mxu0 0.0
      %2780 = vmatpush1.msra.mxu0 %v2581
      %2781 = vmatprep.subr.mxu0 0.0
      %2782 = vmatpush1.msra.mxu0 %v2582
      %2783 = vmatprep.subr.mxu0 0.0
      %2784 = vmatpush1.msra.mxu0 %v2583
      %2785 = vmatprep.subr.mxu0 0.0
      %2786 = vmatpush1.msra.mxu0 %v2584
      %2787 = vmatprep.subr.mxu0 0.0
      %2788 = vmatpush1.msra.mxu0 %v2585
      %2789 = vmatprep.subr.mxu0 0.0
      %2790 = vmatpush1.msra.mxu0 %v2586
      %2791 = vmatprep.subr.mxu0 0.0
      %2792 = vmatpush1.msra.mxu0 %v2587
      %2793 = vmatprep.subr.mxu0 0.0
      %2794 = vmatpush1.msra.mxu0 %v2588
      %2795 = vmatprep.subr.mxu0 0.0
      %2796 = vmatpush1.msra.mxu0 %v2589
      %2797 = vmatprep.subr.mxu0 0.0
      %2798 = vmatpush1.msra.mxu0 %v2590
      %2799 = vmatprep.subr.mxu0 0.0
      %2800 = vmatpush1.msra.mxu0 %v2591
      %2801 = vmatprep.subr.mxu0 0.0
      %2802 = vmatpush1.msra.mxu0 %v2592
      %2803 = vmatprep.subr.mxu0 0.0
      %2804 = vmatpush1.msra.mxu0 %v2593
      %2805 = vmatprep.subr.mxu0 0.0
      %2806 = vmatpush1.msra.mxu0 %v2594
      %2807 = vmatprep.subr.mxu0 0.0
      %2808 = vmatpush1.msra.mxu0 %v2595
      %2809 = vmatprep.subr.mxu0 0.0
      %2810 = vmatpush1.msra.mxu0 %v2596
      %2811 = vmatprep.subr.mxu0 0.0
      %2812 = vmatpush1.msra.mxu0 %v2597
      %2813 = vmatprep.subr.mxu0 0.0
      %2814 = vmatpush1.msra.mxu0 %v2598
      %2815 = vmatprep.subr.mxu0 0.0
      %2816 = vmatpush1.msra.mxu0 %v2599
      %2817 = vmatprep.subr.mxu0 0.0
      %2818 = vmatpush1.msra.mxu0 %v2600
      %2819 = vmatprep.mubr.f32.mxu0 %v2510
      %2820 = vmatmul.mubr.f32.gmra.mrb[0].mxu0 %v2509
      %v2821 = vpop.f32.mrb[0].mxu0
      %v2822 = vadd.f32 %v2637, %v2821
      %v2823 = vpop.f32.mrb[0].mxu0
      %2824 = vmatprep.mubr.f32.mxu0 %v2514
      %2825 = vmatmul.mubr.f32.gmra.mrb[0].mxu0 %v2513
      %v2826 = vpop.f32.mrb[0].mxu0
      %v2827 = vadd.f32 %v2642, %v2826
      %v2828 = vpop.f32.mrb[0].mxu0
      %2829 = vmatprep.mubr.f32.mxu0 %v2518
      %2830 = vmatmul.mubr.f32.gmra.mrb[0].mxu0 %v2517
      %v2831 = vpop.f32.mrb[0].mxu0
      %v2832 = vadd.f32 %v2647, %v2831
      %v2833 = vpop.f32.mrb[0].mxu0
      %2834 = vmatprep.mubr.f32.mxu0 %v2522
      %2835 = vmatmul.mubr.f32.gmra.mrb[0].mxu0 %v2521
      %v2836 = vpop.f32.mrb[0].mxu0
      %v2837 = vadd.f32 %v2652, %v2836
      %v2838 = vpop.f32.mrb[0].mxu0
      %2839 = vmatprep.mubr.f32.mxu0 %v2526
      %2840 = vmatmul.mubr.f32.gmra.mrb[0].mxu0 %v2525
      %v2841 = vpop.f32.mrb[0].mxu0
      %v2842 = vadd.f32 %v2657, %v2841
      %v2843 = vpop.f32.mrb[0].mxu0
      %2844 = vmatprep.mubr.f32.mxu0 %v2530
      %2845 = vmatmul.mubr.f32.gmra.mrb[0].mxu0 %v2529
      %v2846 = vpop.f32.mrb[0].mxu0
      %v2847 = vadd.f32 %v2662, %v2846
      %v2848 = vpop.f32.mrb[0].mxu0
      %2849 = vmatprep.mubr.f32.mxu0 %v2534
      %2850 = vmatmul.mubr.f32.gmra.mrb[0].mxu0 %v2533
      %v2851 = vpop.f32.mrb[0].mxu0
      %v2852 = vadd.f32 %v2667, %v2851
      %v2853 = vpop.f32.mrb[0].mxu0
      %2854 = vmatprep.mubr.f32.mxu0 %v2538
      %2855 = vmatmul.mubr.f32.gmra.mrb[0].mxu0 %v2537
      %v2856 = vpop.f32.mrb[0].mxu0
      %v2857 = vadd.f32 %v2672, %v2856
      %v2858 = vpop.f32.mrb[0].mxu0
      %2859 = vmatprep.mubr.f32.mxu0 %v2542
      %2860 = vmatmul.mubr.f32.gmra.mrb[0].mxu0 %v2541
      %v2861 = vpop.f32.mrb[0].mxu0
      %v2862 = vadd.f32 %v2677, %v2861
      %v2863 = vpop.f32.mrb[0].mxu0
      %2864 = vmatprep.mubr.f32.mxu0 %v2546
      %2865 = vmatmul.mubr.f32.gmra.mrb[0].mxu0 %v2545
      %v2866 = vpop.f32.mrb[0].mxu0
      %v2867 = vadd.f32 %v2682, %v2866
      %v2868 = vpop.f32.mrb[0].mxu0
      %2869 = vmatprep.mubr.f32.mxu0 %v2550
      %2870 = vmatmul.mubr.f32.gmra.mrb[0].mxu0 %v2549
      %v2871 = vpop.f32.mrb[0].mxu0
      %v2872 = vadd.f32 %v2687, %v2871
      %v2873 = vpop.f32.mrb[0].mxu0
      %2874 = vmatprep.mubr.f32.mxu0 %v2554
      %2875 = vmatmul.mubr.f32.gmra.mrb[0].mxu0 %v2553
      %v2876 = vpop.f32.mrb[0].mxu0
      %v2877 = vadd.f32 %v2692, %v2876
      %v2878 = vpop.f32.mrb[0].mxu0
      %2879 = vmatprep.mubr.f32.mxu0 %v2558
      %2880 = vmatmul.mubr.f32.gmra.mrb[0].mxu0 %v2557
      %v2881 = vpop.f32.mrb[0].mxu0
      %v2882 = vadd.f32 %v2697, %v2881
      %v2883 = vpop.f32.mrb[0].mxu0
      %2884 = vmatprep.mubr.f32.mxu0 %v2562
      %2885 = vmatmul.mubr.f32.gmra.mrb[0].mxu0 %v2561
      %v2886 = vpop.f32.mrb[0].mxu0
      %v2887 = vadd.f32 %v2702, %v2886
      %v2888 = vpop.f32.mrb[0].mxu0
      %2889 = vmatprep.mubr.f32.mxu0 %v2566
      %2890 = vmatmul.mubr.f32.gmra.mrb[0].mxu0 %v2565
      %v2891 = vpop.f32.mrb[0].mxu0
      %v2892 = vadd.f32 %v2707, %v2891
      %v2893 = vpop.f32.mrb[0].mxu0
      %2894 = vdwg.mxu0
      %2895 = vmatprep.subr.mxu0 0.0
      %2896 = vmatpush1.msra.mxu0 %v2601
      %2897 = vmatprep.subr.mxu0 0.0
      %2898 = vmatpush1.msra.mxu0 %v2602
      %2899 = vmatprep.subr.mxu0 0.0
      %2900 = vmatpush1.msra.mxu0 %v2603
      %2901 = vmatprep.subr.mxu0 0.0
      %2902 = vmatpush1.msra.mxu0 %v2604
      %2903 = vmatprep.subr.mxu0 0.0
      %2904 = vmatpush1.msra.mxu0 %v2605
      %2905 = vmatprep.subr.mxu0 0.0
      %2906 = vmatpush1.msra.mxu0 %v2606
      %2907 = vmatprep.subr.mxu0 0.0
      %2908 = vmatpush1.msra.mxu0 %v2607
      %2909 = vmatprep.subr.mxu0 0.0
      %2910 = vmatpush1.msra.mxu0 %v2608
      %2911 = vmatprep.subr.mxu0 0.0
      %2912 = vmatpush1.msra.mxu0 %v2609
      %2913 = vmatprep.subr.mxu0 0.0
      %2914 = vmatpush1.msra.mxu0 %v2610
      %2915 = vmatprep.subr.mxu0 0.0
      %2916 = vmatpush1.msra.mxu0 %v2611
      %2917 = vmatprep.subr.mxu0 0.0
      %2918 = vmatpush1.msra.mxu0 %v2612
      %2919 = vmatprep.subr.mxu0 0.0
      %2920 = vmatpush1.msra.mxu0 %v2613
      %2921 = vmatprep.subr.mxu0 0.0
      %2922 = vmatpush1.msra.mxu0 %v2614
      %2923 = vmatprep.subr.mxu0 0.0
      %2924 = vmatpush1.msra.mxu0 %v2615
      %2925 = vmatprep.subr.mxu0 0.0
      %2926 = vmatpush1.msra.mxu0 %v2616
      %2927 = vmatprep.subr.mxu0 0.0
      %2928 = vmatpush1.msra.mxu0 %v2617
      %2929 = vmatprep.subr.mxu0 0.0
      %2930 = vmatpush1.msra.mxu0 %v2618
      %2931 = vmatprep.subr.mxu0 0.0
      %2932 = vmatpush1.msra.mxu0 0.0
      %2933 = vmatprep.subr.mxu0 0.0
      %2934 = vmatpush1.msra.mxu0 0.0
      %2935 = vmatprep.subr.mxu0 0.0
      %2936 = vmatpush1.msra.mxu0 0.0
      %2937 = vmatprep.subr.mxu0 0.0
      %2938 = vmatpush1.msra.mxu0 0.0
      %2939 = vmatprep.subr.mxu0 0.0
      %2940 = vmatpush1.msra.mxu0 0.0
      %2941 = vmatprep.subr.mxu0 0.0
      %2942 = vmatpush1.msra.mxu0 0.0
      %2943 = vmatprep.subr.mxu0 0.0
      %2944 = vmatpush1.msra.mxu0 0.0
      %2945 = vmatprep.subr.mxu0 0.0
      %2946 = vmatpush1.msra.mxu0 0.0
      %2947 = vmatprep.subr.mxu0 0.0
      %2948 = vmatpush1.msra.mxu0 0.0
      %2949 = vmatprep.subr.mxu0 0.0
      %2950 = vmatpush1.msra.mxu0 0.0
      %2951 = vmatprep.subr.mxu0 0.0
      %2952 = vmatpush1.msra.mxu0 0.0
      %2953 = vmatprep.subr.mxu0 0.0
      %2954 = vmatpush1.msra.mxu0 0.0
      %2955 = vmatprep.subr.mxu0 0.0
      %2956 = vmatpush1.msra.mxu0 0.0
      %2957 = vmatprep.subr.mxu0 0.0
      %2958 = vmatpush1.msra.mxu0 0.0
      %2959 = vmatprep.mubr.f32.mxu0 %v2711
      %2960 = vmatmul.mubr.f32.gmra.mrb[0].mxu0 %v2511
      %v2961 = vpop.f32.mrb[0].mxu0
      %v2962 = vadd.f32 %v2822, %v2961
      %v2963 = vpop.f32.mrb[0].mxu0
      %2964 = vmatprep.mubr.f32.mxu0 %v2714
      %2965 = vmatmul.mubr.f32.gmra.mrb[0].mxu0 %v2515
      %v2966 = vpop.f32.mrb[0].mxu0
      %v2967 = vadd.f32 %v2827, %v2966
      %v2968 = vpop.f32.mrb[0].mxu0
      %2969 = vmatprep.mubr.f32.mxu0 %v2717
      %2970 = vmatmul.mubr.f32.gmra.mrb[0].mxu0 %v2519
      %v2971 = vpop.f32.mrb[0].mxu0
      %v2972 = vadd.f32 %v2832, %v2971
      %v2973 = vpop.f32.mrb[0].mxu0
      %2974 = vmatprep.mubr.f32.mxu0 %v2720
      %2975 = vmatmul.mubr.f32.gmra.mrb[0].mxu0 %v2523
      %v2976 = vpop.f32.mrb[0].mxu0
      %v2977 = vadd.f32 %v2837, %v2976
      %v2978 = vpop.f32.mrb[0].mxu0
      %2979 = vmatprep.mubr.f32.mxu0 %v2723
      %2980 = vmatmul.mubr.f32.gmra.mrb[0].mxu0 %v2527
      %v2981 = vpop.f32.mrb[0].mxu0
      %v2982 = vadd.f32 %v2842, %v2981
      %v2983 = vpop.f32.mrb[0].mxu0
      %2984 = vmatprep.mubr.f32.mxu0 %v2726
      %2985 = vmatmul.mubr.f32.gmra.mrb[0].mxu0 %v2531
      %v2986 = vpop.f32.mrb[0].mxu0
      %v2987 = vadd.f32 %v2847, %v2986
      %v2988 = vpop.f32.mrb[0].mxu0
      %2989 = vmatprep.mubr.f32.mxu0 %v2729
      %2990 = vmatmul.mubr.f32.gmra.mrb[0].mxu0 %v2535
      %v2991 = vpop.f32.mrb[0].mxu0
      %v2992 = vadd.f32 %v2852, %v2991
      %v2993 = vpop.f32.mrb[0].mxu0
      %2994 = vmatprep.mubr.f32.mxu0 %v2732
      %2995 = vmatmul.mubr.f32.gmra.mrb[0].mxu0 %v2539
      %v2996 = vpop.f32.mrb[0].mxu0
      %v2997 = vadd.f32 %v2857, %v2996
      %v2998 = vpop.f32.mrb[0].mxu0
      %2999 = vmatprep.mubr.f32.mxu0 %v2735
      %3000 = vmatmul.mubr.f32.gmra.mrb[0].mxu0 %v2543
      %v3001 = vpop.f32.mrb[0].mxu0
      %v3002 = vadd.f32 %v2862, %v3001
      %v3003 = vpop.f32.mrb[0].mxu0
      %3004 = vmatprep.mubr.f32.mxu0 %v2738
      %3005 = vmatmul.mubr.f32.gmra.mrb[0].mxu0 %v2547
      %v3006 = vpop.f32.mrb[0].mxu0
      %v3007 = vadd.f32 %v2867, %v3006
      %v3008 = vpop.f32.mrb[0].mxu0
      %3009 = vmatprep.mubr.f32.mxu0 %v2741
      %3010 = vmatmul.mubr.f32.gmra.mrb[0].mxu0 %v2551
      %v3011 = vpop.f32.mrb[0].mxu0
      %v3012 = vadd.f32 %v2872, %v3011
      %v3013 = vpop.f32.mrb[0].mxu0
      %3014 = vmatprep.mubr.f32.mxu0 %v2744
      %3015 = vmatmul.mubr.f32.gmra.mrb[0].mxu0 %v2555
      %v3016 = vpop.f32.mrb[0].mxu0
      %v3017 = vadd.f32 %v2877, %v3016
      %v3018 = vpop.f32.mrb[0].mxu0
      %3019 = vmatprep.mubr.f32.mxu0 %v2747
      %3020 = vmatmul.mubr.f32.gmra.mrb[0].mxu0 %v2559
      %v3021 = vpop.f32.mrb[0].mxu0
      %v3022 = vadd.f32 %v2882, %v3021
      %v3023 = vpop.f32.mrb[0].mxu0
      %3024 = vmatprep.mubr.f32.mxu0 %v2750
      %3025 = vmatmul.mubr.f32.gmra.mrb[0].mxu0 %v2563
      %v3026 = vpop.f32.mrb[0].mxu0
      %v3027 = vadd.f32 %v2887, %v3026
      %v3028 = vpop.f32.mrb[0].mxu0
      %3029 = vmatprep.mubr.f32.mxu0 %v2753
      %3030 = vmatmul.mubr.f32.gmra.mrb[0].mxu0 %v2567
      %v3031 = vpop.f32.mrb[0].mxu0
      %v3032 = vadd.f32 %v2892, %v3031
      %v3033 = vpop.f32.mrb[0].mxu0
      %3034 = vdwg.mxu0
      %v3035 = vtanh.pop %v2962
      %v3036 = vtanh.pop %v2967
      %v3037 = vtanh.pop %v2972
      %v3038 = vtanh.pop %v2977
      %v3039 = vtanh.pop %v2982
      %v3040 = vtanh.pop %v2987
      %v3041 = vtanh.pop %v2992
      %v3042 = vtanh.pop %v2997
      %v3043 = vtanh.pop %v3002
      %v3044 = vtanh.pop %v3007
      %v3045 = vtanh.pop %v3012
      %v3046 = vtanh.pop %v3017
      %v3047 = vtanh.pop %v3022
      %v3048 = vtanh.pop %v3027
      %v3049 = vtanh.pop %v3032
      %v3050 = vld [vmem:[%s9] sm:$0xff]
      %v3051 = vld [vmem:[%s9 + $0x8] sm:$0xff]
      %v3052 = vld [vmem:[%s9 + $0x10] sm:$0xff]
      %v3053 = vld [vmem:[%s9 + $0x18] sm:$0xff]
      %v3054 = vld [vmem:[%s9 + $0x20] sm:$0xff]
      %v3055 = vld [vmem:[%s9 + $0x28] sm:$0xff]
      %v3056 = vld [vmem:[%s9 + $0x30] sm:$0xff]
      %v3057 = vld [vmem:[%s9 + $0x38] sm:$0xff]
      %v3058 = vld [vmem:[%s9 + $0x40] sm:$0xff]
      %v3059 = vld [vmem:[%s9 + $0x48] sm:$0xff]
      %v3060 = vld [vmem:[%s9 + $0x50] sm:$0xf]
      %v3061 = vld [vmem:[%s10] sm:$0xff]
      %v3062 = vld [vmem:[%s10 + $0x8] sm:$0xff]
      %v3063 = vld [vmem:[%s10 + $0x10] sm:$0xff]
      %v3064 = vld [vmem:[%s10 + $0x18] sm:$0xff]
      %v3065 = vld [vmem:[%s10 + $0x20] sm:$0xff]
      %v3066 = vld [vmem:[%s10 + $0x28] sm:$0xff]
      %v3067 = vld [vmem:[%s10 + $0x30] sm:$0xff]
      %v3068 = vld [vmem:[%s10 + $0x38] sm:$0xff]
      %v3069 = vld [vmem:[%s10 + $0x40] sm:$0xff]
      %v3070 = vld [vmem:[%s10 + $0x48] sm:$0xff]
      %v3071 = vld [vmem:[%s10 + $0x50] sm:$0xf]
      %3073 = vset.pattern.permute.xlu0 0
      %3074 = vperm.xlu0 %3073, %v3061
      %v3075 = vpop.permute.xlu0 %3074
      %3078 = vset.pattern.permute.xlu0 0
      %3079 = vperm.xlu0 %3078, %v3062
      %v3080 = vpop.permute.xlu0 %3079
      %3083 = vset.pattern.permute.xlu0 0
      %3084 = vperm.xlu0 %3083, %v3063
      %v3085 = vpop.permute.xlu0 %3084
      %3088 = vset.pattern.permute.xlu0 0
      %3089 = vperm.xlu0 %3088, %v3064
      %v3090 = vpop.permute.xlu0 %3089
      %3093 = vset.pattern.permute.xlu0 0
      %3094 = vperm.xlu0 %3093, %v3065
      %v3095 = vpop.permute.xlu0 %3094
      %3098 = vset.pattern.permute.xlu0 0
      %3099 = vperm.xlu0 %3098, %v3066
      %v3100 = vpop.permute.xlu0 %3099
      %3103 = vset.pattern.permute.xlu0 0
      %3104 = vperm.xlu0 %3103, %v3067
      %v3105 = vpop.permute.xlu0 %3104
      %3108 = vset.pattern.permute.xlu0 0
      %3109 = vperm.xlu0 %3108, %v3068
      %v3110 = vpop.permute.xlu0 %3109
      %3113 = vset.pattern.permute.xlu0 0
      %3114 = vperm.xlu0 %3113, %v3069
      %v3115 = vpop.permute.xlu0 %3114
      %3118 = vset.pattern.permute.xlu0 0
      %3119 = vperm.xlu0 %3118, %v3070
      %v3120 = vpop.permute.xlu0 %3119
      %3123 = vset.pattern.permute.xlu0 0
      %3124 = vperm.xlu0 %3123, %v3071
      %v3125 = vpop.permute.xlu0 %3124
      %vm3127 = vcmask 982016
      %v3129 = vsel %vm3127, %v3050, 0
      %v3132 = vsel %vm3127, %v3051, 0
      %v3135 = vsel %vm3127, %v3052, 0
      %v3138 = vsel %vm3127, %v3053, 0
      %v3141 = vsel %vm3127, %v3054, 0
      %v3144 = vsel %vm3127, %v3055, 0
      %v3147 = vsel %vm3127, %v3056, 0
      %v3150 = vsel %vm3127, %v3057, 0
      %v3153 = vsel %vm3127, %v3058, 0
      %v3156 = vsel %vm3127, %v3059, 0
      %v3159 = vsel %vm3127, %v3060, 0
      %3161 = vmatprep.subr.mxu0 0.0
      %3162 = vmatpush1.msra.mxu0 %v3035
      %3163 = vmatprep.subr.mxu0 0.0
      %3164 = vmatpush1.msra.mxu0 %v3036
      %3165 = vmatprep.subr.mxu0 0.0
      %3166 = vmatpush1.msra.mxu0 %v3037
      %3167 = vmatprep.subr.mxu0 0.0
      %3168 = vmatpush1.msra.mxu0 %v3038
      %3169 = vmatprep.subr.mxu0 0.0
      %3170 = vmatpush1.msra.mxu0 %v3039
      %3171 = vmatprep.subr.mxu0 0.0
      %3172 = vmatpush1.msra.mxu0 %v3040
      %3173 = vmatprep.subr.mxu0 0.0
      %3174 = vmatpush1.msra.mxu0 %v3041
      %3175 = vmatprep.subr.mxu0 0.0
      %3176 = vmatpush1.msra.mxu0 %v3042
      %3177 = vmatprep.subr.mxu0 0.0
      %3178 = vmatpush1.msra.mxu0 %v3043
      %3179 = vmatprep.subr.mxu0 0.0
      %3180 = vmatpush1.msra.mxu0 %v3044
      %3181 = vmatprep.subr.mxu0 0.0
      %3182 = vmatpush1.msra.mxu0 %v3045
      %3183 = vmatprep.subr.mxu0 0.0
      %3184 = vmatpush1.msra.mxu0 %v3046
      %3185 = vmatprep.subr.mxu0 0.0
      %3186 = vmatpush1.msra.mxu0 %v3047
      %3187 = vmatprep.subr.mxu0 0.0
      %3188 = vmatpush1.msra.mxu0 %v3048
      %3189 = vmatprep.subr.mxu0 0.0
      %3190 = vmatpush1.msra.mxu0 %v3049
      %3191 = vmatprep.subr.mxu0 0.0
      %3192 = vmatpush1.msra.mxu0 0.0
      %3193 = vmatprep.subr.mxu0 0.0
      %3194 = vmatpush1.msra.mxu0 0.0
      %3195 = vmatprep.subr.mxu0 0.0
      %3196 = vmatpush1.msra.mxu0 0.0
      %3197 = vmatprep.subr.mxu0 0.0
      %3198 = vmatpush1.msra.mxu0 0.0
      %3199 = vmatprep.subr.mxu0 0.0
      %3200 = vmatpush1.msra.mxu0 0.0
      %3201 = vmatprep.subr.mxu0 0.0
      %3202 = vmatpush1.msra.mxu0 0.0
      %3203 = vmatprep.subr.mxu0 0.0
      %3204 = vmatpush1.msra.mxu0 0.0
      %3205 = vmatprep.subr.mxu0 0.0
      %3206 = vmatpush1.msra.mxu0 0.0
      %3207 = vmatprep.subr.mxu0 0.0
      %3208 = vmatpush1.msra.mxu0 0.0
      %3209 = vmatprep.subr.mxu0 0.0
      %3210 = vmatpush1.msra.mxu0 0.0
      %3211 = vmatprep.subr.mxu0 0.0
      %3212 = vmatpush1.msra.mxu0 0.0
      %3213 = vmatprep.subr.mxu0 0.0
      %3214 = vmatpush1.msra.mxu0 0.0
      %3215 = vmatprep.subr.mxu0 0.0
      %3216 = vmatpush1.msra.mxu0 0.0
      %3217 = vmatprep.subr.mxu0 0.0
      %3218 = vmatpush1.msra.mxu0 0.0
      %3219 = vmatprep.subr.mxu0 0.0
      %3220 = vmatpush1.msra.mxu0 0.0
      %3221 = vmatprep.subr.mxu0 0.0
      %3222 = vmatpush1.msra.mxu0 0.0
      %3223 = vmatprep.subr.mxu0 0.0
      %3224 = vmatpush1.msra.mxu0 0.0
      %3225 = vmatprep.mubr.f32.mxu0 0.0
      %3226 = vmatmul.mubr.f32.gmra.mrb[0].mxu0 %v3129
      %v3227 = vpop.f32.mrb[0].mxu0
      %v3228 = vadd.f32 %v3075, %v3227
      %v3229 = vpop.f32.mrb[0].mxu0
      %3230 = vmatprep.mubr.f32.mxu0 0.0
      %3231 = vmatmul.mubr.f32.gmra.mrb[0].mxu0 %v3132
      %v3232 = vpop.f32.mrb[0].mxu0
      %v3233 = vadd.f32 %v3080, %v3232
      %v3234 = vpop.f32.mrb[0].mxu0
      %3235 = vmatprep.mubr.f32.mxu0 0.0
      %3236 = vmatmul.mubr.f32.gmra.mrb[0].mxu0 %v3135
      %v3237 = vpop.f32.mrb[0].mxu0
      %v3238 = vadd.f32 %v3085, %v3237
      %v3239 = vpop.f32.mrb[0].mxu0
      %3240 = vmatprep.mubr.f32.mxu0 0.0
      %3241 = vmatmul.mubr.f32.gmra.mrb[0].mxu0 %v3138
      %v3242 = vpop.f32.mrb[0].mxu0
      %v3243 = vadd.f32 %v3090, %v3242
      %v3244 = vpop.f32.mrb[0].mxu0
      %3245 = vmatprep.mubr.f32.mxu0 0.0
      %3246 = vmatmul.mubr.f32.gmra.mrb[0].mxu0 %v3141
      %v3247 = vpop.f32.mrb[0].mxu0
      %v3248 = vadd.f32 %v3095, %v3247
      %v3249 = vpop.f32.mrb[0].mxu0
      %3250 = vmatprep.mubr.f32.mxu0 0.0
      %3251 = vmatmul.mubr.f32.gmra.mrb[0].mxu0 %v3144
      %v3252 = vpop.f32.mrb[0].mxu0
      %v3253 = vadd.f32 %v3100, %v3252
      %v3254 = vpop.f32.mrb[0].mxu0
      %3255 = vmatprep.mubr.f32.mxu0 0.0
      %3256 = vmatmul.mubr.f32.gmra.mrb[0].mxu0 %v3147
      %v3257 = vpop.f32.mrb[0].mxu0
      %v3258 = vadd.f32 %v3105, %v3257
      %v3259 = vpop.f32.mrb[0].mxu0
      %3260 = vmatprep.mubr.f32.mxu0 0.0
      %3261 = vmatmul.mubr.f32.gmra.mrb[0].mxu0 %v3150
      %v3262 = vpop.f32.mrb[0].mxu0
      %v3263 = vadd.f32 %v3110, %v3262
      %v3264 = vpop.f32.mrb[0].mxu0
      %3265 = vmatprep.mubr.f32.mxu0 0.0
      %3266 = vmatmul.mubr.f32.gmra.mrb[0].mxu0 %v3153
      %v3267 = vpop.f32.mrb[0].mxu0
      %v3268 = vadd.f32 %v3115, %v3267
      %v3269 = vpop.f32.mrb[0].mxu0
      %3270 = vmatprep.mubr.f32.mxu0 0.0
      %3271 = vmatmul.mubr.f32.gmra.mrb[0].mxu0 %v3156
      %v3272 = vpop.f32.mrb[0].mxu0
      %v3273 = vadd.f32 %v3120, %v3272
      %v3274 = vpop.f32.mrb[0].mxu0
      %3275 = vmatprep.mubr.f32.mxu0 0.0
      %3276 = vmatmul.mubr.f32.gmra.mrb[0].mxu0 %v3159
      %v3277 = vpop.f32.mrb[0].mxu0
      %v3278 = vadd.f32 %v3125, %v3277
      %v3279 = vpop.f32.mrb[0].mxu0
      %3280 = vdwg.mxu0
      %v3281 = vtanh.pop %v3228
      %v3282 = vtanh.pop %v3233
      %v3283 = vtanh.pop %v3238
      %v3284 = vtanh.pop %v3243
      %v3285 = vtanh.pop %v3248
      %v3286 = vtanh.pop %v3253
      %v3287 = vtanh.pop %v3258
      %v3288 = vtanh.pop %v3263
      %v3289 = vtanh.pop %v3268
      %v3290 = vtanh.pop %v3273
      %v3291 = vtanh.pop %v3278
      %v3292 = vld [vmem:[%s11] sm:$0xff]
      %v3293 = vld [vmem:[%s11 + $0x8] sm:$0x3]
      %v3294 = vld [vmem:[%s12] sm:$0xff]
      %v3295 = vld [vmem:[%s12 + $0x8] sm:$0x3]
      %3297 = vset.pattern.permute.xlu0 0
      %3298 = vperm.xlu0 %3297, %v3294
      %v3299 = vpop.permute.xlu0 %3298
      %3302 = vset.pattern.permute.xlu0 0
      %3303 = vperm.xlu0 %3302, %v3295
      %v3304 = vpop.permute.xlu0 %3303
      %v3307 = vsel %vm1839, %v3292, 0
      %v3310 = vsel %vm1839, %v3293, 0
      %v3313 = vsel %vm2135, %v3291, 0
      %3315 = vmatprep.subr.mxu0 0.0
      %3316 = vmatpush1.msra.mxu0 %v3281
      %3317 = vmatprep.subr.mxu0 0.0
      %3318 = vmatpush1.msra.mxu0 %v3282
      %3319 = vmatprep.subr.mxu0 0.0
      %3320 = vmatpush1.msra.mxu0 %v3283
      %3321 = vmatprep.subr.mxu0 0.0
      %3322 = vmatpush1.msra.mxu0 %v3284
      %3323 = vmatprep.subr.mxu0 0.0
      %3324 = vmatpush1.msra.mxu0 %v3285
      %3325 = vmatprep.subr.mxu0 0.0
      %3326 = vmatpush1.msra.mxu0 %v3286
      %3327 = vmatprep.subr.mxu0 0.0
      %3328 = vmatpush1.msra.mxu0 %v3287
      %3329 = vmatprep.subr.mxu0 0.0
      %3330 = vmatpush1.msra.mxu0 %v3288
      %3331 = vmatprep.subr.mxu0 0.0
      %3332 = vmatpush1.msra.mxu0 %v3289
      %3333 = vmatprep.subr.mxu0 0.0
      %3334 = vmatpush1.msra.mxu0 %v3290
      %3335 = vmatprep.subr.mxu0 0.0
      %3336 = vmatpush1.msra.mxu0 %v3313
      %3337 = vmatprep.subr.mxu0 0.0
      %3338 = vmatpush1.msra.mxu0 0.0
      %3339 = vmatprep.subr.mxu0 0.0
      %3340 = vmatpush1.msra.mxu0 0.0
      %3341 = vmatprep.subr.mxu0 0.0
      %3342 = vmatpush1.msra.mxu0 0.0
      %3343 = vmatprep.subr.mxu0 0.0
      %3344 = vmatpush1.msra.mxu0 0.0
      %3345 = vmatprep.subr.mxu0 0.0
      %3346 = vmatpush1.msra.mxu0 0.0
      %3347 = vmatprep.subr.mxu0 0.0
      %3348 = vmatpush1.msra.mxu0 0.0
      %3349 = vmatprep.subr.mxu0 0.0
      %3350 = vmatpush1.msra.mxu0 0.0
      %3351 = vmatprep.subr.mxu0 0.0
      %3352 = vmatpush1.msra.mxu0 0.0
      %3353 = vmatprep.subr.mxu0 0.0
      %3354 = vmatpush1.msra.mxu0 0.0
      %3355 = vmatprep.subr.mxu0 0.0
      %3356 = vmatpush1.msra.mxu0 0.0
      %3357 = vmatprep.subr.mxu0 0.0
      %3358 = vmatpush1.msra.mxu0 0.0
      %3359 = vmatprep.subr.mxu0 0.0
      %3360 = vmatpush1.msra.mxu0 0.0
      %3361 = vmatprep.subr.mxu0 0.0
      %3362 = vmatpush1.msra.mxu0 0.0
      %3363 = vmatprep.subr.mxu0 0.0
      %3364 = vmatpush1.msra.mxu0 0.0
      %3365 = vmatprep.subr.mxu0 0.0
      %3366 = vmatpush1.msra.mxu0 0.0
      %3367 = vmatprep.subr.mxu0 0.0
      %3368 = vmatpush1.msra.mxu0 0.0
      %3369 = vmatprep.subr.mxu0 0.0
      %3370 = vmatpush1.msra.mxu0 0.0
      %3371 = vmatprep.subr.mxu0 0.0
      %3372 = vmatpush1.msra.mxu0 0.0
      %3373 = vmatprep.subr.mxu0 0.0
      %3374 = vmatpush1.msra.mxu0 0.0
      %3375 = vmatprep.subr.mxu0 0.0
      %3376 = vmatpush1.msra.mxu0 0.0
      %3377 = vmatprep.subr.mxu0 0.0
      %3378 = vmatpush1.msra.mxu0 0.0
      %3379 = vmatprep.mubr.f32.mxu0 0.0
      %3380 = vmatmul.mubr.f32.gmra.mrb[0].mxu0 %v3307
      %v3381 = vpop.f32.mrb[0].mxu0
      %v3382 = vadd.f32 %v3299, %v3381
      %v3383 = vpop.f32.mrb[0].mxu0
      %3384 = vmatprep.mubr.f32.mxu0 0.0
      %3385 = vmatmul.mubr.f32.gmra.mrb[0].mxu0 %v3310
      %v3386 = vpop.f32.mrb[0].mxu0
      %v3387 = vadd.f32 %v3304, %v3386
      %v3388 = vpop.f32.mrb[0].mxu0
      %3389 = vdwg.mxu0
      %vm3390 = vcmask 7168
      %3391 = vst.msk [vmem:[%s437] sm:$0xff] %vm3390, %v3382
      %vm3392 = vcmask 1024
      %3393 = vst.msk [vmem:[%s437 + $0x8] sm:$0x3] %vm3392, %v3387
      %p3394 = scmp.lt.s32.totalorder %s24, 1
      %s3395 = scalar_select %p3394, %s24, 1
      %s3396 = smul.addr %s3395, 2
      %s3397 = smul.addr %s3396, 8
      %s3398 = scalar_lea.vmem %s13, %s3397
      // Predicated region
      $region73: #{lenet5_forward.1} parent=71 // pred_check
        %p3399 = pneg %p320
      $region74: #{lenet5_forward.1} parent=71 // pred_check_branch
        %3401 = sbr.rel (%p3399) target = $region76
      $region75: #{lenet5_forward.1} parent=71 // pred_region
        _
      $region76: #{lenet5_forward.1} parent=71 // pred_fallthru
        _
    $region72: #{lenet5_forward.1} parent=5 // pred_fallthru
      _
    %p3402 = scmp.le.s32.totalorder 2, %s19
    // Predicated region
    $region77: #{lenet5_forward.1} parent=5 // pred_check
      %p3403 = pneg %p3402
    $region78: #{lenet5_forward.1} parent=5 // pred_check_branch
      %3405 = sbr.rel (%p3403) target = $region80
    $region79: #{lenet5_forward.1} parent=5 // pred_region
      %s3406 = ssub.s32 %s19, 2
      // Predicated region
      $region81: #{lenet5_forward.1} parent=79 // pred_check
        %p3407 = pneg %p326
      $region82: #{lenet5_forward.1} parent=79 // pred_check_branch
        %3409 = sbr.rel (%p3407) target = $region84
      $region83: #{lenet5_forward.1} parent=79 // pred_region
        %p3410 = scmp.lt.s32.totalorder %s25, 1
        %s3411 = scalar_select %p3410, %s25, 1
        %s3412 = smul.addr %s3411, 2
        %s3413 = smul.addr %s3412, 8
        %s3414 = scalar_lea.vmem %s13, %s3413
      $region84: #{lenet5_forward.1} parent=79 // pred_fallthru
        _
    $region80: #{lenet5_forward.1} parent=5 // pred_fallthru
      _
  $region6: #{lenet5_forward.1} parent=0 // loop_footer
    %s23 = sadd.s32 1, %s19
  $region7: #{lenet5_forward.1} parent=0 // loop_footer_branch
    %18 = sbr.rel target = $region3
  $region8: #{lenet5_forward.1} parent=0 // loop_exit
    _

</llo_original>
